<compile_context>
chip_gen: v7x
topology: tpu7x:2x2x1
jax: 0.10.0
libtpu: 0.0.40
codegen_flags: <defaults>
</compile_context>

<pallas_src>
import functools
import math

import jax
import jax.numpy as jnp
from jax.experimental import pallas as pl
from jax.experimental.pallas import tpu as pltpu


# ----------------------------------------------------------------------------
# In-kernel helpers
# ----------------------------------------------------------------------------
def _layernorm(x, w, b, eps=1e-5):
    # matches F.layer_norm over the last dim (biased variance, eps=1e-5)
    mu = jnp.mean(x, axis=-1, keepdims=True)
    var = jnp.mean((x - mu) ** 2, axis=-1, keepdims=True)
    return (x - mu) * jax.lax.rsqrt(var + eps) * w + b


# ----------------------------------------------------------------------------
# Fused SLR kernel: grid = (n_batch_blocks, n_layer)
# ----------------------------------------------------------------------------
def slr_fused_kernel(
        # tokenizer data (per batch block; constant over the layer axis)
        ksp_ref, valid_ref, ktp_ref, validT_ref,
        # tokenizer weights + [cls | pos] rows (constant)
        ws_ref, bs_ref, wt_ref, bt_ref, base_ref,
        # per-layer weights, stacked with a leading layer dim (indexed by l)
        lnp_ref, wqkv_ref, bqkv_ref, wpo_ref, bpo_ref,
        wfc_ref, bfc_ref, wpr_ref, bpr_ref,
        # final LayerNorm weight (bias=False)
        lnf_ref,
        # output (1, Bb, C)
        o_ref,
        # VMEM scratch: activations and attention head-assembly buffer
        x_s, y_s,
        *, Bb, T, K, C, H, max_len):
    l = pl.program_id(1)
    S = 1 + T + K
    dh = C // H
    scale = 1.0 / math.sqrt(dh)

    # ---- tokenizer: initialize VMEM-resident activations on the first layer step
    @pl.when(l == 0)
    def _tokenize():
        # spatial tokens: sum_k [fc_k(kp[:, :, k]) * valid[:, :, k]], batch-folded
        sp = jnp.dot(ksp_ref[...], ws_ref[...], preferred_element_type=jnp.float32)
        sp = sp + jnp.dot(valid_ref[...], bs_ref[...],
                          preferred_element_type=jnp.float32)
        cnt_s = jnp.sum(valid_ref[...], axis=-1, keepdims=True)
        sp = jnp.maximum(sp * ((K + 1.0) / (cnt_s + 1.0)), 0.0)

        # temporal tokens: sum_t [fc_t(kp[:, t, :]) * valid[:, t, :]], batch-folded
        tp = jnp.dot(ktp_ref[...], wt_ref[...], preferred_element_type=jnp.float32)
        tp = tp + jnp.dot(validT_ref[...], bt_ref[...],
                          preferred_element_type=jnp.float32)
        cnt_t = jnp.sum(validT_ref[...], axis=-1, keepdims=True)
        tp = jnp.maximum(tp * ((max_len + 1.0) / (cnt_t + 1.0)), 0.0)

        base = base_ref[...]           # (S, C): row 0 = cls, rows 1.. = pos embd
        for b in range(Bb):            # static loop; slice stores, no concatenate
            r0 = b * S
            x_s[r0:r0 + 1, :] = base[0:1, :]
            x_s[r0 + 1:r0 + 1 + T, :] = sp[b * T:(b + 1) * T, :] + base[1:1 + T, :]
            x_s[r0 + 1 + T:r0 + S, :] = tp[b * K:(b + 1) * K, :] + base[1 + T:S, :]

    # ---- one pre-LN transformer block (layer l); batch block folded into rows ----
    x = x_s[...]                                       # (Bb*S, C) f32, VMEM resident
    lnp = lnp_ref[0]                                   # (4, C): ln1 w/b, ln2 w/b

    h1 = _layernorm(x, lnp[0:1, :], lnp[1:2, :])
    qkv = jnp.dot(h1.astype(jnp.bfloat16), wqkv_ref[0],
                  preferred_element_type=jnp.float32) + bqkv_ref[0]   # (Bb*S, 3C)

    # self-attention (non-causal, dropout=0); per-(batch, head) scores, head
    # outputs written directly into y_s (no concat), projected with one matmul.
    for b in range(Bb):
        r0 = b * S
        for hh in range(H):
            q = qkv[r0:r0 + S, hh * dh:(hh + 1) * dh]
            k = qkv[r0:r0 + S, C + hh * dh:C + (hh + 1) * dh]
            v = qkv[r0:r0 + S, 2 * C + hh * dh:2 * C + (hh + 1) * dh]
            att = jax.lax.dot_general(q, k, (((1,), (1,)), ((), ())),
                                      preferred_element_type=jnp.float32) * scale
            att = att - jnp.max(att, axis=-1, keepdims=True)
            e = jnp.exp(att)
            p = e * pl.reciprocal(jnp.sum(e, axis=-1, keepdims=True), approx=True)
            y_s[r0:r0 + S, hh * dh:(hh + 1) * dh] = jnp.dot(
                p, v, preferred_element_type=jnp.float32)

    y = jnp.dot(y_s[...].astype(jnp.bfloat16), wpo_ref[0],
                preferred_element_type=jnp.float32) + bpo_ref[0]
    x = x + y

    # MLP
    h2 = _layernorm(x, lnp[2:3, :], lnp[3:4, :])
    m = jnp.dot(h2.astype(jnp.bfloat16), wfc_ref[0],
                preferred_element_type=jnp.float32) + bfc_ref[0]
    # TODO(synk): PyTorch nn.GELU() is the exact erf GELU; using the tanh
    # approximation for TPU-safe lowering (numerically very close).
    m = jax.nn.gelu(m, approximate=True)
    m = jnp.dot(m.astype(jnp.bfloat16), wpr_ref[0],
                preferred_element_type=jnp.float32) + bpr_ref[0]
    x = x + m
    x_s[...] = x

    # ---- final bias-free LayerNorm on cls tokens, fused into the last layer step
    @pl.when(l == pl.num_programs(1) - 1)
    def _finalize():
        for b in range(Bb):
            cls_b = x[b * S:b * S + 1, :]
            o_ref[0, b:b + 1, :] = _layernorm(cls_b, lnf_ref[...], 0.0)


# ----------------------------------------------------------------------------
# Wrapper: masking / flattening / weight stacking / pallas_call plumbing
# ----------------------------------------------------------------------------
def slr_forward(keypoints, valid, params, *, n_head, n_batch_blocks=None):
    B, T, K, _ = keypoints.shape
    C = params["cls_token"].shape[-1]
    L = len(params["blocks"])
    max_len = params["wt"].shape[0]
    S = 1 + T + K

    # v7x has 2 TensorCores/chip: a "parallel" batch-block axis keeps both busy.
    # Only split when each block still folds >= 2 batch rows (review item 1).
    if n_batch_blocks is None:
        n_batch_blocks = 2 if (B >= 4 and B % 2 == 0) else 1
    assert B % n_batch_blocks == 0
    Bb = B // n_batch_blocks

    f32, bf16 = jnp.float32, jnp.bfloat16

    # tokenizer inputs: pre-flattened (free, host/XLA side) so the kernel does
    # batch-folded 2-D matmuls with no in-kernel reshapes.
    masked = (keypoints * valid[..., None]).astype(f32)               # (B, T, K, 3)
    ksp = masked.reshape(B * T, K * 3)                                # (B*T, K*3)
    ktp = jnp.transpose(masked, (0, 2, 1, 3)).reshape(B * K, T * 3)   # (B*K, T*3)
    valid2 = valid.reshape(B * T, K).astype(f32)
    validT2 = jnp.transpose(valid, (0, 2, 1)).reshape(B * K, T).astype(f32)

    ws = params["ws"].reshape(K * 3, C).astype(f32)
    bs = params["bs"].astype(f32)
    wt = params["wt"][:T].reshape(T * 3, C).astype(f32)
    bt = params["bt"][:T].astype(f32)
    base = jnp.concatenate([params["cls_token"],
                            params["pos_embd"][:T + K]], axis=0).astype(f32)  # (S, C)

    blocks = params["blocks"]
    lnp = jnp.stack([jnp.concatenate([p[0], p[1], p[6], p[7]], axis=0)
                     for p in blocks]).astype(f32)                    # (L, 4, C)
    wqkv = jnp.stack([p[2] for p in blocks]).astype(bf16)             # (L, C, 3C)
    bqkv = jnp.stack([p[3] for p in blocks]).astype(f32)              # (L, 1, 3C)
    wpo = jnp.stack([p[4] for p in blocks]).astype(bf16)              # (L, C, C)
    bpo = jnp.stack([p[5] for p in blocks]).astype(f32)               # (L, 1, C)
    wfc = jnp.stack([p[8] for p in blocks]).astype(bf16)              # (L, C, 4C)
    bfc = jnp.stack([p[9] for p in blocks]).astype(f32)               # (L, 1, 4C)
    wpr = jnp.stack([p[10] for p in blocks]).astype(bf16)             # (L, 4C, C)
    bpr = jnp.stack([p[11] for p in blocks]).astype(f32)              # (L, 1, C)
    lnf = params["ln_f_w"].astype(f32)                                # (1, C)

    def full2(a):
        return pl.BlockSpec(a.shape, lambda p, l: (0, 0))

    in_specs = [
        # per-batch-block tokenizer data (constant over the layer axis)
        pl.BlockSpec((Bb * T, K * 3), lambda p, l: (p, 0)),
        pl.BlockSpec((Bb * T, K), lambda p, l: (p, 0)),
        pl.BlockSpec((Bb * K, T * 3), lambda p, l: (p, 0)),
        pl.BlockSpec((Bb * K, T), lambda p, l: (p, 0)),
        # tokenizer weights / cls+pos rows (constant)
        full2(ws), full2(bs), full2(wt), full2(bt), full2(base),
        # per-layer weights (leading layer dim, pipelined DMA across layers)
        pl.BlockSpec((1, 4, C), lambda p, l: (l, 0, 0)),
        pl.BlockSpec((1, C, 3 * C), lambda p, l: (l, 0, 0)),
        pl.BlockSpec((1, 1, 3 * C), lambda p, l: (l, 0, 0)),
        pl.BlockSpec((1, C, C), lambda p, l: (l, 0, 0)),
        pl.BlockSpec((1, 1, C), lambda p, l: (l, 0, 0)),
        pl.BlockSpec((1, C, 4 * C), lambda p, l: (l, 0, 0)),
        pl.BlockSpec((1, 1, 4 * C), lambda p, l: (l, 0, 0)),
        pl.BlockSpec((1, 4 * C, C), lambda p, l: (l, 0, 0)),
        pl.BlockSpec((1, 1, C), lambda p, l: (l, 0, 0)),
        # final LayerNorm weight
        full2(lnf),
    ]

    out = pl.pallas_call(
        functools.partial(slr_fused_kernel, Bb=Bb, T=T, K=K, C=C, H=n_head,
                          max_len=max_len),
        out_shape=jax.ShapeDtypeStruct((n_batch_blocks, Bb, C), f32),
        grid_spec=pltpu.PrefetchScalarGridSpec(
            num_scalar_prefetch=0,
            grid=(n_batch_blocks, L),
            in_specs=in_specs,
            out_specs=pl.BlockSpec((1, Bb, C), lambda p, l: (p, 0, 0)),
            scratch_shapes=[pltpu.VMEM((Bb * S, C), f32),   # resident activations
                            pltpu.VMEM((Bb * S, C), f32)],  # attn head assembly
        ),
        compiler_params=pltpu.CompilerParams(
            dimension_semantics=("parallel", "arbitrary")),
    )(ksp, valid2, ktp, validT2, ws, bs, wt, bt, base,
      lnp, wqkv, bqkv, wpo, bpo, wfc, bfc, wpr, bpr, lnf)

    return out.reshape(B, C)


# ----------------------------------------------------------------------------
# Deterministic parameter init (mirrors module shapes, not torch RNG)
# ----------------------------------------------------------------------------
def init_params(key, *, n_embd, n_head, n_layer, n_keypoints, max_len):
    C = n_embd
    proj_std = 0.02 / math.sqrt(2 * n_layer)
    keys = iter(jax.random.split(key, 8 + 8 * n_layer))

    def nrm(shape, std):
        return std * jax.random.normal(next(keys), shape, jnp.float32)

    params = {
        "cls_token": jax.random.uniform(next(keys), (1, C), jnp.float32),  # torch.rand
        "ws": nrm((n_keypoints, 3, C), 0.01),      # spatial Linear(3, C) weights (W^T)
        "bs": jnp.zeros((n_keypoints, C), jnp.float32),
        "wt": nrm((max_len, 3, C), 0.01),          # temporal Linear(3, C) weights (W^T)
        "bt": jnp.zeros((max_len, C), jnp.float32),
        "pos_embd": nrm((max_len + n_keypoints, C), 0.01),
        "ln_f_w": jnp.ones((1, C), jnp.float32),   # final LayerNorm, bias=False
        "blocks": [],
    }

    for _ in range(n_layer):
        layer = (
            jnp.ones((1, C), jnp.float32),         # ln1 weight
            jnp.zeros((1, C), jnp.float32),        # ln1 bias
            nrm((C, 3 * C), 0.01),                 # c_attn weight (in, out)
            jnp.zeros((1, 3 * C), jnp.float32),    # c_attn bias
            nrm((C, C), proj_std),                 # attn c_proj weight
            jnp.zeros((1, C), jnp.float32),        # attn c_proj bias
            jnp.ones((1, C), jnp.float32),         # ln2 weight
            jnp.zeros((1, C), jnp.float32),        # ln2 bias
            nrm((C, 4 * C), 0.01),                 # mlp c_fc weight
            jnp.zeros((1, 4 * C), jnp.float32),    # mlp c_fc bias
            nrm((4 * C, C), proj_std),             # mlp c_proj weight
            jnp.zeros((1, C), jnp.float32),        # mlp c_proj bias
        )
        params["blocks"].append(layer)
    return params


# ----------------------------------------------------------------------------
# Demo
# ----------------------------------------------------------------------------
if __name__ == "__main__":
    # small shapes consistent with SLR's forward; n_embd=128 keeps lanes dense.
    B, T = 2, 8
    n_embd, n_head, n_layer = 128, 4, 2
    n_keypoints, max_len = 8, 16

    root = jax.random.PRNGKey(0)
    kp_key, v_key, p_key = jax.random.split(root, 3)

    keypoints = jax.random.normal(kp_key, (B, T, n_keypoints, 3), jnp.float32)
    valid = (jax.random.uniform(v_key, (B, T, n_keypoints)) > 0.3).astype(jnp.float32)

    params = init_params(p_key, n_embd=n_embd, n_head=n_head, n_layer=n_layer,
                         n_keypoints=n_keypoints, max_len=max_len)

    fwd = jax.jit(functools.partial(slr_forward, n_head=n_head))
    out = fwd(keypoints, valid, params)
    out = jax.block_until_ready(out)

    assert out.shape == (B, n_embd), out.shape
    assert bool(jnp.all(jnp.isfinite(out)))
    print("KERNEL_OK")
</pallas_src>

<mosaic_0001>
module attributes {stable_mosaic.version = 11 : i64} {
  func.func @slr_fused_kernel(%arg0: i32, %arg1: i32, %arg2: memref<16x24xf32, #tpu.memory_space<vmem>>, %arg3: memref<16x8xf32, #tpu.memory_space<vmem>>, %arg4: memref<16x24xf32, #tpu.memory_space<vmem>>, %arg5: memref<16x8xf32, #tpu.memory_space<vmem>>, %arg6: memref<24x128xf32, #tpu.memory_space<vmem>>, %arg7: memref<8x128xf32, #tpu.memory_space<vmem>>, %arg8: memref<24x128xf32, #tpu.memory_space<vmem>>, %arg9: memref<8x128xf32, #tpu.memory_space<vmem>>, %arg10: memref<17x128xf32, #tpu.memory_space<vmem>>, %arg11: memref<1x4x128xf32, #tpu.memory_space<vmem>>, %arg12: memref<1x128x384xbf16, #tpu.memory_space<vmem>>, %arg13: memref<1x1x384xf32, #tpu.memory_space<vmem>>, %arg14: memref<1x128x128xbf16, #tpu.memory_space<vmem>>, %arg15: memref<1x1x128xf32, #tpu.memory_space<vmem>>, %arg16: memref<1x128x512xbf16, #tpu.memory_space<vmem>>, %arg17: memref<1x1x512xf32, #tpu.memory_space<vmem>>, %arg18: memref<1x512x128xbf16, #tpu.memory_space<vmem>>, %arg19: memref<1x1x128xf32, #tpu.memory_space<vmem>>, %arg20: memref<1x128xf32, #tpu.memory_space<vmem>>, %arg21: memref<1x2x128xf32, #tpu.memory_space<vmem>>, %arg22: memref<34x128xf32, #tpu.memory_space<vmem>>, %arg23: memref<34x128xf32, #tpu.memory_space<vmem>>) attributes {dimension_semantics = [#tpu.dimension_semantics<parallel>, #tpu.dimension_semantics<arbitrary>], iteration_bounds = array<i64: 1, 2>, scalar_prefetch = 0 : i64, scratch_operands = 2 : i64, tpu.core_type = #tpu.core_type<tc>, window_params = [{transform_indices = @transform_0, window_bounds = array<i64: 16, 24>}, {transform_indices = @transform_1, window_bounds = array<i64: 16, 8>}, {transform_indices = @transform_2, window_bounds = array<i64: 16, 24>}, {transform_indices = @transform_3, window_bounds = array<i64: 16, 8>}, {pipeline_mode = #tpu.pipeline_mode<synchronous>, transform_indices = @transform_4, window_bounds = array<i64: 24, 128>}, {pipeline_mode = #tpu.pipeline_mode<synchronous>, transform_indices = @transform_5, window_bounds = array<i64: 8, 128>}, {pipeline_mode = #tpu.pipeline_mode<synchronous>, transform_indices = @transform_6, window_bounds = array<i64: 24, 128>}, {pipeline_mode = #tpu.pipeline_mode<synchronous>, transform_indices = @transform_7, window_bounds = array<i64: 8, 128>}, {pipeline_mode = #tpu.pipeline_mode<synchronous>, transform_indices = @transform_8, window_bounds = array<i64: 17, 128>}, {transform_indices = @transform_9, window_bounds = array<i64: 1, 4, 128>}, {transform_indices = @transform_10, window_bounds = array<i64: 1, 128, 384>}, {transform_indices = @transform_11, window_bounds = array<i64: 1, 1, 384>}, {transform_indices = @transform_12, window_bounds = array<i64: 1, 128, 128>}, {transform_indices = @transform_13, window_bounds = array<i64: 1, 1, 128>}, {transform_indices = @transform_14, window_bounds = array<i64: 1, 128, 512>}, {transform_indices = @transform_15, window_bounds = array<i64: 1, 1, 512>}, {transform_indices = @transform_16, window_bounds = array<i64: 1, 512, 128>}, {transform_indices = @transform_17, window_bounds = array<i64: 1, 1, 128>}, {pipeline_mode = #tpu.pipeline_mode<synchronous>, transform_indices = @transform_18, window_bounds = array<i64: 1, 128>}, {transform_indices = @transform_19, window_bounds = array<i64: 1, 2, 128>}]} {
    %c0_i32 = arith.constant 0 : i32
    %0 = arith.cmpi eq, %arg1, %c0_i32 : i32
    %1 = arith.extui %0 : i1 to i32
    %c0_i32_0 = arith.constant 0 : i32
    %2 = arith.cmpi ne, %1, %c0_i32_0 : i32
    scf.if %2 {
      %c0_103 = arith.constant 0 : index
      %c0_104 = arith.constant 0 : index
      %250 = vector.load %arg2[%c0_103, %c0_104] : memref<16x24xf32, #tpu.memory_space<vmem>>, vector<16x24xf32>
      %c0_105 = arith.constant 0 : index
      %c0_106 = arith.constant 0 : index
      %251 = vector.load %arg6[%c0_105, %c0_106] : memref<24x128xf32, #tpu.memory_space<vmem>>, vector<24x128xf32>
      %cst_107 = arith.constant dense<0.000000e+00> : vector<16x128xf32>
      %252 = tpu.matmul %250, %251, %cst_107 {dimension_numbers = #tpu.dot_dimension_numbers<[1], [0], [0], [1], [0, 0, 1, 1], [], []>} : vector<16x24xf32>, vector<24x128xf32>, vector<16x128xf32> -> vector<16x128xf32>
      %c0_108 = arith.constant 0 : index
      %c0_109 = arith.constant 0 : index
      %253 = vector.load %arg3[%c0_108, %c0_109] : memref<16x8xf32, #tpu.memory_space<vmem>>, vector<16x8xf32>
      %c0_110 = arith.constant 0 : index
      %c0_111 = arith.constant 0 : index
      %254 = vector.load %arg7[%c0_110, %c0_111] : memref<8x128xf32, #tpu.memory_space<vmem>>, vector<8x128xf32>
      %cst_112 = arith.constant dense<0.000000e+00> : vector<16x128xf32>
      %255 = tpu.matmul %253, %254, %cst_112 {dimension_numbers = #tpu.dot_dimension_numbers<[1], [0], [0], [1], [0, 0, 1, 1], [], []>} : vector<16x8xf32>, vector<8x128xf32>, vector<16x128xf32> -> vector<16x128xf32>
      %256 = arith.addf %252, %255 : vector<16x128xf32>
      %c0_113 = arith.constant 0 : index
      %c0_114 = arith.constant 0 : index
      %257 = vector.load %arg3[%c0_113, %c0_114] : memref<16x8xf32, #tpu.memory_space<vmem>>, vector<16x8xf32>
      %cst_115 = arith.constant dense<0.000000e+00> : vector<16xf32>
      %258 = vector.multi_reduction <add>, %257, %cst_115 [1] : vector<16x8xf32> to vector<16xf32>
      %259 = vector.shape_cast %258 : vector<16xf32> to vector<16x1xf32>
      %cst_116 = arith.constant 1.000000e+00 : f32
      %260 = vector.broadcast %cst_116 : f32 to vector<16x1xf32>
      %261 = arith.addf %259, %260 : vector<16x1xf32>
      %cst_117 = arith.constant 9.000000e+00 : f32
      %262 = vector.broadcast %cst_117 : f32 to vector<16x1xf32>
      %263 = arith.divf %262, %261 : vector<16x1xf32>
      %264 = vector.broadcast %263 : vector<16x1xf32> to vector<16x128xf32>
      %265 = arith.mulf %256, %264 : vector<16x128xf32>
      %cst_118 = arith.constant 0.000000e+00 : f32
      %266 = vector.broadcast %cst_118 : f32 to vector<16x128xf32>
      %267 = arith.maximumf %265, %266 : vector<16x128xf32>
      %c0_119 = arith.constant 0 : index
      %c0_120 = arith.constant 0 : index
      %268 = vector.load %arg4[%c0_119, %c0_120] : memref<16x24xf32, #tpu.memory_space<vmem>>, vector<16x24xf32>
      %c0_121 = arith.constant 0 : index
      %c0_122 = arith.constant 0 : index
      %269 = vector.load %arg8[%c0_121, %c0_122] : memref<24x128xf32, #tpu.memory_space<vmem>>, vector<24x128xf32>
      %cst_123 = arith.constant dense<0.000000e+00> : vector<16x128xf32>
      %270 = tpu.matmul %268, %269, %cst_123 {dimension_numbers = #tpu.dot_dimension_numbers<[1], [0], [0], [1], [0, 0, 1, 1], [], []>} : vector<16x24xf32>, vector<24x128xf32>, vector<16x128xf32> -> vector<16x128xf32>
      %c0_124 = arith.constant 0 : index
      %c0_125 = arith.constant 0 : index
      %271 = vector.load %arg5[%c0_124, %c0_125] : memref<16x8xf32, #tpu.memory_space<vmem>>, vector<16x8xf32>
      %c0_126 = arith.constant 0 : index
      %c0_127 = arith.constant 0 : index
      %272 = vector.load %arg9[%c0_126, %c0_127] : memref<8x128xf32, #tpu.memory_space<vmem>>, vector<8x128xf32>
      %cst_128 = arith.constant dense<0.000000e+00> : vector<16x128xf32>
      %273 = tpu.matmul %271, %272, %cst_128 {dimension_numbers = #tpu.dot_dimension_numbers<[1], [0], [0], [1], [0, 0, 1, 1], [], []>} : vector<16x8xf32>, vector<8x128xf32>, vector<16x128xf32> -> vector<16x128xf32>
      %274 = arith.addf %270, %273 : vector<16x128xf32>
      %c0_129 = arith.constant 0 : index
      %c0_130 = arith.constant 0 : index
      %275 = vector.load %arg5[%c0_129, %c0_130] : memref<16x8xf32, #tpu.memory_space<vmem>>, vector<16x8xf32>
      %cst_131 = arith.constant dense<0.000000e+00> : vector<16xf32>
      %276 = vector.multi_reduction <add>, %275, %cst_131 [1] : vector<16x8xf32> to vector<16xf32>
      %277 = vector.shape_cast %276 : vector<16xf32> to vector<16x1xf32>
      %cst_132 = arith.constant 1.000000e+00 : f32
      %278 = vector.broadcast %cst_132 : f32 to vector<16x1xf32>
      %279 = arith.addf %277, %278 : vector<16x1xf32>
      %cst_133 = arith.constant 1.700000e+01 : f32
      %280 = vector.broadcast %cst_133 : f32 to vector<16x1xf32>
      %281 = arith.divf %280, %279 : vector<16x1xf32>
      %282 = vector.broadcast %281 : vector<16x1xf32> to vector<16x128xf32>
      %283 = arith.mulf %274, %282 : vector<16x128xf32>
      %cst_134 = arith.constant 0.000000e+00 : f32
      %284 = vector.broadcast %cst_134 : f32 to vector<16x128xf32>
      %285 = arith.maximumf %283, %284 : vector<16x128xf32>
      %c0_135 = arith.constant 0 : index
      %c0_136 = arith.constant 0 : index
      %286 = vector.load %arg10[%c0_135, %c0_136] : memref<17x128xf32, #tpu.memory_space<vmem>>, vector<17x128xf32>
      %287 = vector.extract_strided_slice %286 {offsets = [0, 0], sizes = [1, 128], strides = [1, 1]} : vector<17x128xf32> to vector<1x128xf32>
      %c0_137 = arith.constant 0 : index
      %c0_138 = arith.constant 0 : index
      %288 = vector.load %arg22[%c0_137, %c0_138] : memref<34x128xf32, #tpu.memory_space<vmem>>, vector<1x128xf32>
      tpu.vector_store %arg22[%c0_137, %c0_138], %287 {strides = array<i32>} : memref<34x128xf32, #tpu.memory_space<vmem>>, vector<1x128xf32>,
      %289 = vector.extract_strided_slice %267 {offsets = [0, 0], sizes = [8, 128], strides = [1, 1]} : vector<16x128xf32> to vector<8x128xf32>
      %290 = vector.extract_strided_slice %286 {offsets = [1, 0], sizes = [8, 128], strides = [1, 1]} : vector<17x128xf32> to vector<8x128xf32>
      %291 = arith.addf %289, %290 : vector<8x128xf32>
      %c1 = arith.constant 1 : index
      %c0_139 = arith.constant 0 : index
      %292 = vector.load %arg22[%c1, %c0_139] : memref<34x128xf32, #tpu.memory_space<vmem>>, vector<8x128xf32>
      tpu.vector_store %arg22[%c1, %c0_139], %291 {strides = array<i32>} : memref<34x128xf32, #tpu.memory_space<vmem>>, vector<8x128xf32>,
      %293 = vector.extract_strided_slice %285 {offsets = [0, 0], sizes = [8, 128], strides = [1, 1]} : vector<16x128xf32> to vector<8x128xf32>
      %294 = vector.extract_strided_slice %286 {offsets = [9, 0], sizes = [8, 128], strides = [1, 1]} : vector<17x128xf32> to vector<8x128xf32>
      %295 = arith.addf %293, %294 : vector<8x128xf32>
      %c9 = arith.constant 9 : index
      %c0_140 = arith.constant 0 : index
      %296 = vector.load %arg22[%c9, %c0_140] : memref<34x128xf32, #tpu.memory_space<vmem>>, vector<8x128xf32>
      tpu.vector_store %arg22[%c9, %c0_140], %295 {strides = array<i32>} : memref<34x128xf32, #tpu.memory_space<vmem>>, vector<8x128xf32>,
      %297 = vector.extract_strided_slice %286 {offsets = [0, 0], sizes = [1, 128], strides = [1, 1]} : vector<17x128xf32> to vector<1x128xf32>
      %c17_141 = arith.constant 17 : index
      %c0_142 = arith.constant 0 : index
      %298 = vector.load %arg22[%c17_141, %c0_142] : memref<34x128xf32, #tpu.memory_space<vmem>>, vector<1x128xf32>
      tpu.vector_store %arg22[%c17_141, %c0_142], %297 {strides = array<i32>} : memref<34x128xf32, #tpu.memory_space<vmem>>, vector<1x128xf32>,
      %299 = vector.extract_strided_slice %267 {offsets = [8, 0], sizes = [8, 128], strides = [1, 1]} : vector<16x128xf32> to vector<8x128xf32>
      %300 = vector.extract_strided_slice %286 {offsets = [1, 0], sizes = [8, 128], strides = [1, 1]} : vector<17x128xf32> to vector<8x128xf32>
      %301 = arith.addf %299, %300 : vector<8x128xf32>
      %c18 = arith.constant 18 : index
      %c0_143 = arith.constant 0 : index
      %302 = vector.load %arg22[%c18, %c0_143] : memref<34x128xf32, #tpu.memory_space<vmem>>, vector<8x128xf32>
      tpu.vector_store %arg22[%c18, %c0_143], %301 {strides = array<i32>} : memref<34x128xf32, #tpu.memory_space<vmem>>, vector<8x128xf32>,
      %303 = vector.extract_strided_slice %285 {offsets = [8, 0], sizes = [8, 128], strides = [1, 1]} : vector<16x128xf32> to vector<8x128xf32>
      %304 = vector.extract_strided_slice %286 {offsets = [9, 0], sizes = [8, 128], strides = [1, 1]} : vector<17x128xf32> to vector<8x128xf32>
      %305 = arith.addf %303, %304 : vector<8x128xf32>
      %c26 = arith.constant 26 : index
      %c0_144 = arith.constant 0 : index
      %306 = vector.load %arg22[%c26, %c0_144] : memref<34x128xf32, #tpu.memory_space<vmem>>, vector<8x128xf32>
      tpu.vector_store %arg22[%c26, %c0_144], %305 {strides = array<i32>} : memref<34x128xf32, #tpu.memory_space<vmem>>, vector<8x128xf32>,
    } else {
    }
    %c0 = arith.constant 0 : index
    %c0_1 = arith.constant 0 : index
    %3 = vector.load %arg22[%c0, %c0_1] : memref<34x128xf32, #tpu.memory_space<vmem>>, vector<34x128xf32>
    %c0_2 = arith.constant 0 : index
    %c0_3 = arith.constant 0 : index
    %c0_4 = arith.constant 0 : index
    %4 = vector.load %arg11[%c0_2, %c0_3, %c0_4] : memref<1x4x128xf32, #tpu.memory_space<vmem>>, vector<1x4x128xf32>
    %5 = vector.shape_cast %4 : vector<1x4x128xf32> to vector<4x128xf32>
    %6 = vector.extract_strided_slice %5 {offsets = [0, 0], sizes = [1, 128], strides = [1, 1]} : vector<4x128xf32> to vector<1x128xf32>
    %7 = vector.extract_strided_slice %5 {offsets = [1, 0], sizes = [1, 128], strides = [1, 1]} : vector<4x128xf32> to vector<1x128xf32>
    %cst = arith.constant dense<0.000000e+00> : vector<34xf32>
    %8 = vector.multi_reduction <add>, %3, %cst [1] : vector<34x128xf32> to vector<34xf32>
    %9 = vector.shape_cast %8 : vector<34xf32> to vector<34x1xf32>
    %cst_5 = arith.constant 1.280000e+02 : f32
    %10 = vector.broadcast %cst_5 : f32 to vector<34x1xf32>
    %11 = arith.divf %9, %10 : vector<34x1xf32>
    %12 = vector.broadcast %11 : vector<34x1xf32> to vector<34x128xf32>
    %13 = arith.subf %3, %12 : vector<34x128xf32>
    %14 = arith.mulf %13, %13 : vector<34x128xf32>
    %cst_6 = arith.constant dense<0.000000e+00> : vector<34xf32>
    %15 = vector.multi_reduction <add>, %14, %cst_6 [1] : vector<34x128xf32> to vector<34xf32>
    %16 = vector.shape_cast %15 : vector<34xf32> to vector<34x1xf32>
    %cst_7 = arith.constant 1.280000e+02 : f32
    %17 = vector.broadcast %cst_7 : f32 to vector<34x1xf32>
    %18 = arith.divf %16, %17 : vector<34x1xf32>
    %19 = vector.broadcast %11 : vector<34x1xf32> to vector<34x128xf32>
    %20 = arith.subf %3, %19 : vector<34x128xf32>
    %cst_8 = arith.constant 9.99999974E-6 : f32
    %21 = vector.broadcast %cst_8 : f32 to vector<34x1xf32>
    %22 = arith.addf %18, %21 : vector<34x1xf32>
    %23 = math.rsqrt %22 : vector<34x1xf32>
    %24 = vector.broadcast %23 : vector<34x1xf32> to vector<34x128xf32>
    %25 = arith.mulf %20, %24 : vector<34x128xf32>
    %26 = vector.broadcast %6 : vector<1x128xf32> to vector<34x128xf32>
    %27 = arith.mulf %25, %26 : vector<34x128xf32>
    %28 = vector.broadcast %7 : vector<1x128xf32> to vector<34x128xf32>
    %29 = arith.addf %27, %28 : vector<34x128xf32>
    %30 = arith.truncf %29 : vector<34x128xf32> to vector<34x128xbf16>
    %c0_9 = arith.constant 0 : index
    %c0_10 = arith.constant 0 : index
    %c0_11 = arith.constant 0 : index
    %31 = vector.load %arg12[%c0_9, %c0_10, %c0_11] : memref<1x128x384xbf16, #tpu.memory_space<vmem>>, vector<1x128x384xbf16>
    %32 = vector.shape_cast %31 : vector<1x128x384xbf16> to vector<128x384xbf16>
    %cst_12 = arith.constant dense<0.000000e+00> : vector<34x384xf32>
    %33 = tpu.matmul %30, %32, %cst_12 {dimension_numbers = #tpu.dot_dimension_numbers<[1], [0], [0], [1], [0, 0, 1, 1], [], []>} : vector<34x128xbf16>, vector<128x384xbf16>, vector<34x384xf32> -> vector<34x384xf32>
    %c0_13 = arith.constant 0 : index
    %c0_14 = arith.constant 0 : index
    %c0_15 = arith.constant 0 : index
    %34 = vector.load %arg13[%c0_13, %c0_14, %c0_15] : memref<1x1x384xf32, #tpu.memory_space<vmem>>, vector<1x1x384xf32>
    %35 = vector.shape_cast %34 : vector<1x1x384xf32> to vector<1x384xf32>
    %36 = vector.broadcast %35 : vector<1x384xf32> to vector<34x384xf32>
    %37 = arith.addf %33, %36 : vector<34x384xf32>
    %38 = vector.extract_strided_slice %37 {offsets = [0, 0], sizes = [17, 32], strides = [1, 1]} : vector<34x384xf32> to vector<17x32xf32>
    %39 = vector.extract_strided_slice %37 {offsets = [0, 128], sizes = [17, 32], strides = [1, 1]} : vector<34x384xf32> to vector<17x32xf32>
    %40 = vector.extract_strided_slice %37 {offsets = [0, 256], sizes = [17, 32], strides = [1, 1]} : vector<34x384xf32> to vector<17x32xf32>
    %cst_16 = arith.constant dense<0.000000e+00> : vector<17x17xf32>
    %41 = tpu.matmul %38, %39, %cst_16 {dimension_numbers = #tpu.dot_dimension_numbers<[1], [1], [0], [0], [0, 0, 1, 0], [], []>} : vector<17x32xf32>, vector<17x32xf32>, vector<17x17xf32> -> vector<17x17xf32>
    %cst_17 = arith.constant 0.176776692 : f32
    %42 = vector.broadcast %cst_17 : f32 to vector<17x17xf32>
    %43 = arith.mulf %41, %42 : vector<17x17xf32>
    %cst_18 = arith.constant dense<0xFF800000> : vector<17xf32>
    %44 = vector.multi_reduction <maximumf>, %43, %cst_18 [1] : vector<17x17xf32> to vector<17xf32>
    %45 = vector.shape_cast %44 : vector<17xf32> to vector<17x1xf32>
    %46 = vector.broadcast %45 : vector<17x1xf32> to vector<17x17xf32>
    %47 = arith.subf %43, %46 : vector<17x17xf32>
    %48 = math.exp %47 : vector<17x17xf32>
    %cst_19 = arith.constant dense<0.000000e+00> : vector<17xf32>
    %49 = vector.multi_reduction <add>, %48, %cst_19 [1] : vector<17x17xf32> to vector<17xf32>
    %50 = vector.shape_cast %49 : vector<17xf32> to vector<17x1xf32>
    %51 = tpu.reciprocal %50 {approx = true} : vector<17x1xf32> -> vector<17x1xf32>
    %52 = vector.broadcast %51 : vector<17x1xf32> to vector<17x17xf32>
    %53 = arith.mulf %48, %52 : vector<17x17xf32>
    %cst_20 = arith.constant dense<0.000000e+00> : vector<17x32xf32>
    %54 = tpu.matmul %53, %40, %cst_20 {dimension_numbers = #tpu.dot_dimension_numbers<[1], [0], [0], [1], [0, 0, 1, 1], [], []>} : vector<17x17xf32>, vector<17x32xf32>, vector<17x32xf32> -> vector<17x32xf32>
    %c0_21 = arith.constant 0 : index
    %c0_22 = arith.constant 0 : index
    %55 = vector.load %arg23[%c0_21, %c0_22] : memref<34x128xf32, #tpu.memory_space<vmem>>, vector<17x32xf32>
    tpu.vector_store %arg23[%c0_21, %c0_22], %54 {strides = array<i32>} : memref<34x128xf32, #tpu.memory_space<vmem>>, vector<17x32xf32>,
    %56 = vector.extract_strided_slice %37 {offsets = [0, 32], sizes = [17, 32], strides = [1, 1]} : vector<34x384xf32> to vector<17x32xf32>
    %57 = vector.extract_strided_slice %37 {offsets = [0, 160], sizes = [17, 32], strides = [1, 1]} : vector<34x384xf32> to vector<17x32xf32>
    %58 = vector.extract_strided_slice %37 {offsets = [0, 288], sizes = [17, 32], strides = [1, 1]} : vector<34x384xf32> to vector<17x32xf32>
    %cst_23 = arith.constant dense<0.000000e+00> : vector<17x17xf32>
    %59 = tpu.matmul %56, %57, %cst_23 {dimension_numbers = #tpu.dot_dimension_numbers<[1], [1], [0], [0], [0, 0, 1, 0], [], []>} : vector<17x32xf32>, vector<17x32xf32>, vector<17x17xf32> -> vector<17x17xf32>
    %cst_24 = arith.constant 0.176776692 : f32
    %60 = vector.broadcast %cst_24 : f32 to vector<17x17xf32>
    %61 = arith.mulf %59, %60 : vector<17x17xf32>
    %cst_25 = arith.constant dense<0xFF800000> : vector<17xf32>
    %62 = vector.multi_reduction <maximumf>, %61, %cst_25 [1] : vector<17x17xf32> to vector<17xf32>
    %63 = vector.shape_cast %62 : vector<17xf32> to vector<17x1xf32>
    %64 = vector.broadcast %63 : vector<17x1xf32> to vector<17x17xf32>
    %65 = arith.subf %61, %64 : vector<17x17xf32>
    %66 = math.exp %65 : vector<17x17xf32>
    %cst_26 = arith.constant dense<0.000000e+00> : vector<17xf32>
    %67 = vector.multi_reduction <add>, %66, %cst_26 [1] : vector<17x17xf32> to vector<17xf32>
    %68 = vector.shape_cast %67 : vector<17xf32> to vector<17x1xf32>
    %69 = tpu.reciprocal %68 {approx = true} : vector<17x1xf32> -> vector<17x1xf32>
    %70 = vector.broadcast %69 : vector<17x1xf32> to vector<17x17xf32>
    %71 = arith.mulf %66, %70 : vector<17x17xf32>
    %cst_27 = arith.constant dense<0.000000e+00> : vector<17x32xf32>
    %72 = tpu.matmul %71, %58, %cst_27 {dimension_numbers = #tpu.dot_dimension_numbers<[1], [0], [0], [1], [0, 0, 1, 1], [], []>} : vector<17x17xf32>, vector<17x32xf32>, vector<17x32xf32> -> vector<17x32xf32>
    %c0_28 = arith.constant 0 : index
    %c32 = arith.constant 32 : index
    %73 = vector.load %arg23[%c0_28, %c32] : memref<34x128xf32, #tpu.memory_space<vmem>>, vector<17x32xf32>
    tpu.vector_store %arg23[%c0_28, %c32], %72 {strides = array<i32>} : memref<34x128xf32, #tpu.memory_space<vmem>>, vector<17x32xf32>,
    %74 = vector.extract_strided_slice %37 {offsets = [0, 64], sizes = [17, 32], strides = [1, 1]} : vector<34x384xf32> to vector<17x32xf32>
    %75 = vector.extract_strided_slice %37 {offsets = [0, 192], sizes = [17, 32], strides = [1, 1]} : vector<34x384xf32> to vector<17x32xf32>
    %76 = vector.extract_strided_slice %37 {offsets = [0, 320], sizes = [17, 32], strides = [1, 1]} : vector<34x384xf32> to vector<17x32xf32>
    %cst_29 = arith.constant dense<0.000000e+00> : vector<17x17xf32>
    %77 = tpu.matmul %74, %75, %cst_29 {dimension_numbers = #tpu.dot_dimension_numbers<[1], [1], [0], [0], [0, 0, 1, 0], [], []>} : vector<17x32xf32>, vector<17x32xf32>, vector<17x17xf32> -> vector<17x17xf32>
    %cst_30 = arith.constant 0.176776692 : f32
    %78 = vector.broadcast %cst_30 : f32 to vector<17x17xf32>
    %79 = arith.mulf %77, %78 : vector<17x17xf32>
    %cst_31 = arith.constant dense<0xFF800000> : vector<17xf32>
    %80 = vector.multi_reduction <maximumf>, %79, %cst_31 [1] : vector<17x17xf32> to vector<17xf32>
    %81 = vector.shape_cast %80 : vector<17xf32> to vector<17x1xf32>
    %82 = vector.broadcast %81 : vector<17x1xf32> to vector<17x17xf32>
    %83 = arith.subf %79, %82 : vector<17x17xf32>
    %84 = math.exp %83 : vector<17x17xf32>
    %cst_32 = arith.constant dense<0.000000e+00> : vector<17xf32>
    %85 = vector.multi_reduction <add>, %84, %cst_32 [1] : vector<17x17xf32> to vector<17xf32>
    %86 = vector.shape_cast %85 : vector<17xf32> to vector<17x1xf32>
    %87 = tpu.reciprocal %86 {approx = true} : vector<17x1xf32> -> vector<17x1xf32>
    %88 = vector.broadcast %87 : vector<17x1xf32> to vector<17x17xf32>
    %89 = arith.mulf %84, %88 : vector<17x17xf32>
    %cst_33 = arith.constant dense<0.000000e+00> : vector<17x32xf32>
    %90 = tpu.matmul %89, %76, %cst_33 {dimension_numbers = #tpu.dot_dimension_numbers<[1], [0], [0], [1], [0, 0, 1, 1], [], []>} : vector<17x17xf32>, vector<17x32xf32>, vector<17x32xf32> -> vector<17x32xf32>
    %c0_34 = arith.constant 0 : index
    %c64 = arith.constant 64 : index
    %91 = vector.load %arg23[%c0_34, %c64] : memref<34x128xf32, #tpu.memory_space<vmem>>, vector<17x32xf32>
    tpu.vector_store %arg23[%c0_34, %c64], %90 {strides = array<i32>} : memref<34x128xf32, #tpu.memory_space<vmem>>, vector<17x32xf32>,
    %92 = vector.extract_strided_slice %37 {offsets = [0, 96], sizes = [17, 32], strides = [1, 1]} : vector<34x384xf32> to vector<17x32xf32>
    %93 = vector.extract_strided_slice %37 {offsets = [0, 224], sizes = [17, 32], strides = [1, 1]} : vector<34x384xf32> to vector<17x32xf32>
    %94 = vector.extract_strided_slice %37 {offsets = [0, 352], sizes = [17, 32], strides = [1, 1]} : vector<34x384xf32> to vector<17x32xf32>
    %cst_35 = arith.constant dense<0.000000e+00> : vector<17x17xf32>
    %95 = tpu.matmul %92, %93, %cst_35 {dimension_numbers = #tpu.dot_dimension_numbers<[1], [1], [0], [0], [0, 0, 1, 0], [], []>} : vector<17x32xf32>, vector<17x32xf32>, vector<17x17xf32> -> vector<17x17xf32>
    %cst_36 = arith.constant 0.176776692 : f32
    %96 = vector.broadcast %cst_36 : f32 to vector<17x17xf32>
    %97 = arith.mulf %95, %96 : vector<17x17xf32>
    %cst_37 = arith.constant dense<0xFF800000> : vector<17xf32>
    %98 = vector.multi_reduction <maximumf>, %97, %cst_37 [1] : vector<17x17xf32> to vector<17xf32>
    %99 = vector.shape_cast %98 : vector<17xf32> to vector<17x1xf32>
    %100 = vector.broadcast %99 : vector<17x1xf32> to vector<17x17xf32>
    %101 = arith.subf %97, %100 : vector<17x17xf32>
    %102 = math.exp %101 : vector<17x17xf32>
    %cst_38 = arith.constant dense<0.000000e+00> : vector<17xf32>
    %103 = vector.multi_reduction <add>, %102, %cst_38 [1] : vector<17x17xf32> to vector<17xf32>
    %104 = vector.shape_cast %103 : vector<17xf32> to vector<17x1xf32>
    %105 = tpu.reciprocal %104 {approx = true} : vector<17x1xf32> -> vector<17x1xf32>
    %106 = vector.broadcast %105 : vector<17x1xf32> to vector<17x17xf32>
    %107 = arith.mulf %102, %106 : vector<17x17xf32>
    %cst_39 = arith.constant dense<0.000000e+00> : vector<17x32xf32>
    %108 = tpu.matmul %107, %94, %cst_39 {dimension_numbers = #tpu.dot_dimension_numbers<[1], [0], [0], [1], [0, 0, 1, 1], [], []>} : vector<17x17xf32>, vector<17x32xf32>, vector<17x32xf32> -> vector<17x32xf32>
    %c0_40 = arith.constant 0 : index
    %c96 = arith.constant 96 : index
    %109 = vector.load %arg23[%c0_40, %c96] : memref<34x128xf32, #tpu.memory_space<vmem>>, vector<17x32xf32>
    tpu.vector_store %arg23[%c0_40, %c96], %108 {strides = array<i32>} : memref<34x128xf32, #tpu.memory_space<vmem>>, vector<17x32xf32>,
    %110 = vector.extract_strided_slice %37 {offsets = [17, 0], sizes = [17, 32], strides = [1, 1]} : vector<34x384xf32> to vector<17x32xf32>
    %111 = vector.extract_strided_slice %37 {offsets = [17, 128], sizes = [17, 32], strides = [1, 1]} : vector<34x384xf32> to vector<17x32xf32>
    %112 = vector.extract_strided_slice %37 {offsets = [17, 256], sizes = [17, 32], strides = [1, 1]} : vector<34x384xf32> to vector<17x32xf32>
    %cst_41 = arith.constant dense<0.000000e+00> : vector<17x17xf32>
    %113 = tpu.matmul %110, %111, %cst_41 {dimension_numbers = #tpu.dot_dimension_numbers<[1], [1], [0], [0], [0, 0, 1, 0], [], []>} : vector<17x32xf32>, vector<17x32xf32>, vector<17x17xf32> -> vector<17x17xf32>
    %cst_42 = arith.constant 0.176776692 : f32
    %114 = vector.broadcast %cst_42 : f32 to vector<17x17xf32>
    %115 = arith.mulf %113, %114 : vector<17x17xf32>
    %cst_43 = arith.constant dense<0xFF800000> : vector<17xf32>
    %116 = vector.multi_reduction <maximumf>, %115, %cst_43 [1] : vector<17x17xf32> to vector<17xf32>
    %117 = vector.shape_cast %116 : vector<17xf32> to vector<17x1xf32>
    %118 = vector.broadcast %117 : vector<17x1xf32> to vector<17x17xf32>
    %119 = arith.subf %115, %118 : vector<17x17xf32>
    %120 = math.exp %119 : vector<17x17xf32>
    %cst_44 = arith.constant dense<0.000000e+00> : vector<17xf32>
    %121 = vector.multi_reduction <add>, %120, %cst_44 [1] : vector<17x17xf32> to vector<17xf32>
    %122 = vector.shape_cast %121 : vector<17xf32> to vector<17x1xf32>
    %123 = tpu.reciprocal %122 {approx = true} : vector<17x1xf32> -> vector<17x1xf32>
    %124 = vector.broadcast %123 : vector<17x1xf32> to vector<17x17xf32>
    %125 = arith.mulf %120, %124 : vector<17x17xf32>
    %cst_45 = arith.constant dense<0.000000e+00> : vector<17x32xf32>
    %126 = tpu.matmul %125, %112, %cst_45 {dimension_numbers = #tpu.dot_dimension_numbers<[1], [0], [0], [1], [0, 0, 1, 1], [], []>} : vector<17x17xf32>, vector<17x32xf32>, vector<17x32xf32> -> vector<17x32xf32>
    %c17 = arith.constant 17 : index
    %c0_46 = arith.constant 0 : index
    %127 = vector.load %arg23[%c17, %c0_46] : memref<34x128xf32, #tpu.memory_space<vmem>>, vector<17x32xf32>
    tpu.vector_store %arg23[%c17, %c0_46], %126 {strides = array<i32>} : memref<34x128xf32, #tpu.memory_space<vmem>>, vector<17x32xf32>,
    %128 = vector.extract_strided_slice %37 {offsets = [17, 32], sizes = [17, 32], strides = [1, 1]} : vector<34x384xf32> to vector<17x32xf32>
    %129 = vector.extract_strided_slice %37 {offsets = [17, 160], sizes = [17, 32], strides = [1, 1]} : vector<34x384xf32> to vector<17x32xf32>
    %130 = vector.extract_strided_slice %37 {offsets = [17, 288], sizes = [17, 32], strides = [1, 1]} : vector<34x384xf32> to vector<17x32xf32>
    %cst_47 = arith.constant dense<0.000000e+00> : vector<17x17xf32>
    %131 = tpu.matmul %128, %129, %cst_47 {dimension_numbers = #tpu.dot_dimension_numbers<[1], [1], [0], [0], [0, 0, 1, 0], [], []>} : vector<17x32xf32>, vector<17x32xf32>, vector<17x17xf32> -> vector<17x17xf32>
    %cst_48 = arith.constant 0.176776692 : f32
    %132 = vector.broadcast %cst_48 : f32 to vector<17x17xf32>
    %133 = arith.mulf %131, %132 : vector<17x17xf32>
    %cst_49 = arith.constant dense<0xFF800000> : vector<17xf32>
    %134 = vector.multi_reduction <maximumf>, %133, %cst_49 [1] : vector<17x17xf32> to vector<17xf32>
    %135 = vector.shape_cast %134 : vector<17xf32> to vector<17x1xf32>
    %136 = vector.broadcast %135 : vector<17x1xf32> to vector<17x17xf32>
    %137 = arith.subf %133, %136 : vector<17x17xf32>
    %138 = math.exp %137 : vector<17x17xf32>
    %cst_50 = arith.constant dense<0.000000e+00> : vector<17xf32>
    %139 = vector.multi_reduction <add>, %138, %cst_50 [1] : vector<17x17xf32> to vector<17xf32>
    %140 = vector.shape_cast %139 : vector<17xf32> to vector<17x1xf32>
    %141 = tpu.reciprocal %140 {approx = true} : vector<17x1xf32> -> vector<17x1xf32>
    %142 = vector.broadcast %141 : vector<17x1xf32> to vector<17x17xf32>
    %143 = arith.mulf %138, %142 : vector<17x17xf32>
    %cst_51 = arith.constant dense<0.000000e+00> : vector<17x32xf32>
    %144 = tpu.matmul %143, %130, %cst_51 {dimension_numbers = #tpu.dot_dimension_numbers<[1], [0], [0], [1], [0, 0, 1, 1], [], []>} : vector<17x17xf32>, vector<17x32xf32>, vector<17x32xf32> -> vector<17x32xf32>
    %c17_52 = arith.constant 17 : index
    %c32_53 = arith.constant 32 : index
    %145 = vector.load %arg23[%c17_52, %c32_53] : memref<34x128xf32, #tpu.memory_space<vmem>>, vector<17x32xf32>
    tpu.vector_store %arg23[%c17_52, %c32_53], %144 {strides = array<i32>} : memref<34x128xf32, #tpu.memory_space<vmem>>, vector<17x32xf32>,
    %146 = vector.extract_strided_slice %37 {offsets = [17, 64], sizes = [17, 32], strides = [1, 1]} : vector<34x384xf32> to vector<17x32xf32>
    %147 = vector.extract_strided_slice %37 {offsets = [17, 192], sizes = [17, 32], strides = [1, 1]} : vector<34x384xf32> to vector<17x32xf32>
    %148 = vector.extract_strided_slice %37 {offsets = [17, 320], sizes = [17, 32], strides = [1, 1]} : vector<34x384xf32> to vector<17x32xf32>
    %cst_54 = arith.constant dense<0.000000e+00> : vector<17x17xf32>
    %149 = tpu.matmul %146, %147, %cst_54 {dimension_numbers = #tpu.dot_dimension_numbers<[1], [1], [0], [0], [0, 0, 1, 0], [], []>} : vector<17x32xf32>, vector<17x32xf32>, vector<17x17xf32> -> vector<17x17xf32>
    %cst_55 = arith.constant 0.176776692 : f32
    %150 = vector.broadcast %cst_55 : f32 to vector<17x17xf32>
    %151 = arith.mulf %149, %150 : vector<17x17xf32>
    %cst_56 = arith.constant dense<0xFF800000> : vector<17xf32>
    %152 = vector.multi_reduction <maximumf>, %151, %cst_56 [1] : vector<17x17xf32> to vector<17xf32>
    %153 = vector.shape_cast %152 : vector<17xf32> to vector<17x1xf32>
    %154 = vector.broadcast %153 : vector<17x1xf32> to vector<17x17xf32>
    %155 = arith.subf %151, %154 : vector<17x17xf32>
    %156 = math.exp %155 : vector<17x17xf32>
    %cst_57 = arith.constant dense<0.000000e+00> : vector<17xf32>
    %157 = vector.multi_reduction <add>, %156, %cst_57 [1] : vector<17x17xf32> to vector<17xf32>
    %158 = vector.shape_cast %157 : vector<17xf32> to vector<17x1xf32>
    %159 = tpu.reciprocal %158 {approx = true} : vector<17x1xf32> -> vector<17x1xf32>
    %160 = vector.broadcast %159 : vector<17x1xf32> to vector<17x17xf32>
    %161 = arith.mulf %156, %160 : vector<17x17xf32>
    %cst_58 = arith.constant dense<0.000000e+00> : vector<17x32xf32>
    %162 = tpu.matmul %161, %148, %cst_58 {dimension_numbers = #tpu.dot_dimension_numbers<[1], [0], [0], [1], [0, 0, 1, 1], [], []>} : vector<17x17xf32>, vector<17x32xf32>, vector<17x32xf32> -> vector<17x32xf32>
    %c17_59 = arith.constant 17 : index
    %c64_60 = arith.constant 64 : index
    %163 = vector.load %arg23[%c17_59, %c64_60] : memref<34x128xf32, #tpu.memory_space<vmem>>, vector<17x32xf32>
    tpu.vector_store %arg23[%c17_59, %c64_60], %162 {strides = array<i32>} : memref<34x128xf32, #tpu.memory_space<vmem>>, vector<17x32xf32>,
    %164 = vector.extract_strided_slice %37 {offsets = [17, 96], sizes = [17, 32], strides = [1, 1]} : vector<34x384xf32> to vector<17x32xf32>
    %165 = vector.extract_strided_slice %37 {offsets = [17, 224], sizes = [17, 32], strides = [1, 1]} : vector<34x384xf32> to vector<17x32xf32>
    %166 = vector.extract_strided_slice %37 {offsets = [17, 352], sizes = [17, 32], strides = [1, 1]} : vector<34x384xf32> to vector<17x32xf32>
    %cst_61 = arith.constant dense<0.000000e+00> : vector<17x17xf32>
    %167 = tpu.matmul %164, %165, %cst_61 {dimension_numbers = #tpu.dot_dimension_numbers<[1], [1], [0], [0], [0, 0, 1, 0], [], []>} : vector<17x32xf32>, vector<17x32xf32>, vector<17x17xf32> -> vector<17x17xf32>
    %cst_62 = arith.constant 0.176776692 : f32
    %168 = vector.broadcast %cst_62 : f32 to vector<17x17xf32>
    %169 = arith.mulf %167, %168 : vector<17x17xf32>
    %cst_63 = arith.constant dense<0xFF800000> : vector<17xf32>
    %170 = vector.multi_reduction <maximumf>, %169, %cst_63 [1] : vector<17x17xf32> to vector<17xf32>
    %171 = vector.shape_cast %170 : vector<17xf32> to vector<17x1xf32>
    %172 = vector.broadcast %171 : vector<17x1xf32> to vector<17x17xf32>
    %173 = arith.subf %169, %172 : vector<17x17xf32>
    %174 = math.exp %173 : vector<17x17xf32>
    %cst_64 = arith.constant dense<0.000000e+00> : vector<17xf32>
    %175 = vector.multi_reduction <add>, %174, %cst_64 [1] : vector<17x17xf32> to vector<17xf32>
    %176 = vector.shape_cast %175 : vector<17xf32> to vector<17x1xf32>
    %177 = tpu.reciprocal %176 {approx = true} : vector<17x1xf32> -> vector<17x1xf32>
    %178 = vector.broadcast %177 : vector<17x1xf32> to vector<17x17xf32>
    %179 = arith.mulf %174, %178 : vector<17x17xf32>
    %cst_65 = arith.constant dense<0.000000e+00> : vector<17x32xf32>
    %180 = tpu.matmul %179, %166, %cst_65 {dimension_numbers = #tpu.dot_dimension_numbers<[1], [0], [0], [1], [0, 0, 1, 1], [], []>} : vector<17x17xf32>, vector<17x32xf32>, vector<17x32xf32> -> vector<17x32xf32>
    %c17_66 = arith.constant 17 : index
    %c96_67 = arith.constant 96 : index
    %181 = vector.load %arg23[%c17_66, %c96_67] : memref<34x128xf32, #tpu.memory_space<vmem>>, vector<17x32xf32>
    tpu.vector_store %arg23[%c17_66, %c96_67], %180 {strides = array<i32>} : memref<34x128xf32, #tpu.memory_space<vmem>>, vector<17x32xf32>,
    %c0_68 = arith.constant 0 : index
    %c0_69 = arith.constant 0 : index
    %182 = vector.load %arg23[%c0_68, %c0_69] : memref<34x128xf32, #tpu.memory_space<vmem>>, vector<34x128xf32>
    %183 = arith.truncf %182 : vector<34x128xf32> to vector<34x128xbf16>
    %c0_70 = arith.constant 0 : index
    %c0_71 = arith.constant 0 : index
    %c0_72 = arith.constant 0 : index
    %184 = vector.load %arg14[%c0_70, %c0_71, %c0_72] : memref<1x128x128xbf16, #tpu.memory_space<vmem>>, vector<1x128x128xbf16>
    %185 = vector.shape_cast %184 : vector<1x128x128xbf16> to vector<128x128xbf16>
    %cst_73 = arith.constant dense<0.000000e+00> : vector<34x128xf32>
    %186 = tpu.matmul %183, %185, %cst_73 {dimension_numbers = #tpu.dot_dimension_numbers<[1], [0], [0], [1], [0, 0, 1, 1], [], []>} : vector<34x128xbf16>, vector<128x128xbf16>, vector<34x128xf32> -> vector<34x128xf32>
    %c0_74 = arith.constant 0 : index
    %c0_75 = arith.constant 0 : index
    %c0_76 = arith.constant 0 : index
    %187 = vector.load %arg15[%c0_74, %c0_75, %c0_76] : memref<1x1x128xf32, #tpu.memory_space<vmem>>, vector<1x1x128xf32>
    %188 = vector.shape_cast %187 : vector<1x1x128xf32> to vector<1x128xf32>
    %189 = vector.broadcast %188 : vector<1x128xf32> to vector<34x128xf32>
    %190 = arith.addf %186, %189 : vector<34x128xf32>
    %191 = arith.addf %3, %190 : vector<34x128xf32>
    %192 = vector.extract_strided_slice %5 {offsets = [2, 0], sizes = [1, 128], strides = [1, 1]} : vector<4x128xf32> to vector<1x128xf32>
    %193 = vector.extract_strided_slice %5 {offsets = [3, 0], sizes = [1, 128], strides = [1, 1]} : vector<4x128xf32> to vector<1x128xf32>
    %cst_77 = arith.constant dense<0.000000e+00> : vector<34xf32>
    %194 = vector.multi_reduction <add>, %191, %cst_77 [1] : vector<34x128xf32> to vector<34xf32>
    %195 = vector.shape_cast %194 : vector<34xf32> to vector<34x1xf32>
    %cst_78 = arith.constant 1.280000e+02 : f32
    %196 = vector.broadcast %cst_78 : f32 to vector<34x1xf32>
    %197 = arith.divf %195, %196 : vector<34x1xf32>
    %198 = vector.broadcast %197 : vector<34x1xf32> to vector<34x128xf32>
    %199 = arith.subf %191, %198 : vector<34x128xf32>
    %200 = arith.mulf %199, %199 : vector<34x128xf32>
    %cst_79 = arith.constant dense<0.000000e+00> : vector<34xf32>
    %201 = vector.multi_reduction <add>, %200, %cst_79 [1] : vector<34x128xf32> to vector<34xf32>
    %202 = vector.shape_cast %201 : vector<34xf32> to vector<34x1xf32>
    %cst_80 = arith.constant 1.280000e+02 : f32
    %203 = vector.broadcast %cst_80 : f32 to vector<34x1xf32>
    %204 = arith.divf %202, %203 : vector<34x1xf32>
    %205 = vector.broadcast %197 : vector<34x1xf32> to vector<34x128xf32>
    %206 = arith.subf %191, %205 : vector<34x128xf32>
    %cst_81 = arith.constant 9.99999974E-6 : f32
    %207 = vector.broadcast %cst_81 : f32 to vector<34x1xf32>
    %208 = arith.addf %204, %207 : vector<34x1xf32>
    %209 = math.rsqrt %208 : vector<34x1xf32>
    %210 = vector.broadcast %209 : vector<34x1xf32> to vector<34x128xf32>
    %211 = arith.mulf %206, %210 : vector<34x128xf32>
    %212 = vector.broadcast %192 : vector<1x128xf32> to vector<34x128xf32>
    %213 = arith.mulf %211, %212 : vector<34x128xf32>
    %214 = vector.broadcast %193 : vector<1x128xf32> to vector<34x128xf32>
    %215 = arith.addf %213, %214 : vector<34x128xf32>
    %216 = arith.truncf %215 : vector<34x128xf32> to vector<34x128xbf16>
    %c0_82 = arith.constant 0 : index
    %c0_83 = arith.constant 0 : index
    %c0_84 = arith.constant 0 : index
    %217 = vector.load %arg16[%c0_82, %c0_83, %c0_84] : memref<1x128x512xbf16, #tpu.memory_space<vmem>>, vector<1x128x512xbf16>
    %218 = vector.shape_cast %217 : vector<1x128x512xbf16> to vector<128x512xbf16>
    %cst_85 = arith.constant dense<0.000000e+00> : vector<34x512xf32>
    %219 = tpu.matmul %216, %218, %cst_85 {dimension_numbers = #tpu.dot_dimension_numbers<[1], [0], [0], [1], [0, 0, 1, 1], [], []>} : vector<34x128xbf16>, vector<128x512xbf16>, vector<34x512xf32> -> vector<34x512xf32>
    %c0_86 = arith.constant 0 : index
    %c0_87 = arith.constant 0 : index
    %c0_88 = arith.constant 0 : index
    %220 = vector.load %arg17[%c0_86, %c0_87, %c0_88] : memref<1x1x512xf32, #tpu.memory_space<vmem>>, vector<1x1x512xf32>
    %221 = vector.shape_cast %220 : vector<1x1x512xf32> to vector<1x512xf32>
    %222 = vector.broadcast %221 : vector<1x512xf32> to vector<34x512xf32>
    %223 = arith.addf %219, %222 : vector<34x512xf32>
    %224 = arith.mulf %223, %223 : vector<34x512xf32>
    %225 = arith.mulf %223, %224 : vector<34x512xf32>
    %cst_89 = arith.constant 4.471500e-02 : f32
    %226 = vector.broadcast %cst_89 : f32 to vector<34x512xf32>
    %227 = arith.mulf %226, %225 : vector<34x512xf32>
    %228 = arith.addf %223, %227 : vector<34x512xf32>
    %cst_90 = arith.constant 0.797884583 : f32
    %229 = vector.broadcast %cst_90 : f32 to vector<34x512xf32>
    %230 = arith.mulf %229, %228 : vector<34x512xf32>
    %231 = math.tanh %230 : vector<34x512xf32>
    %cst_91 = arith.constant 1.000000e+00 : f32
    %232 = vector.broadcast %cst_91 : f32 to vector<34x512xf32>
    %233 = arith.addf %232, %231 : vector<34x512xf32>
    %cst_92 = arith.constant 5.000000e-01 : f32
    %234 = vector.broadcast %cst_92 : f32 to vector<34x512xf32>
    %235 = arith.mulf %234, %233 : vector<34x512xf32>
    %236 = arith.mulf %223, %235 : vector<34x512xf32>
    %237 = arith.truncf %236 : vector<34x512xf32> to vector<34x512xbf16>
    %c0_93 = arith.constant 0 : index
    %c0_94 = arith.constant 0 : index
    %c0_95 = arith.constant 0 : index
    %238 = vector.load %arg18[%c0_93, %c0_94, %c0_95] : memref<1x512x128xbf16, #tpu.memory_space<vmem>>, vector<1x512x128xbf16>
    %239 = vector.shape_cast %238 : vector<1x512x128xbf16> to vector<512x128xbf16>
    %cst_96 = arith.constant dense<0.000000e+00> : vector<34x128xf32>
    %240 = tpu.matmul %237, %239, %cst_96 {dimension_numbers = #tpu.dot_dimension_numbers<[1], [0], [0], [1], [0, 0, 1, 1], [], []>} : vector<34x512xbf16>, vector<512x128xbf16>, vector<34x128xf32> -> vector<34x128xf32>
    %c0_97 = arith.constant 0 : index
    %c0_98 = arith.constant 0 : index
    %c0_99 = arith.constant 0 : index
    %241 = vector.load %arg19[%c0_97, %c0_98, %c0_99] : memref<1x1x128xf32, #tpu.memory_space<vmem>>, vector<1x1x128xf32>
    %242 = vector.shape_cast %241 : vector<1x1x128xf32> to vector<1x128xf32>
    %243 = vector.broadcast %242 : vector<1x128xf32> to vector<34x128xf32>
    %244 = arith.addf %240, %243 : vector<34x128xf32>
    %245 = arith.addf %191, %244 : vector<34x128xf32>
    %c0_100 = arith.constant 0 : index
    %c0_101 = arith.constant 0 : index
    %246 = vector.load %arg22[%c0_100, %c0_101] : memref<34x128xf32, #tpu.memory_space<vmem>>, vector<34x128xf32>
    tpu.vector_store %arg22[%c0_100, %c0_101], %245 {strides = array<i32>} : memref<34x128xf32, #tpu.memory_space<vmem>>, vector<34x128xf32>,
    %c1_i32 = arith.constant 1 : i32
    %247 = arith.cmpi eq, %arg1, %c1_i32 : i32
    %248 = arith.extui %247 : i1 to i32
    %c0_i32_102 = arith.constant 0 : i32
    %249 = arith.cmpi ne, %248, %c0_i32_102 : i32
    scf.if %249 {
      %250 = vector.extract_strided_slice %245 {offsets = [0, 0], sizes = [1, 128], strides = [1, 1]} : vector<34x128xf32> to vector<1x128xf32>
      %c0_103 = arith.constant 0 : index
      %c0_104 = arith.constant 0 : index
      %251 = vector.load %arg20[%c0_103, %c0_104] : memref<1x128xf32, #tpu.memory_space<vmem>>, vector<1x128xf32>
      %cst_105 = arith.constant dense<0.000000e+00> : vector<1xf32>
      %252 = vector.multi_reduction <add>, %250, %cst_105 [1] : vector<1x128xf32> to vector<1xf32>
      %253 = vector.shape_cast %252 : vector<1xf32> to vector<1x1xf32>
      %cst_106 = arith.constant 1.280000e+02 : f32
      %254 = vector.broadcast %cst_106 : f32 to vector<1x1xf32>
      %255 = arith.divf %253, %254 : vector<1x1xf32>
      %256 = vector.broadcast %255 : vector<1x1xf32> to vector<1x128xf32>
      %257 = arith.subf %250, %256 : vector<1x128xf32>
      %258 = arith.mulf %257, %257 : vector<1x128xf32>
      %cst_107 = arith.constant dense<0.000000e+00> : vector<1xf32>
      %259 = vector.multi_reduction <add>, %258, %cst_107 [1] : vector<1x128xf32> to vector<1xf32>
      %260 = vector.shape_cast %259 : vector<1xf32> to vector<1x1xf32>
      %cst_108 = arith.constant 1.280000e+02 : f32
      %261 = vector.broadcast %cst_108 : f32 to vector<1x1xf32>
      %262 = arith.divf %260, %261 : vector<1x1xf32>
      %263 = vector.broadcast %255 : vector<1x1xf32> to vector<1x128xf32>
      %264 = arith.subf %250, %263 : vector<1x128xf32>
      %cst_109 = arith.constant 9.99999974E-6 : f32
      %265 = vector.broadcast %cst_109 : f32 to vector<1x1xf32>
      %266 = arith.addf %262, %265 : vector<1x1xf32>
      %267 = math.rsqrt %266 : vector<1x1xf32>
      %268 = vector.broadcast %267 : vector<1x1xf32> to vector<1x128xf32>
      %269 = arith.mulf %264, %268 : vector<1x128xf32>
      %270 = arith.mulf %269, %251 : vector<1x128xf32>
      %cst_110 = arith.constant 0.000000e+00 : f32
      %271 = vector.broadcast %cst_110 : f32 to vector<1x128xf32>
      %272 = arith.addf %270, %271 : vector<1x128xf32>
      %c0_111 = arith.constant 0 : index
      %c0_112 = arith.constant 0 : index
      %c0_113 = arith.constant 0 : index
      %273 = vector.load %arg21[%c0_111, %c0_112, %c0_113] : memref<1x2x128xf32, #tpu.memory_space<vmem>>, vector<1x1x128xf32>
      %274 = vector.shape_cast %273 : vector<1x1x128xf32> to vector<1x128xf32>
      %275 = vector.shape_cast %272 : vector<1x128xf32> to vector<1x1x128xf32>
      tpu.vector_store %arg21[%c0_111, %c0_112, %c0_113], %275 {strides = array<i32>} : memref<1x2x128xf32, #tpu.memory_space<vmem>>, vector<1x1x128xf32>,
      %276 = vector.extract_strided_slice %245 {offsets = [17, 0], sizes = [1, 128], strides = [1, 1]} : vector<34x128xf32> to vector<1x128xf32>
      %c0_114 = arith.constant 0 : index
      %c0_115 = arith.constant 0 : index
      %277 = vector.load %arg20[%c0_114, %c0_115] : memref<1x128xf32, #tpu.memory_space<vmem>>, vector<1x128xf32>
      %cst_116 = arith.constant dense<0.000000e+00> : vector<1xf32>
      %278 = vector.multi_reduction <add>, %276, %cst_116 [1] : vector<1x128xf32> to vector<1xf32>
      %279 = vector.shape_cast %278 : vector<1xf32> to vector<1x1xf32>
      %cst_117 = arith.constant 1.280000e+02 : f32
      %280 = vector.broadcast %cst_117 : f32 to vector<1x1xf32>
      %281 = arith.divf %279, %280 : vector<1x1xf32>
      %282 = vector.broadcast %281 : vector<1x1xf32> to vector<1x128xf32>
      %283 = arith.subf %276, %282 : vector<1x128xf32>
      %284 = arith.mulf %283, %283 : vector<1x128xf32>
      %cst_118 = arith.constant dense<0.000000e+00> : vector<1xf32>
      %285 = vector.multi_reduction <add>, %284, %cst_118 [1] : vector<1x128xf32> to vector<1xf32>
      %286 = vector.shape_cast %285 : vector<1xf32> to vector<1x1xf32>
      %cst_119 = arith.constant 1.280000e+02 : f32
      %287 = vector.broadcast %cst_119 : f32 to vector<1x1xf32>
      %288 = arith.divf %286, %287 : vector<1x1xf32>
      %289 = vector.broadcast %281 : vector<1x1xf32> to vector<1x128xf32>
      %290 = arith.subf %276, %289 : vector<1x128xf32>
      %cst_120 = arith.constant 9.99999974E-6 : f32
      %291 = vector.broadcast %cst_120 : f32 to vector<1x1xf32>
      %292 = arith.addf %288, %291 : vector<1x1xf32>
      %293 = math.rsqrt %292 : vector<1x1xf32>
      %294 = vector.broadcast %293 : vector<1x1xf32> to vector<1x128xf32>
      %295 = arith.mulf %290, %294 : vector<1x128xf32>
      %296 = arith.mulf %295, %277 : vector<1x128xf32>
      %cst_121 = arith.constant 0.000000e+00 : f32
      %297 = vector.broadcast %cst_121 : f32 to vector<1x128xf32>
      %298 = arith.addf %296, %297 : vector<1x128xf32>
      %c0_122 = arith.constant 0 : index
      %c1 = arith.constant 1 : index
      %c0_123 = arith.constant 0 : index
      %299 = vector.load %arg21[%c0_122, %c1, %c0_123] : memref<1x2x128xf32, #tpu.memory_space<vmem>>, vector<1x1x128xf32>
      %300 = vector.shape_cast %299 : vector<1x1x128xf32> to vector<1x128xf32>
      %301 = vector.shape_cast %298 : vector<1x128xf32> to vector<1x1x128xf32>
      tpu.vector_store %arg21[%c0_122, %c1, %c0_123], %301 {strides = array<i32>} : memref<1x2x128xf32, #tpu.memory_space<vmem>>, vector<1x1x128xf32>,
    } else {
    }
    return
  }
  func.func @transform_0(%arg0: i32, %arg1: i32) -> (i32, i32) {
    %c0_i32 = arith.constant 0 : i32
    %c0_i32_0 = arith.constant 0 : i32
    return %arg0, %c0_i32 : i32, i32
  }
  func.func @transform_1(%arg0: i32, %arg1: i32) -> (i32, i32) {
    %c0_i32 = arith.constant 0 : i32
    %c0_i32_0 = arith.constant 0 : i32
    return %arg0, %c0_i32 : i32, i32
  }
  func.func @transform_2(%arg0: i32, %arg1: i32) -> (i32, i32) {
    %c0_i32 = arith.constant 0 : i32
    %c0_i32_0 = arith.constant 0 : i32
    return %arg0, %c0_i32 : i32, i32
  }
  func.func @transform_3(%arg0: i32, %arg1: i32) -> (i32, i32) {
    %c0_i32 = arith.constant 0 : i32
    %c0_i32_0 = arith.constant 0 : i32
    return %arg0, %c0_i32 : i32, i32
  }
  func.func @transform_4(%arg0: i32, %arg1: i32) -> (i32, i32) {
    %c0_i32 = arith.constant 0 : i32
    %c0_i32_0 = arith.constant 0 : i32
    %c0_i32_1 = arith.constant 0 : i32
    return %c0_i32, %c0_i32_0 : i32, i32
  }
  func.func @transform_5(%arg0: i32, %arg1: i32) -> (i32, i32) {
    %c0_i32 = arith.constant 0 : i32
    %c0_i32_0 = arith.constant 0 : i32
    %c0_i32_1 = arith.constant 0 : i32
    return %c0_i32, %c0_i32_0 : i32, i32
  }
  func.func @transform_6(%arg0: i32, %arg1: i32) -> (i32, i32) {
    %c0_i32 = arith.constant 0 : i32
    %c0_i32_0 = arith.constant 0 : i32
    %c0_i32_1 = arith.constant 0 : i32
    return %c0_i32, %c0_i32_0 : i32, i32
  }
  func.func @transform_7(%arg0: i32, %arg1: i32) -> (i32, i32) {
    %c0_i32 = arith.constant 0 : i32
    %c0_i32_0 = arith.constant 0 : i32
    %c0_i32_1 = arith.constant 0 : i32
    return %c0_i32, %c0_i32_0 : i32, i32
  }
  func.func @transform_8(%arg0: i32, %arg1: i32) -> (i32, i32) {
    %c0_i32 = arith.constant 0 : i32
    %c0_i32_0 = arith.constant 0 : i32
    %c0_i32_1 = arith.constant 0 : i32
    return %c0_i32, %c0_i32_0 : i32, i32
  }
  func.func @transform_9(%arg0: i32, %arg1: i32) -> (i32, i32, i32) {
    %c0_i32 = arith.constant 0 : i32
    %c0_i32_0 = arith.constant 0 : i32
    %c0_i32_1 = arith.constant 0 : i32
    return %arg1, %c0_i32, %c0_i32_0 : i32, i32, i32
  }
  func.func @transform_10(%arg0: i32, %arg1: i32) -> (i32, i32, i32) {
    %c0_i32 = arith.constant 0 : i32
    %c0_i32_0 = arith.constant 0 : i32
    %c0_i32_1 = arith.constant 0 : i32
    return %arg1, %c0_i32, %c0_i32_0 : i32, i32, i32
  }
  func.func @transform_11(%arg0: i32, %arg1: i32) -> (i32, i32, i32) {
    %c0_i32 = arith.constant 0 : i32
    %c0_i32_0 = arith.constant 0 : i32
    %c0_i32_1 = arith.constant 0 : i32
    return %arg1, %c0_i32, %c0_i32_0 : i32, i32, i32
  }
  func.func @transform_12(%arg0: i32, %arg1: i32) -> (i32, i32, i32) {
    %c0_i32 = arith.constant 0 : i32
    %c0_i32_0 = arith.constant 0 : i32
    %c0_i32_1 = arith.constant 0 : i32
    return %arg1, %c0_i32, %c0_i32_0 : i32, i32, i32
  }
  func.func @transform_13(%arg0: i32, %arg1: i32) -> (i32, i32, i32) {
    %c0_i32 = arith.constant 0 : i32
    %c0_i32_0 = arith.constant 0 : i32
    %c0_i32_1 = arith.constant 0 : i32
    return %arg1, %c0_i32, %c0_i32_0 : i32, i32, i32
  }
  func.func @transform_14(%arg0: i32, %arg1: i32) -> (i32, i32, i32) {
    %c0_i32 = arith.constant 0 : i32
    %c0_i32_0 = arith.constant 0 : i32
    %c0_i32_1 = arith.constant 0 : i32
    return %arg1, %c0_i32, %c0_i32_0 : i32, i32, i32
  }
  func.func @transform_15(%arg0: i32, %arg1: i32) -> (i32, i32, i32) {
    %c0_i32 = arith.constant 0 : i32
    %c0_i32_0 = arith.constant 0 : i32
    %c0_i32_1 = arith.constant 0 : i32
    return %arg1, %c0_i32, %c0_i32_0 : i32, i32, i32
  }
  func.func @transform_16(%arg0: i32, %arg1: i32) -> (i32, i32, i32) {
    %c0_i32 = arith.constant 0 : i32
    %c0_i32_0 = arith.constant 0 : i32
    %c0_i32_1 = arith.constant 0 : i32
    return %arg1, %c0_i32, %c0_i32_0 : i32, i32, i32
  }
  func.func @transform_17(%arg0: i32, %arg1: i32) -> (i32, i32, i32) {
    %c0_i32 = arith.constant 0 : i32
    %c0_i32_0 = arith.constant 0 : i32
    %c0_i32_1 = arith.constant 0 : i32
    return %arg1, %c0_i32, %c0_i32_0 : i32, i32, i32
  }
  func.func @transform_18(%arg0: i32, %arg1: i32) -> (i32, i32) {
    %c0_i32 = arith.constant 0 : i32
    %c0_i32_0 = arith.constant 0 : i32
    %c0_i32_1 = arith.constant 0 : i32
    return %c0_i32, %c0_i32_0 : i32, i32
  }
  func.func @transform_19(%arg0: i32, %arg1: i32) -> (i32, i32, i32) {
    %c0_i32 = arith.constant 0 : i32
    %c0_i32_0 = arith.constant 0 : i32
    %c0_i32_1 = arith.constant 0 : i32
    return %arg0, %c0_i32, %c0_i32_0 : i32, i32, i32
  }
}

</mosaic_0001>

<llo_original>
// kernel: slr_forward.1
$region0: #{slr_forward.1}
  #allocation0 [shape = 'u32[]', space=smem, size = 0x4, offset = 0x4, fixed_abs, tag = 'smem constant byte address 0x4 - core index']
  #allocation1 [shape = 'u32[144,128]{1,0:T(1,128)}', space=vmem, size = 0x12000, scoped, tag = 'internal scratch']
  #allocation2 [shape = 'f32[34,128]{1,0:T(8,128)}', space=vmem, size = 0x5000, scoped, tag = 'scratch operand']
  #allocation3 [shape = 'f32[34,128]{1,0:T(8,128)}', space=vmem, size = 0x5000, scoped, tag = 'scratch operand']
  %s0 = inlined_call_operand.vmem [shape: f32[16,24], index: 0, kind: input, shape index: {}]
  %s1 = inlined_call_operand.vmem [shape: f32[16,8], index: 1, kind: input, shape index: {}]
  %s2 = inlined_call_operand.vmem [shape: f32[16,24], index: 2, kind: input, shape index: {}]
  %s3 = inlined_call_operand.vmem [shape: f32[16,8], index: 3, kind: input, shape index: {}]
  %s4 = inlined_call_operand.vmem [shape: f32[24,128], index: 4, kind: input, shape index: {}]
  %s5 = inlined_call_operand.vmem [shape: f32[8,128], index: 5, kind: input, shape index: {}]
  %s6 = inlined_call_operand.vmem [shape: f32[24,128], index: 6, kind: input, shape index: {}]
  %s7 = inlined_call_operand.vmem [shape: f32[8,128], index: 7, kind: input, shape index: {}]
  %s8 = inlined_call_operand.vmem [shape: f32[17,128], index: 8, kind: input, shape index: {}]
  %s9 = inlined_call_operand.vmem [shape: f32[2,4,128], index: 9, kind: input, shape index: {}]
  %s10 = inlined_call_operand.vmem [shape: bf16[2,128,384], index: 10, kind: input, shape index: {}]
  %s11 = inlined_call_operand.vmem [shape: f32[2,1,384], index: 11, kind: input, shape index: {}]
  %s12 = inlined_call_operand.vmem [shape: bf16[2,128,128], index: 12, kind: input, shape index: {}]
  %s13 = inlined_call_operand.vmem [shape: f32[2,1,128], index: 13, kind: input, shape index: {}]
  %s14 = inlined_call_operand.vmem [shape: bf16[2,128,512], index: 14, kind: input, shape index: {}]
  %s15 = inlined_call_operand.vmem [shape: f32[2,1,512], index: 15, kind: input, shape index: {}]
  %s16 = inlined_call_operand.vmem [shape: bf16[2,512,128], index: 16, kind: input, shape index: {}]
  %s17 = inlined_call_operand.vmem [shape: f32[2,1,128], index: 17, kind: input, shape index: {}]
  %s18 = inlined_call_operand.vmem [shape: f32[1,128], index: 18, kind: input, shape index: {}]
  %s19 = inlined_call_operand.hbm [shape: f32[1,2,128], index: 19, kind: output, shape index: {}]
  %s20 = sld [smem:[#allocation0]]
  $region117: #{slr_forward.1} parent=0
    _
  %s22 = ssub.s32 1, %s20
  %s23 = scalar_select 0, %s22, %s20
  $region1: #{slr_forward.1} parent=0
    #allocation4 [shape = 'u8[1024]{0}', space=vmem, size = 0x400, scoped, tag = 'output window, operand 0, single buffered']
    #allocation5 [shape = 's32[2]{0}', space=sflag, size = 0x8, scoped, tag = 'scoped memory for slr_forward.1']
    %24 = vsyncpa [#allocation5], 0
    loop: start=0, step=1, limit=4
    $region2: #{slr_forward.1} parent=1 // loop_pre_header
      _
    $region3: #{slr_forward.1} parent=1 // loop_header
      %s26 = sphi 0, %s30
      %p27 = scmp.ge.s32.totalorder %s26, 4
      %s33 = sphi 0, %s45
      %s34 = sphi 0, %s41
      %s35 = sphi 0, %s33
      %s36 = sphi 0, %s34
      %s37 = sphi 0, %s35
      %s38 = sphi 0, %s36
      %s48 = sphi 0, %s50
      %s51 = sphi 0, %s48
      %s52 = sphi 0, %s51
      %s68 = sphi 0, %s52
      %s74 = sphi 0, %s76
      %s77 = sphi 0, %s74
      %s78 = sphi 0, %s77
      %s94 = sphi 0, %s78
      %s100 = sphi 0, %s102
      %s103 = sphi 0, %s100
      %s104 = sphi 0, %s103
      %s120 = sphi 0, %s104
      %s126 = sphi 0, %s128
      %s129 = sphi 0, %s126
      %s130 = sphi 0, %s129
      %s146 = sphi 0, %s130
      %s150 = sphi 0, %s150
      %s152 = sphi 0, %s150
      %s153 = sphi 0, %s152
      %s167 = sphi 0, %s153
      %s171 = sphi 0, %s171
      %s173 = sphi 0, %s171
      %s174 = sphi 0, %s173
      %s188 = sphi 0, %s174
      %s192 = sphi 0, %s192
      %s194 = sphi 0, %s192
      %s195 = sphi 0, %s194
      %s209 = sphi 0, %s195
      %s213 = sphi 0, %s213
      %s215 = sphi 0, %s213
      %s216 = sphi 0, %s215
      %s230 = sphi 0, %s216
      %s234 = sphi 0, %s234
      %s236 = sphi 0, %s234
      %s237 = sphi 0, %s236
      %s251 = sphi 0, %s237
      %s257 = sphi 0, %s259
      %s260 = sphi 0, %s257
      %s261 = sphi 0, %s260
      %s277 = sphi 0, %s261
      %s283 = sphi 0, %s285
      %s286 = sphi 0, %s283
      %s287 = sphi 0, %s286
      %s303 = sphi 0, %s287
      %s309 = sphi 0, %s311
      %s312 = sphi 0, %s309
      %s313 = sphi 0, %s312
      %s329 = sphi 0, %s313
      %s335 = sphi 0, %s337
      %s338 = sphi 0, %s335
      %s339 = sphi 0, %s338
      %s355 = sphi 0, %s339
      %s361 = sphi 0, %s363
      %s364 = sphi 0, %s361
      %s365 = sphi 0, %s364
      %s381 = sphi 0, %s365
      %s387 = sphi 0, %s389
      %s390 = sphi 0, %s387
      %s391 = sphi 0, %s390
      %s407 = sphi 0, %s391
      %s413 = sphi 0, %s415
      %s416 = sphi 0, %s413
      %s417 = sphi 0, %s416
      %s433 = sphi 0, %s417
      %s439 = sphi 0, %s441
      %s442 = sphi 0, %s439
      %s443 = sphi 0, %s442
      %s459 = sphi 0, %s443
      %s465 = sphi 0, %s467
      %s468 = sphi 0, %s465
      %s469 = sphi 0, %s468
      %s485 = sphi 0, %s469
      %s489 = sphi 0, %s489
      %s491 = sphi 0, %s489
      %s492 = sphi 0, %s491
      %s506 = sphi 0, %s492
      %s512 = sphi 0, %s514
      %s515 = sphi 0, %s512
      %s516 = sphi 0, %s515
      %s532 = sphi 0, %s516
    $region4: #{slr_forward.1} parent=1 // loop_header_branch
      %29 = sbr.rel (%p27) target = $region8
    $region5: #{slr_forward.1} parent=1 // loop_body
      %s31 = ssub.s32 %s26, 1
      %s32 = ssub.s32 %s26, 2
      %s39 = sadd.s32 1, %s34
      %p40 = scmp.ge.s32.totalorder %s39, 2
      %s41 = scalar_select %p40, 0, %s39
      %s42 = sadd.s32 1, %s33
      %s43 = scalar_select %p40, %s42, %s33
      %p44 = scmp.ge.s32.totalorder %s43, 1
      %s45 = scalar_select %p44, 0, %s43
      %s46 = ssub.s32 %s33, %s45
      %p47 = scmp.eq.s32.totalorder %s46, 0
      %s49 = sadd.s32 %s48, 1
      %s50 = scalar_select %p47, %s48, %s49
      %p53 = pneg %p47
      %p54 = scmp.eq.s32.totalorder %s26, 1
      %p55 = por %p53, %p54
      %p56 = scmp.ne.s32.totalorder %s48, %s51
      %p57 = scmp.eq.s32.totalorder %s26, 0
      %p58 = por %p56, %p57
      %p59 = scmp.ne.s32.totalorder %s48, %s51
      %p60 = scmp.eq.s32.totalorder %s31, 1
      %p61 = por %p59, %p60
      %p62 = scmp.ne.s32.totalorder %s51, %s52
      %p63 = scmp.eq.s32.totalorder %s31, 0
      %p64 = por %p62, %p63
      %p65 = scmp.ne.s32.totalorder %s51, %s52
      %p66 = scmp.eq.s32.totalorder %s32, 1
      %p67 = por %p65, %p66
      %p69 = scmp.ne.s32.totalorder %s52, %s68
      %p70 = scmp.eq.s32.totalorder %s32, 0
      %p71 = por %p69, %p70
      %s72 = ssub.s32 %s33, %s45
      %p73 = scmp.eq.s32.totalorder %s72, 0
      %s75 = sadd.s32 %s74, 1
      %s76 = scalar_select %p73, %s74, %s75
      %p79 = pneg %p73
      %p80 = scmp.eq.s32.totalorder %s26, 1
      %p81 = por %p79, %p80
      %p82 = scmp.ne.s32.totalorder %s74, %s77
      %p83 = scmp.eq.s32.totalorder %s26, 0
      %p84 = por %p82, %p83
      %p85 = scmp.ne.s32.totalorder %s74, %s77
      %p86 = scmp.eq.s32.totalorder %s31, 1
      %p87 = por %p85, %p86
      %p88 = scmp.ne.s32.totalorder %s77, %s78
      %p89 = scmp.eq.s32.totalorder %s31, 0
      %p90 = por %p88, %p89
      %p91 = scmp.ne.s32.totalorder %s77, %s78
      %p92 = scmp.eq.s32.totalorder %s32, 1
      %p93 = por %p91, %p92
      %p95 = scmp.ne.s32.totalorder %s78, %s94
      %p96 = scmp.eq.s32.totalorder %s32, 0
      %p97 = por %p95, %p96
      %s98 = ssub.s32 %s33, %s45
      %p99 = scmp.eq.s32.totalorder %s98, 0
      %s101 = sadd.s32 %s100, 1
      %s102 = scalar_select %p99, %s100, %s101
      %p105 = pneg %p99
      %p106 = scmp.eq.s32.totalorder %s26, 1
      %p107 = por %p105, %p106
      %p108 = scmp.ne.s32.totalorder %s100, %s103
      %p109 = scmp.eq.s32.totalorder %s26, 0
      %p110 = por %p108, %p109
      %p111 = scmp.ne.s32.totalorder %s100, %s103
      %p112 = scmp.eq.s32.totalorder %s31, 1
      %p113 = por %p111, %p112
      %p114 = scmp.ne.s32.totalorder %s103, %s104
      %p115 = scmp.eq.s32.totalorder %s31, 0
      %p116 = por %p114, %p115
      %p117 = scmp.ne.s32.totalorder %s103, %s104
      %p118 = scmp.eq.s32.totalorder %s32, 1
      %p119 = por %p117, %p118
      %p121 = scmp.ne.s32.totalorder %s104, %s120
      %p122 = scmp.eq.s32.totalorder %s32, 0
      %p123 = por %p121, %p122
      %s124 = ssub.s32 %s33, %s45
      %p125 = scmp.eq.s32.totalorder %s124, 0
      %s127 = sadd.s32 %s126, 1
      %s128 = scalar_select %p125, %s126, %s127
      %p131 = pneg %p125
      %p132 = scmp.eq.s32.totalorder %s26, 1
      %p133 = por %p131, %p132
      %p134 = scmp.ne.s32.totalorder %s126, %s129
      %p135 = scmp.eq.s32.totalorder %s26, 0
      %p136 = por %p134, %p135
      %p137 = scmp.ne.s32.totalorder %s126, %s129
      %p138 = scmp.eq.s32.totalorder %s31, 1
      %p139 = por %p137, %p138
      %p140 = scmp.ne.s32.totalorder %s129, %s130
      %p141 = scmp.eq.s32.totalorder %s31, 0
      %p142 = por %p140, %p141
      %p143 = scmp.ne.s32.totalorder %s129, %s130
      %p144 = scmp.eq.s32.totalorder %s32, 1
      %p145 = por %p143, %p144
      %p147 = scmp.ne.s32.totalorder %s130, %s146
      %p148 = scmp.eq.s32.totalorder %s32, 0
      %p149 = por %p147, %p148
      %s151 = sadd.s32 %s150, 1
      %p154 = scmp.eq.s32.totalorder %s26, 1
      %p155 = scmp.ne.s32.totalorder %s150, %s152
      %p156 = scmp.eq.s32.totalorder %s26, 0
      %p157 = por %p155, %p156
      %p158 = scmp.ne.s32.totalorder %s150, %s152
      %p159 = scmp.eq.s32.totalorder %s31, 1
      %p160 = por %p158, %p159
      %p161 = scmp.ne.s32.totalorder %s152, %s153
      %p162 = scmp.eq.s32.totalorder %s31, 0
      %p163 = por %p161, %p162
      %p164 = scmp.ne.s32.totalorder %s152, %s153
      %p165 = scmp.eq.s32.totalorder %s32, 1
      %p166 = por %p164, %p165
      %p168 = scmp.ne.s32.totalorder %s153, %s167
      %p169 = scmp.eq.s32.totalorder %s32, 0
      %p170 = por %p168, %p169
      %s172 = sadd.s32 %s171, 1
      %p175 = scmp.eq.s32.totalorder %s26, 1
      %p176 = scmp.ne.s32.totalorder %s171, %s173
      %p177 = scmp.eq.s32.totalorder %s26, 0
      %p178 = por %p176, %p177
      %p179 = scmp.ne.s32.totalorder %s171, %s173
      %p180 = scmp.eq.s32.totalorder %s31, 1
      %p181 = por %p179, %p180
      %p182 = scmp.ne.s32.totalorder %s173, %s174
      %p183 = scmp.eq.s32.totalorder %s31, 0
      %p184 = por %p182, %p183
      %p185 = scmp.ne.s32.totalorder %s173, %s174
      %p186 = scmp.eq.s32.totalorder %s32, 1
      %p187 = por %p185, %p186
      %p189 = scmp.ne.s32.totalorder %s174, %s188
      %p190 = scmp.eq.s32.totalorder %s32, 0
      %p191 = por %p189, %p190
      %s193 = sadd.s32 %s192, 1
      %p196 = scmp.eq.s32.totalorder %s26, 1
      %p197 = scmp.ne.s32.totalorder %s192, %s194
      %p198 = scmp.eq.s32.totalorder %s26, 0
      %p199 = por %p197, %p198
      %p200 = scmp.ne.s32.totalorder %s192, %s194
      %p201 = scmp.eq.s32.totalorder %s31, 1
      %p202 = por %p200, %p201
      %p203 = scmp.ne.s32.totalorder %s194, %s195
      %p204 = scmp.eq.s32.totalorder %s31, 0
      %p205 = por %p203, %p204
      %p206 = scmp.ne.s32.totalorder %s194, %s195
      %p207 = scmp.eq.s32.totalorder %s32, 1
      %p208 = por %p206, %p207
      %p210 = scmp.ne.s32.totalorder %s195, %s209
      %p211 = scmp.eq.s32.totalorder %s32, 0
      %p212 = por %p210, %p211
      %s214 = sadd.s32 %s213, 1
      %p217 = scmp.eq.s32.totalorder %s26, 1
      %p218 = scmp.ne.s32.totalorder %s213, %s215
      %p219 = scmp.eq.s32.totalorder %s26, 0
      %p220 = por %p218, %p219
      %p221 = scmp.ne.s32.totalorder %s213, %s215
      %p222 = scmp.eq.s32.totalorder %s31, 1
      %p223 = por %p221, %p222
      %p224 = scmp.ne.s32.totalorder %s215, %s216
      %p225 = scmp.eq.s32.totalorder %s31, 0
      %p226 = por %p224, %p225
      %p227 = scmp.ne.s32.totalorder %s215, %s216
      %p228 = scmp.eq.s32.totalorder %s32, 1
      %p229 = por %p227, %p228
      %p231 = scmp.ne.s32.totalorder %s216, %s230
      %p232 = scmp.eq.s32.totalorder %s32, 0
      %p233 = por %p231, %p232
      %s235 = sadd.s32 %s234, 1
      %p238 = scmp.eq.s32.totalorder %s26, 1
      %p239 = scmp.ne.s32.totalorder %s234, %s236
      %p240 = scmp.eq.s32.totalorder %s26, 0
      %p241 = por %p239, %p240
      %p242 = scmp.ne.s32.totalorder %s234, %s236
      %p243 = scmp.eq.s32.totalorder %s31, 1
      %p244 = por %p242, %p243
      %p245 = scmp.ne.s32.totalorder %s236, %s237
      %p246 = scmp.eq.s32.totalorder %s31, 0
      %p247 = por %p245, %p246
      %p248 = scmp.ne.s32.totalorder %s236, %s237
      %p249 = scmp.eq.s32.totalorder %s32, 1
      %p250 = por %p248, %p249
      %p252 = scmp.ne.s32.totalorder %s237, %s251
      %p253 = scmp.eq.s32.totalorder %s32, 0
      %p254 = por %p252, %p253
      %s255 = ssub.s32 %s34, %s41
      %p256 = scmp.eq.s32.totalorder %s255, 0
      %s258 = sadd.s32 %s257, 1
      %s259 = scalar_select %p256, %s257, %s258
      %p262 = pneg %p256
      %p263 = scmp.eq.s32.totalorder %s26, 1
      %p264 = por %p262, %p263
      %p265 = scmp.ne.s32.totalorder %s257, %s260
      %p266 = scmp.eq.s32.totalorder %s26, 0
      %p267 = por %p265, %p266
      %p268 = scmp.ne.s32.totalorder %s257, %s260
      %p269 = scmp.eq.s32.totalorder %s31, 1
      %p270 = por %p268, %p269
      %p271 = scmp.ne.s32.totalorder %s260, %s261
      %p272 = scmp.eq.s32.totalorder %s31, 0
      %p273 = por %p271, %p272
      %p274 = scmp.ne.s32.totalorder %s260, %s261
      %p275 = scmp.eq.s32.totalorder %s32, 1
      %p276 = por %p274, %p275
      %p278 = scmp.ne.s32.totalorder %s261, %s277
      %p279 = scmp.eq.s32.totalorder %s32, 0
      %p280 = por %p278, %p279
      %s281 = ssub.s32 %s34, %s41
      %p282 = scmp.eq.s32.totalorder %s281, 0
      %s284 = sadd.s32 %s283, 1
      %s285 = scalar_select %p282, %s283, %s284
      %p288 = pneg %p282
      %p289 = scmp.eq.s32.totalorder %s26, 1
      %p290 = por %p288, %p289
      %p291 = scmp.ne.s32.totalorder %s283, %s286
      %p292 = scmp.eq.s32.totalorder %s26, 0
      %p293 = por %p291, %p292
      %p294 = scmp.ne.s32.totalorder %s283, %s286
      %p295 = scmp.eq.s32.totalorder %s31, 1
      %p296 = por %p294, %p295
      %p297 = scmp.ne.s32.totalorder %s286, %s287
      %p298 = scmp.eq.s32.totalorder %s31, 0
      %p299 = por %p297, %p298
      %p300 = scmp.ne.s32.totalorder %s286, %s287
      %p301 = scmp.eq.s32.totalorder %s32, 1
      %p302 = por %p300, %p301
      %p304 = scmp.ne.s32.totalorder %s287, %s303
      %p305 = scmp.eq.s32.totalorder %s32, 0
      %p306 = por %p304, %p305
      %s307 = ssub.s32 %s34, %s41
      %p308 = scmp.eq.s32.totalorder %s307, 0
      %s310 = sadd.s32 %s309, 1
      %s311 = scalar_select %p308, %s309, %s310
      %p314 = pneg %p308
      %p315 = scmp.eq.s32.totalorder %s26, 1
      %p316 = por %p314, %p315
      %p317 = scmp.ne.s32.totalorder %s309, %s312
      %p318 = scmp.eq.s32.totalorder %s26, 0
      %p319 = por %p317, %p318
      %p320 = scmp.ne.s32.totalorder %s309, %s312
      %p321 = scmp.eq.s32.totalorder %s31, 1
      %p322 = por %p320, %p321
      %p323 = scmp.ne.s32.totalorder %s312, %s313
      %p324 = scmp.eq.s32.totalorder %s31, 0
      %p325 = por %p323, %p324
      %p326 = scmp.ne.s32.totalorder %s312, %s313
      %p327 = scmp.eq.s32.totalorder %s32, 1
      %p328 = por %p326, %p327
      %p330 = scmp.ne.s32.totalorder %s313, %s329
      %p331 = scmp.eq.s32.totalorder %s32, 0
      %p332 = por %p330, %p331
      %s333 = ssub.s32 %s34, %s41
      %p334 = scmp.eq.s32.totalorder %s333, 0
      %s336 = sadd.s32 %s335, 1
      %s337 = scalar_select %p334, %s335, %s336
      %p340 = pneg %p334
      %p341 = scmp.eq.s32.totalorder %s26, 1
      %p342 = por %p340, %p341
      %p343 = scmp.ne.s32.totalorder %s335, %s338
      %p344 = scmp.eq.s32.totalorder %s26, 0
      %p345 = por %p343, %p344
      %p346 = scmp.ne.s32.totalorder %s335, %s338
      %p347 = scmp.eq.s32.totalorder %s31, 1
      %p348 = por %p346, %p347
      %p349 = scmp.ne.s32.totalorder %s338, %s339
      %p350 = scmp.eq.s32.totalorder %s31, 0
      %p351 = por %p349, %p350
      %p352 = scmp.ne.s32.totalorder %s338, %s339
      %p353 = scmp.eq.s32.totalorder %s32, 1
      %p354 = por %p352, %p353
      %p356 = scmp.ne.s32.totalorder %s339, %s355
      %p357 = scmp.eq.s32.totalorder %s32, 0
      %p358 = por %p356, %p357
      %s359 = ssub.s32 %s34, %s41
      %p360 = scmp.eq.s32.totalorder %s359, 0
      %s362 = sadd.s32 %s361, 1
      %s363 = scalar_select %p360, %s361, %s362
      %p366 = pneg %p360
      %p367 = scmp.eq.s32.totalorder %s26, 1
      %p368 = por %p366, %p367
      %p369 = scmp.ne.s32.totalorder %s361, %s364
      %p370 = scmp.eq.s32.totalorder %s26, 0
      %p371 = por %p369, %p370
      %p372 = scmp.ne.s32.totalorder %s361, %s364
      %p373 = scmp.eq.s32.totalorder %s31, 1
      %p374 = por %p372, %p373
      %p375 = scmp.ne.s32.totalorder %s364, %s365
      %p376 = scmp.eq.s32.totalorder %s31, 0
      %p377 = por %p375, %p376
      %p378 = scmp.ne.s32.totalorder %s364, %s365
      %p379 = scmp.eq.s32.totalorder %s32, 1
      %p380 = por %p378, %p379
      %p382 = scmp.ne.s32.totalorder %s365, %s381
      %p383 = scmp.eq.s32.totalorder %s32, 0
      %p384 = por %p382, %p383
      %s385 = ssub.s32 %s34, %s41
      %p386 = scmp.eq.s32.totalorder %s385, 0
      %s388 = sadd.s32 %s387, 1
      %s389 = scalar_select %p386, %s387, %s388
      %p392 = pneg %p386
      %p393 = scmp.eq.s32.totalorder %s26, 1
      %p394 = por %p392, %p393
      %p395 = scmp.ne.s32.totalorder %s387, %s390
      %p396 = scmp.eq.s32.totalorder %s26, 0
      %p397 = por %p395, %p396
      %p398 = scmp.ne.s32.totalorder %s387, %s390
      %p399 = scmp.eq.s32.totalorder %s31, 1
      %p400 = por %p398, %p399
      %p401 = scmp.ne.s32.totalorder %s390, %s391
      %p402 = scmp.eq.s32.totalorder %s31, 0
      %p403 = por %p401, %p402
      %p404 = scmp.ne.s32.totalorder %s390, %s391
      %p405 = scmp.eq.s32.totalorder %s32, 1
      %p406 = por %p404, %p405
      %p408 = scmp.ne.s32.totalorder %s391, %s407
      %p409 = scmp.eq.s32.totalorder %s32, 0
      %p410 = por %p408, %p409
      %s411 = ssub.s32 %s34, %s41
      %p412 = scmp.eq.s32.totalorder %s411, 0
      %s414 = sadd.s32 %s413, 1
      %s415 = scalar_select %p412, %s413, %s414
      %p418 = pneg %p412
      %p419 = scmp.eq.s32.totalorder %s26, 1
      %p420 = por %p418, %p419
      %p421 = scmp.ne.s32.totalorder %s413, %s416
      %p422 = scmp.eq.s32.totalorder %s26, 0
      %p423 = por %p421, %p422
      %p424 = scmp.ne.s32.totalorder %s413, %s416
      %p425 = scmp.eq.s32.totalorder %s31, 1
      %p426 = por %p424, %p425
      %p427 = scmp.ne.s32.totalorder %s416, %s417
      %p428 = scmp.eq.s32.totalorder %s31, 0
      %p429 = por %p427, %p428
      %p430 = scmp.ne.s32.totalorder %s416, %s417
      %p431 = scmp.eq.s32.totalorder %s32, 1
      %p432 = por %p430, %p431
      %p434 = scmp.ne.s32.totalorder %s417, %s433
      %p435 = scmp.eq.s32.totalorder %s32, 0
      %p436 = por %p434, %p435
      %s437 = ssub.s32 %s34, %s41
      %p438 = scmp.eq.s32.totalorder %s437, 0
      %s440 = sadd.s32 %s439, 1
      %s441 = scalar_select %p438, %s439, %s440
      %p444 = pneg %p438
      %p445 = scmp.eq.s32.totalorder %s26, 1
      %p446 = por %p444, %p445
      %p447 = scmp.ne.s32.totalorder %s439, %s442
      %p448 = scmp.eq.s32.totalorder %s26, 0
      %p449 = por %p447, %p448
      %p450 = scmp.ne.s32.totalorder %s439, %s442
      %p451 = scmp.eq.s32.totalorder %s31, 1
      %p452 = por %p450, %p451
      %p453 = scmp.ne.s32.totalorder %s442, %s443
      %p454 = scmp.eq.s32.totalorder %s31, 0
      %p455 = por %p453, %p454
      %p456 = scmp.ne.s32.totalorder %s442, %s443
      %p457 = scmp.eq.s32.totalorder %s32, 1
      %p458 = por %p456, %p457
      %p460 = scmp.ne.s32.totalorder %s443, %s459
      %p461 = scmp.eq.s32.totalorder %s32, 0
      %p462 = por %p460, %p461
      %s463 = ssub.s32 %s34, %s41
      %p464 = scmp.eq.s32.totalorder %s463, 0
      %s466 = sadd.s32 %s465, 1
      %s467 = scalar_select %p464, %s465, %s466
      %p470 = pneg %p464
      %p471 = scmp.eq.s32.totalorder %s26, 1
      %p472 = por %p470, %p471
      %p473 = scmp.ne.s32.totalorder %s465, %s468
      %p474 = scmp.eq.s32.totalorder %s26, 0
      %p475 = por %p473, %p474
      %p476 = scmp.ne.s32.totalorder %s465, %s468
      %p477 = scmp.eq.s32.totalorder %s31, 1
      %p478 = por %p476, %p477
      %p479 = scmp.ne.s32.totalorder %s468, %s469
      %p480 = scmp.eq.s32.totalorder %s31, 0
      %p481 = por %p479, %p480
      %p482 = scmp.ne.s32.totalorder %s468, %s469
      %p483 = scmp.eq.s32.totalorder %s32, 1
      %p484 = por %p482, %p483
      %p486 = scmp.ne.s32.totalorder %s469, %s485
      %p487 = scmp.eq.s32.totalorder %s32, 0
      %p488 = por %p486, %p487
      %s490 = sadd.s32 %s489, 1
      %p493 = scmp.eq.s32.totalorder %s26, 1
      %p494 = scmp.ne.s32.totalorder %s489, %s491
      %p495 = scmp.eq.s32.totalorder %s26, 0
      %p496 = por %p494, %p495
      %p497 = scmp.ne.s32.totalorder %s489, %s491
      %p498 = scmp.eq.s32.totalorder %s31, 1
      %p499 = por %p497, %p498
      %p500 = scmp.ne.s32.totalorder %s491, %s492
      %p501 = scmp.eq.s32.totalorder %s31, 0
      %p502 = por %p500, %p501
      %p503 = scmp.ne.s32.totalorder %s491, %s492
      %p504 = scmp.eq.s32.totalorder %s32, 1
      %p505 = por %p503, %p504
      %p507 = scmp.ne.s32.totalorder %s492, %s506
      %p508 = scmp.eq.s32.totalorder %s32, 0
      %p509 = por %p507, %p508
      %s510 = ssub.s32 %s33, %s45
      %p511 = scmp.eq.s32.totalorder %s510, 0
      %s513 = sadd.s32 %s512, 1
      %s514 = scalar_select %p511, %s512, %s513
      %p517 = pneg %p511
      %p518 = scmp.eq.s32.totalorder %s26, 1
      %p519 = por %p517, %p518
      %p520 = scmp.ne.s32.totalorder %s512, %s515
      %p521 = scmp.eq.s32.totalorder %s26, 0
      %p522 = por %p520, %p521
      %p523 = scmp.ne.s32.totalorder %s512, %s515
      %p524 = scmp.eq.s32.totalorder %s31, 1
      %p525 = por %p523, %p524
      %p526 = scmp.ne.s32.totalorder %s515, %s516
      %p527 = scmp.eq.s32.totalorder %s31, 0
      %p528 = por %p526, %p527
      %p529 = scmp.ne.s32.totalorder %s515, %s516
      %p530 = scmp.eq.s32.totalorder %s32, 1
      %p531 = por %p529, %p530
      %p533 = scmp.ne.s32.totalorder %s516, %s532
      %p534 = scmp.eq.s32.totalorder %s32, 0
      %p535 = por %p533, %p534
      %p536 = scmp.le.s32.totalorder 1, %s26
      %p537 = scmp.lt.s32.totalorder %s26, 3
      %p538 = pnand %p536, %p537
      %p539 = pneg %p538
      // Predicated region
      $region9: #{slr_forward.1} parent=5 // pred_check
        _
      $region10: #{slr_forward.1} parent=5 // pred_check_branch
        %541 = sbr.rel (%p538) target = $region12
      $region11: #{slr_forward.1} parent=5 // pred_region
        %s542 = ssub.s32 %s26, 1
        // Predicated region
        $region13: #{slr_forward.1} parent=11 // pred_check
          %p543 = pneg %p64
        $region14: #{slr_forward.1} parent=11 // pred_check_branch
          %545 = sbr.rel (%p543) target = $region16
        $region15: #{slr_forward.1} parent=11 // pred_region
          %s546 = smul.u32 2, %s35
          %p547 = scmp.lt.s32.totalorder %s546, 1
          %s548 = scalar_select %p547, %s546, 1
          %s549 = smul.addr %s548, 8
          %s550 = scalar_lea.vmem %s0, %s549
          %s551 = smul.u32 2, %s35
        $region16: #{slr_forward.1} parent=11 // pred_fallthru
          _
        // Predicated region
        $region17: #{slr_forward.1} parent=11 // pred_check
          %p552 = pneg %p90
        $region18: #{slr_forward.1} parent=11 // pred_check_branch
          %554 = sbr.rel (%p552) target = $region20
        $region19: #{slr_forward.1} parent=11 // pred_region
          %s555 = smul.u32 2, %s35
          %p556 = scmp.lt.s32.totalorder %s555, 1
          %s557 = scalar_select %p556, %s555, 1
          %s558 = smul.addr %s557, 8
          %s559 = scalar_lea.vmem %s1, %s558
          %s560 = smul.u32 2, %s35
        $region20: #{slr_forward.1} parent=11 // pred_fallthru
          _
        // Predicated region
        $region21: #{slr_forward.1} parent=11 // pred_check
          %p561 = pneg %p116
        $region22: #{slr_forward.1} parent=11 // pred_check_branch
          %563 = sbr.rel (%p561) target = $region24
        $region23: #{slr_forward.1} parent=11 // pred_region
          %s564 = smul.u32 2, %s35
          %p565 = scmp.lt.s32.totalorder %s564, 1
          %s566 = scalar_select %p565, %s564, 1
          %s567 = smul.addr %s566, 8
          %s568 = scalar_lea.vmem %s2, %s567
          %s569 = smul.u32 2, %s35
        $region24: #{slr_forward.1} parent=11 // pred_fallthru
          _
        // Predicated region
        $region25: #{slr_forward.1} parent=11 // pred_check
          %p570 = pneg %p142
        $region26: #{slr_forward.1} parent=11 // pred_check_branch
          %572 = sbr.rel (%p570) target = $region28
        $region27: #{slr_forward.1} parent=11 // pred_region
          %s573 = smul.u32 2, %s35
          %p574 = scmp.lt.s32.totalorder %s573, 1
          %s575 = scalar_select %p574, %s573, 1
          %s576 = smul.addr %s575, 8
          %s577 = scalar_lea.vmem %s3, %s576
          %s578 = smul.u32 2, %s35
        $region28: #{slr_forward.1} parent=11 // pred_fallthru
          _
        // Predicated region
        $region29: #{slr_forward.1} parent=11 // pred_check
          %p579 = pneg %p163
        $region30: #{slr_forward.1} parent=11 // pred_check_branch
          %581 = sbr.rel (%p579) target = $region32
        $region31: #{slr_forward.1} parent=11 // pred_region
          _
        $region32: #{slr_forward.1} parent=11 // pred_fallthru
          _
        // Predicated region
        $region33: #{slr_forward.1} parent=11 // pred_check
          %p582 = pneg %p184
        $region34: #{slr_forward.1} parent=11 // pred_check_branch
          %584 = sbr.rel (%p582) target = $region36
        $region35: #{slr_forward.1} parent=11 // pred_region
          _
        $region36: #{slr_forward.1} parent=11 // pred_fallthru
          _
        // Predicated region
        $region37: #{slr_forward.1} parent=11 // pred_check
          %p585 = pneg %p205
        $region38: #{slr_forward.1} parent=11 // pred_check_branch
          %587 = sbr.rel (%p585) target = $region40
        $region39: #{slr_forward.1} parent=11 // pred_region
          _
        $region40: #{slr_forward.1} parent=11 // pred_fallthru
          _
        // Predicated region
        $region41: #{slr_forward.1} parent=11 // pred_check
          %p588 = pneg %p226
        $region42: #{slr_forward.1} parent=11 // pred_check_branch
          %590 = sbr.rel (%p588) target = $region44
        $region43: #{slr_forward.1} parent=11 // pred_region
          _
        $region44: #{slr_forward.1} parent=11 // pred_fallthru
          _
        // Predicated region
        $region45: #{slr_forward.1} parent=11 // pred_check
          %p591 = pneg %p247
        $region46: #{slr_forward.1} parent=11 // pred_check_branch
          %593 = sbr.rel (%p591) target = $region48
        $region47: #{slr_forward.1} parent=11 // pred_region
          _
        $region48: #{slr_forward.1} parent=11 // pred_fallthru
          _
        // Predicated region
        $region49: #{slr_forward.1} parent=11 // pred_check
          %p594 = pneg %p502
        $region50: #{slr_forward.1} parent=11 // pred_check_branch
          %596 = sbr.rel (%p594) target = $region52
        $region51: #{slr_forward.1} parent=11 // pred_region
          _
        $region52: #{slr_forward.1} parent=11 // pred_fallthru
          _
      $region12: #{slr_forward.1} parent=5 // pred_fallthru
        _
      %p597 = scmp.lt.s32.totalorder %s26, 2
      // Predicated region
      $region53: #{slr_forward.1} parent=5 // pred_check
        %p598 = pneg %p597
      $region54: #{slr_forward.1} parent=5 // pred_check_branch
        %600 = sbr.rel (%p598) target = $region56
      $region55: #{slr_forward.1} parent=5 // pred_region
        // Predicated region
        $region57: #{slr_forward.1} parent=55 // pred_check
          %p601 = pneg %p267
        $region58: #{slr_forward.1} parent=55 // pred_check_branch
          %603 = sbr.rel (%p601) target = $region60
        $region59: #{slr_forward.1} parent=55 // pred_region
          %p604 = scmp.lt.s32.totalorder %s34, 1
          %s605 = scalar_select %p604, %s34, 1
          %s606 = smul.addr %s605, 4
          %s607 = scalar_lea.vmem %s9, %s606
        $region60: #{slr_forward.1} parent=55 // pred_fallthru
          _
        // Predicated region
        $region61: #{slr_forward.1} parent=55 // pred_check
          %p608 = pneg %p293
        $region62: #{slr_forward.1} parent=55 // pred_check_branch
          %610 = sbr.rel (%p608) target = $region64
        $region63: #{slr_forward.1} parent=55 // pred_region
          %p611 = scmp.lt.s32.totalorder %s34, 1
          %s612 = scalar_select %p611, %s34, 1
          %s613 = smul.addr %s612, 48
          %s614 = smul.addr %s613, 4
          %s615 = scalar_lea.vmem %s10, %s614
        $region64: #{slr_forward.1} parent=55 // pred_fallthru
          _
        // Predicated region
        $region65: #{slr_forward.1} parent=55 // pred_check
          %p616 = pneg %p319
        $region66: #{slr_forward.1} parent=55 // pred_check_branch
          %618 = sbr.rel (%p616) target = $region68
        $region67: #{slr_forward.1} parent=55 // pred_region
          %p619 = scmp.lt.s32.totalorder %s34, 1
          %s620 = scalar_select %p619, %s34, 1
          %s621 = smul.addr %s620, 3
          %s622 = scalar_lea.vmem %s11, %s621
        $region68: #{slr_forward.1} parent=55 // pred_fallthru
          _
        // Predicated region
        $region69: #{slr_forward.1} parent=55 // pred_check
          %p623 = pneg %p345
        $region70: #{slr_forward.1} parent=55 // pred_check_branch
          %625 = sbr.rel (%p623) target = $region72
        $region71: #{slr_forward.1} parent=55 // pred_region
          %p626 = scmp.lt.s32.totalorder %s34, 1
          %s627 = scalar_select %p626, %s34, 1
          %s628 = smul.addr %s627, 16
          %s629 = smul.addr %s628, 4
          %s630 = scalar_lea.vmem %s12, %s629
        $region72: #{slr_forward.1} parent=55 // pred_fallthru
          _
        // Predicated region
        $region73: #{slr_forward.1} parent=55 // pred_check
          %p631 = pneg %p371
        $region74: #{slr_forward.1} parent=55 // pred_check_branch
          %633 = sbr.rel (%p631) target = $region76
        $region75: #{slr_forward.1} parent=55 // pred_region
          %p634 = scmp.lt.s32.totalorder %s34, 1
          %s635 = scalar_select %p634, %s34, 1
          %s636 = scalar_lea.vmem %s13, %s635
        $region76: #{slr_forward.1} parent=55 // pred_fallthru
          _
        // Predicated region
        $region77: #{slr_forward.1} parent=55 // pred_check
          %p637 = pneg %p397
        $region78: #{slr_forward.1} parent=55 // pred_check_branch
          %639 = sbr.rel (%p637) target = $region80
        $region79: #{slr_forward.1} parent=55 // pred_region
          %p640 = scmp.lt.s32.totalorder %s34, 1
          %s641 = scalar_select %p640, %s34, 1
          %s642 = smul.addr %s641, 64
          %s643 = smul.addr %s642, 4
          %s644 = scalar_lea.vmem %s14, %s643
        $region80: #{slr_forward.1} parent=55 // pred_fallthru
          _
        // Predicated region
        $region81: #{slr_forward.1} parent=55 // pred_check
          %p645 = pneg %p423
        $region82: #{slr_forward.1} parent=55 // pred_check_branch
          %647 = sbr.rel (%p645) target = $region84
        $region83: #{slr_forward.1} parent=55 // pred_region
          %p648 = scmp.lt.s32.totalorder %s34, 1
          %s649 = scalar_select %p648, %s34, 1
          %s650 = smul.addr %s649, 4
          %s651 = scalar_lea.vmem %s15, %s650
        $region84: #{slr_forward.1} parent=55 // pred_fallthru
          _
        // Predicated region
        $region85: #{slr_forward.1} parent=55 // pred_check
          %p652 = pneg %p449
        $region86: #{slr_forward.1} parent=55 // pred_check_branch
          %654 = sbr.rel (%p652) target = $region88
        $region87: #{slr_forward.1} parent=55 // pred_region
          %p655 = scmp.lt.s32.totalorder %s34, 1
          %s656 = scalar_select %p655, %s34, 1
          %s657 = smul.addr %s656, 64
          %s658 = smul.addr %s657, 4
          %s659 = scalar_lea.vmem %s16, %s658
        $region88: #{slr_forward.1} parent=55 // pred_fallthru
          _
        // Predicated region
        $region89: #{slr_forward.1} parent=55 // pred_check
          %p660 = pneg %p475
        $region90: #{slr_forward.1} parent=55 // pred_check_branch
          %662 = sbr.rel (%p660) target = $region92
        $region91: #{slr_forward.1} parent=55 // pred_region
          %p663 = scmp.lt.s32.totalorder %s34, 1
          %s664 = scalar_select %p663, %s34, 1
          %s665 = scalar_lea.vmem %s17, %s664
        $region92: #{slr_forward.1} parent=55 // pred_fallthru
          _
      $region56: #{slr_forward.1} parent=5 // pred_fallthru
        _
      %p666 = scmp.le.s32.totalorder 1, %s26
      %p667 = scmp.lt.s32.totalorder %s26, 3
      %p668 = pnand %p666, %p667
      %p669 = pneg %p668
      // Predicated region
      $region93: #{slr_forward.1} parent=5 // pred_check
        _
      $region94: #{slr_forward.1} parent=5 // pred_check_branch
        %671 = sbr.rel (%p668) target = $region96
      $region95: #{slr_forward.1} parent=5 // pred_region
        %s672 = ssub.s32 %s26, 1
        %s673 = smul.u32 2, %s35
        %p674 = scmp.lt.s32.totalorder %s673, 1
        %s675 = scalar_select %p674, %s673, 1
        %s676 = smul.addr %s675, 8
        %s677 = scalar_lea.vmem %s0, %s676
        %p678 = pneg %p64
        %p679 = pneg %p61
        %s680 = smul.u32 2, %s35
        %p681 = scmp.lt.s32.totalorder %s680, 1
        %s682 = scalar_select %p681, %s680, 1
        %s683 = smul.addr %s682, 8
        %s684 = scalar_lea.vmem %s1, %s683
        %p685 = pneg %p90
        %p686 = pneg %p87
        %s687 = smul.u32 2, %s35
        %p688 = scmp.lt.s32.totalorder %s687, 1
        %s689 = scalar_select %p688, %s687, 1
        %s690 = smul.addr %s689, 8
        %s691 = scalar_lea.vmem %s2, %s690
        %p692 = pneg %p116
        %p693 = pneg %p113
        %s694 = smul.u32 2, %s35
        %p695 = scmp.lt.s32.totalorder %s694, 1
        %s696 = scalar_select %p695, %s694, 1
        %s697 = smul.addr %s696, 8
        %s698 = scalar_lea.vmem %s3, %s697
        %p699 = pneg %p142
        %p700 = pneg %p139
        %p701 = pneg %p163
        %p702 = pneg %p160
        %p703 = pneg %p184
        %p704 = pneg %p181
        %p705 = pneg %p205
        %p706 = pneg %p202
        %p707 = pneg %p226
        %p708 = pneg %p223
        %p709 = pneg %p247
        %p710 = pneg %p244
        %p711 = scmp.lt.s32.totalorder %s36, 1
        %s712 = scalar_select %p711, %s36, 1
        %s713 = smul.addr %s712, 4
        %s714 = scalar_lea.vmem %s9, %s713
        %p715 = pneg %p273
        %p716 = pneg %p270
        %p717 = scmp.lt.s32.totalorder %s36, 1
        %s718 = scalar_select %p717, %s36, 1
        %s719 = smul.addr %s718, 48
        %s720 = smul.addr %s719, 4
        %s721 = scalar_lea.vmem %s10, %s720
        %p722 = pneg %p299
        %p723 = pneg %p296
        %p724 = scmp.lt.s32.totalorder %s36, 1
        %s725 = scalar_select %p724, %s36, 1
        %s726 = smul.addr %s725, 3
        %s727 = scalar_lea.vmem %s11, %s726
        %p728 = pneg %p325
        %p729 = pneg %p322
        %p730 = scmp.lt.s32.totalorder %s36, 1
        %s731 = scalar_select %p730, %s36, 1
        %s732 = smul.addr %s731, 16
        %s733 = smul.addr %s732, 4
        %s734 = scalar_lea.vmem %s12, %s733
        %p735 = pneg %p351
        %p736 = pneg %p348
        %p737 = scmp.lt.s32.totalorder %s36, 1
        %s738 = scalar_select %p737, %s36, 1
        %s739 = scalar_lea.vmem %s13, %s738
        %p740 = pneg %p377
        %p741 = pneg %p374
        %p742 = scmp.lt.s32.totalorder %s36, 1
        %s743 = scalar_select %p742, %s36, 1
        %s744 = smul.addr %s743, 64
        %s745 = smul.addr %s744, 4
        %s746 = scalar_lea.vmem %s14, %s745
        %p747 = pneg %p403
        %p748 = pneg %p400
        %p749 = scmp.lt.s32.totalorder %s36, 1
        %s750 = scalar_select %p749, %s36, 1
        %s751 = smul.addr %s750, 4
        %s752 = scalar_lea.vmem %s15, %s751
        %p753 = pneg %p429
        %p754 = pneg %p426
        %p755 = scmp.lt.s32.totalorder %s36, 1
        %s756 = scalar_select %p755, %s36, 1
        %s757 = smul.addr %s756, 64
        %s758 = smul.addr %s757, 4
        %s759 = scalar_lea.vmem %s16, %s758
        %p760 = pneg %p455
        %p761 = pneg %p452
        %p762 = scmp.lt.s32.totalorder %s36, 1
        %s763 = scalar_select %p762, %s36, 1
        %s764 = scalar_lea.vmem %s17, %s763
        %p765 = pneg %p481
        %p766 = pneg %p478
        %p767 = pneg %p502
        %p768 = pneg %p499
        %p769 = pneg %p528
        %p770 = pneg %p525
        %s771 = smul.u32 2, %s35
        %p772 = scmp.lt.s32.totalorder %s771, 1
        %s773 = scalar_select %p772, %s771, 1
        %s774 = smul.addr %s773, 8
        %s775 = scalar_lea.vmem %s0, %s774
        %s776 = smul.u32 2, %s35
        %s777 = smul.u32 2, %s35
        %p778 = scmp.lt.s32.totalorder %s777, 1
        %s779 = scalar_select %p778, %s777, 1
        %s780 = smul.addr %s779, 8
        %s781 = scalar_lea.vmem %s1, %s780
        %s782 = smul.u32 2, %s35
        %s783 = smul.u32 2, %s35
        %p784 = scmp.lt.s32.totalorder %s783, 1
        %s785 = scalar_select %p784, %s783, 1
        %s786 = smul.addr %s785, 8
        %s787 = scalar_lea.vmem %s2, %s786
        %s788 = smul.u32 2, %s35
        %s789 = smul.u32 2, %s35
        %p790 = scmp.lt.s32.totalorder %s789, 1
        %s791 = scalar_select %p790, %s789, 1
        %s792 = smul.addr %s791, 8
        %s793 = scalar_lea.vmem %s3, %s792
        %s794 = smul.u32 2, %s35
        %p795 = scmp.lt.s32.totalorder %s36, 1
        %s796 = scalar_select %p795, %s36, 1
        %s797 = smul.addr %s796, 4
        %s798 = scalar_lea.vmem %s9, %s797
        %p799 = scmp.lt.s32.totalorder %s36, 1
        %s800 = scalar_select %p799, %s36, 1
        %s801 = smul.addr %s800, 48
        %s802 = smul.addr %s801, 4
        %s803 = scalar_lea.vmem %s10, %s802
        %p804 = scmp.lt.s32.totalorder %s36, 1
        %s805 = scalar_select %p804, %s36, 1
        %s806 = smul.addr %s805, 3
        %s807 = scalar_lea.vmem %s11, %s806
        %p808 = scmp.lt.s32.totalorder %s36, 1
        %s809 = scalar_select %p808, %s36, 1
        %s810 = smul.addr %s809, 16
        %s811 = smul.addr %s810, 4
        %s812 = scalar_lea.vmem %s12, %s811
        %p813 = scmp.lt.s32.totalorder %s36, 1
        %s814 = scalar_select %p813, %s36, 1
        %s815 = scalar_lea.vmem %s13, %s814
        %p816 = scmp.lt.s32.totalorder %s36, 1
        %s817 = scalar_select %p816, %s36, 1
        %s818 = smul.addr %s817, 64
        %s819 = smul.addr %s818, 4
        %s820 = scalar_lea.vmem %s14, %s819
        %p821 = scmp.lt.s32.totalorder %s36, 1
        %s822 = scalar_select %p821, %s36, 1
        %s823 = smul.addr %s822, 4
        %s824 = scalar_lea.vmem %s15, %s823
        %p825 = scmp.lt.s32.totalorder %s36, 1
        %s826 = scalar_select %p825, %s36, 1
        %s827 = smul.addr %s826, 64
        %s828 = smul.addr %s827, 4
        %s829 = scalar_lea.vmem %s16, %s828
        %p830 = scmp.lt.s32.totalorder %s36, 1
        %s831 = scalar_select %p830, %s36, 1
        %s832 = scalar_lea.vmem %s17, %s831
        %p834 = scmp.eq.s32.totalorder %s36, 0
        // Predicated region
        $region97: #{slr_forward.1} parent=95 // pred_check
          %p835 = pneg %p834
        $region98: #{slr_forward.1} parent=95 // pred_check_branch
          %837 = sbr.rel (%p835) target = $region100
        $region99: #{slr_forward.1} parent=95 // pred_region
          %v838 = vld [vmem:[%s775] sm:$0xff]
          %v839 = vld [vmem:[%s775 + $0x8] sm:$0xff]
          %v840 = vld [vmem:[%s4] sm:$0xff]
          %v841 = vld [vmem:[%s4 + $0x8] sm:$0xff]
          %v842 = vld [vmem:[%s4 + $0x10] sm:$0xff]
          %v843 = vld [vmem:[%s781] sm:$0xff]
          %v844 = vld [vmem:[%s781 + $0x8] sm:$0xff]
          %v845 = vld [vmem:[%s5] sm:$0xff]
          %vm846 = vcmask 64512
          %v848 = vsel %vm846, %v843, 0
          %v851 = vsel %vm846, %v844, 0
          %853 = vmatprep.subr.mxu0 0.0
          %854 = vmatpush1.msra.mxu0 %v845
          %855 = vmatprep.subr.mxu0 0.0
          %856 = vmatpush1.msra.mxu0 0.0
          %857 = vmatprep.subr.mxu0 0.0
          %858 = vmatpush1.msra.mxu0 0.0
          %859 = vmatprep.subr.mxu0 0.0
          %860 = vmatpush1.msra.mxu0 0.0
          %861 = vmatprep.subr.mxu0 0.0
          %862 = vmatpush1.msra.mxu0 0.0
          %863 = vmatprep.subr.mxu0 0.0
          %864 = vmatpush1.msra.mxu0 0.0
          %865 = vmatprep.subr.mxu0 0.0
          %866 = vmatpush1.msra.mxu0 0.0
          %867 = vmatprep.subr.mxu0 0.0
          %868 = vmatpush1.msra.mxu0 0.0
          %869 = vmatprep.subr.mxu0 0.0
          %870 = vmatpush1.msra.mxu0 0.0
          %871 = vmatprep.subr.mxu0 0.0
          %872 = vmatpush1.msra.mxu0 0.0
          %873 = vmatprep.subr.mxu0 0.0
          %874 = vmatpush1.msra.mxu0 0.0
          %875 = vmatprep.subr.mxu0 0.0
          %876 = vmatpush1.msra.mxu0 0.0
          %877 = vmatprep.subr.mxu0 0.0
          %878 = vmatpush1.msra.mxu0 0.0
          %879 = vmatprep.subr.mxu0 0.0
          %880 = vmatpush1.msra.mxu0 0.0
          %881 = vmatprep.subr.mxu0 0.0
          %882 = vmatpush1.msra.mxu0 0.0
          %883 = vmatprep.subr.mxu0 0.0
          %884 = vmatpush1.msra.mxu0 0.0
          %885 = vmatprep.subr.mxu0 0.0
          %886 = vmatpush1.msra.mxu0 0.0
          %887 = vmatprep.subr.mxu0 0.0
          %888 = vmatpush1.msra.mxu0 0.0
          %889 = vmatprep.subr.mxu0 0.0
          %890 = vmatpush1.msra.mxu0 0.0
          %891 = vmatprep.subr.mxu0 0.0
          %892 = vmatpush1.msra.mxu0 0.0
          %893 = vmatprep.subr.mxu0 0.0
          %894 = vmatpush1.msra.mxu0 0.0
          %895 = vmatprep.subr.mxu0 0.0
          %896 = vmatpush1.msra.mxu0 0.0
          %897 = vmatprep.subr.mxu0 0.0
          %898 = vmatpush1.msra.mxu0 0.0
          %899 = vmatprep.subr.mxu0 0.0
          %900 = vmatpush1.msra.mxu0 0.0
          %901 = vmatprep.subr.mxu0 0.0
          %902 = vmatpush1.msra.mxu0 0.0
          %903 = vmatprep.subr.mxu0 0.0
          %904 = vmatpush1.msra.mxu0 0.0
          %905 = vmatprep.subr.mxu0 0.0
          %906 = vmatpush1.msra.mxu0 0.0
          %907 = vmatprep.subr.mxu0 0.0
          %908 = vmatpush1.msra.mxu0 0.0
          %909 = vmatprep.subr.mxu0 0.0
          %910 = vmatpush1.msra.mxu0 0.0
          %911 = vmatprep.subr.mxu0 0.0
          %912 = vmatpush1.msra.mxu0 0.0
          %913 = vmatprep.subr.mxu0 0.0
          %914 = vmatpush1.msra.mxu0 0.0
          %915 = vmatprep.subr.mxu0 0.0
          %916 = vmatpush1.msra.mxu0 0.0
          %917 = vmatprep.mubr.f32.mxu0 0.0
          %918 = vmatmul.mubr.f32.gmra.mrb[0].mxu0 %v848
          %v919 = vpop.f32.mrb[0].mxu0
          %v920 = vadd.f32 0.0, %v919
          %v921 = vpop.f32.mrb[0].mxu0
          %922 = vmatprep.mubr.f32.mxu0 0.0
          %923 = vmatmul.mubr.f32.gmra.mrb[0].mxu0 %v851
          %v924 = vpop.f32.mrb[0].mxu0
          %v925 = vadd.f32 0.0, %v924
          %v926 = vpop.f32.mrb[0].mxu0
          %927 = vdwg.mxu0
          %vm928 = vcmask 195584
          %v930 = vsel %vm928, %v838, 0
          %v933 = vsel %vm928, %v839, 0
          %935 = vmatprep.subr.mxu0 0.0
          %936 = vmatpush1.msra.mxu0 %v840
          %937 = vmatprep.subr.mxu0 0.0
          %938 = vmatpush1.msra.mxu0 %v841
          %939 = vmatprep.subr.mxu0 0.0
          %940 = vmatpush1.msra.mxu0 %v842
          %941 = vmatprep.subr.mxu0 0.0
          %942 = vmatpush1.msra.mxu0 0.0
          %943 = vmatprep.subr.mxu0 0.0
          %944 = vmatpush1.msra.mxu0 0.0
          %945 = vmatprep.subr.mxu0 0.0
          %946 = vmatpush1.msra.mxu0 0.0
          %947 = vmatprep.subr.mxu0 0.0
          %948 = vmatpush1.msra.mxu0 0.0
          %949 = vmatprep.subr.mxu0 0.0
          %950 = vmatpush1.msra.mxu0 0.0
          %951 = vmatprep.subr.mxu0 0.0
          %952 = vmatpush1.msra.mxu0 0.0
          %953 = vmatprep.subr.mxu0 0.0
          %954 = vmatpush1.msra.mxu0 0.0
          %955 = vmatprep.subr.mxu0 0.0
          %956 = vmatpush1.msra.mxu0 0.0
          %957 = vmatprep.subr.mxu0 0.0
          %958 = vmatpush1.msra.mxu0 0.0
          %959 = vmatprep.subr.mxu0 0.0
          %960 = vmatpush1.msra.mxu0 0.0
          %961 = vmatprep.subr.mxu0 0.0
          %962 = vmatpush1.msra.mxu0 0.0
          %963 = vmatprep.subr.mxu0 0.0
          %964 = vmatpush1.msra.mxu0 0.0
          %965 = vmatprep.subr.mxu0 0.0
          %966 = vmatpush1.msra.mxu0 0.0
          %967 = vmatprep.subr.mxu0 0.0
          %968 = vmatpush1.msra.mxu0 0.0
          %969 = vmatprep.subr.mxu0 0.0
          %970 = vmatpush1.msra.mxu0 0.0
          %971 = vmatprep.subr.mxu0 0.0
          %972 = vmatpush1.msra.mxu0 0.0
          %973 = vmatprep.subr.mxu0 0.0
          %974 = vmatpush1.msra.mxu0 0.0
          %975 = vmatprep.subr.mxu0 0.0
          %976 = vmatpush1.msra.mxu0 0.0
          %977 = vmatprep.subr.mxu0 0.0
          %978 = vmatpush1.msra.mxu0 0.0
          %979 = vmatprep.subr.mxu0 0.0
          %980 = vmatpush1.msra.mxu0 0.0
          %981 = vmatprep.subr.mxu0 0.0
          %982 = vmatpush1.msra.mxu0 0.0
          %983 = vmatprep.subr.mxu0 0.0
          %984 = vmatpush1.msra.mxu0 0.0
          %985 = vmatprep.subr.mxu0 0.0
          %986 = vmatpush1.msra.mxu0 0.0
          %987 = vmatprep.subr.mxu0 0.0
          %988 = vmatpush1.msra.mxu0 0.0
          %989 = vmatprep.subr.mxu0 0.0
          %990 = vmatpush1.msra.mxu0 0.0
          %991 = vmatprep.subr.mxu0 0.0
          %992 = vmatpush1.msra.mxu0 0.0
          %993 = vmatprep.subr.mxu0 0.0
          %994 = vmatpush1.msra.mxu0 0.0
          %995 = vmatprep.subr.mxu0 0.0
          %996 = vmatpush1.msra.mxu0 0.0
          %997 = vmatprep.subr.mxu0 0.0
          %998 = vmatpush1.msra.mxu0 0.0
          %999 = vmatprep.mubr.f32.mxu0 0.0
          %1000 = vmatmul.mubr.f32.gmra.mrb[0].mxu0 %v930
          %v1001 = vpop.f32.mrb[0].mxu0
          %v1002 = vadd.f32 %v920, %v1001
          %v1003 = vpop.f32.mrb[0].mxu0
          %1004 = vmatprep.mubr.f32.mxu0 0.0
          %1005 = vmatmul.mubr.f32.gmra.mrb[0].mxu0 %v933
          %v1006 = vpop.f32.mrb[0].mxu0
          %v1007 = vadd.f32 %v925, %v1006
          %v1008 = vpop.f32.mrb[0].mxu0
          %1009 = vdwg.mxu0
          %v1010 = vsel %vm846, %v843, 0.0
          %1011 = vadd.xlane.f32.xlu0 %v1010
          %v1012 = vpop.xlane.xlu0 %1011
          %v1013 = vsel %vm846, %v844, 0.0
          %1014 = vadd.xlane.f32.xlu0 %v1013
          %v1015 = vpop.xlane.xlu0 %1014
          %v1016 = vadd.f32 %v1012, 1.0
          %v1017 = vadd.f32 %v1015, 1.0
          %v1018 = vrcp.pop %v1016
          %v1019 = vmul.f32 9.0, %v1018
          %v1020 = vrcp.pop %v1017
          %v1021 = vmul.f32 9.0, %v1020
          %v1022 = vmul.f32 %v1002, %v1019
          %v1023 = vmul.f32 %v1007, %v1021
          %v1024 = vmax.f32 %v1022, 0.0
          %v1025 = vmax.f32 %v1023, 0.0
          %v1026 = vld [vmem:[%s787] sm:$0xff]
          %v1027 = vld [vmem:[%s787 + $0x8] sm:$0xff]
          %v1028 = vld [vmem:[%s6] sm:$0xff]
          %v1029 = vld [vmem:[%s6 + $0x8] sm:$0xff]
          %v1030 = vld [vmem:[%s6 + $0x10] sm:$0xff]
          %v1031 = vld [vmem:[%s793] sm:$0xff]
          %v1032 = vld [vmem:[%s793 + $0x8] sm:$0xff]
          %v1033 = vld [vmem:[%s7] sm:$0xff]
          %v1035 = vsel %vm846, %v1031, 0
          %v1038 = vsel %vm846, %v1032, 0
          %1040 = vmatprep.subr.mxu0 0.0
          %1041 = vmatpush1.msra.mxu0 %v1033
          %1042 = vmatprep.subr.mxu0 0.0
          %1043 = vmatpush1.msra.mxu0 0.0
          %1044 = vmatprep.subr.mxu0 0.0
          %1045 = vmatpush1.msra.mxu0 0.0
          %1046 = vmatprep.subr.mxu0 0.0
          %1047 = vmatpush1.msra.mxu0 0.0
          %1048 = vmatprep.subr.mxu0 0.0
          %1049 = vmatpush1.msra.mxu0 0.0
          %1050 = vmatprep.subr.mxu0 0.0
          %1051 = vmatpush1.msra.mxu0 0.0
          %1052 = vmatprep.subr.mxu0 0.0
          %1053 = vmatpush1.msra.mxu0 0.0
          %1054 = vmatprep.subr.mxu0 0.0
          %1055 = vmatpush1.msra.mxu0 0.0
          %1056 = vmatprep.subr.mxu0 0.0
          %1057 = vmatpush1.msra.mxu0 0.0
          %1058 = vmatprep.subr.mxu0 0.0
          %1059 = vmatpush1.msra.mxu0 0.0
          %1060 = vmatprep.subr.mxu0 0.0
          %1061 = vmatpush1.msra.mxu0 0.0
          %1062 = vmatprep.subr.mxu0 0.0
          %1063 = vmatpush1.msra.mxu0 0.0
          %1064 = vmatprep.subr.mxu0 0.0
          %1065 = vmatpush1.msra.mxu0 0.0
          %1066 = vmatprep.subr.mxu0 0.0
          %1067 = vmatpush1.msra.mxu0 0.0
          %1068 = vmatprep.subr.mxu0 0.0
          %1069 = vmatpush1.msra.mxu0 0.0
          %1070 = vmatprep.subr.mxu0 0.0
          %1071 = vmatpush1.msra.mxu0 0.0
          %1072 = vmatprep.subr.mxu0 0.0
          %1073 = vmatpush1.msra.mxu0 0.0
          %1074 = vmatprep.subr.mxu0 0.0
          %1075 = vmatpush1.msra.mxu0 0.0
          %1076 = vmatprep.subr.mxu0 0.0
          %1077 = vmatpush1.msra.mxu0 0.0
          %1078 = vmatprep.subr.mxu0 0.0
          %1079 = vmatpush1.msra.mxu0 0.0
          %1080 = vmatprep.subr.mxu0 0.0
          %1081 = vmatpush1.msra.mxu0 0.0
          %1082 = vmatprep.subr.mxu0 0.0
          %1083 = vmatpush1.msra.mxu0 0.0
          %1084 = vmatprep.subr.mxu0 0.0
          %1085 = vmatpush1.msra.mxu0 0.0
          %1086 = vmatprep.subr.mxu0 0.0
          %1087 = vmatpush1.msra.mxu0 0.0
          %1088 = vmatprep.subr.mxu0 0.0
          %1089 = vmatpush1.msra.mxu0 0.0
          %1090 = vmatprep.subr.mxu0 0.0
          %1091 = vmatpush1.msra.mxu0 0.0
          %1092 = vmatprep.subr.mxu0 0.0
          %1093 = vmatpush1.msra.mxu0 0.0
          %1094 = vmatprep.subr.mxu0 0.0
          %1095 = vmatpush1.msra.mxu0 0.0
          %1096 = vmatprep.subr.mxu0 0.0
          %1097 = vmatpush1.msra.mxu0 0.0
          %1098 = vmatprep.subr.mxu0 0.0
          %1099 = vmatpush1.msra.mxu0 0.0
          %1100 = vmatprep.subr.mxu0 0.0
          %1101 = vmatpush1.msra.mxu0 0.0
          %1102 = vmatprep.subr.mxu0 0.0
          %1103 = vmatpush1.msra.mxu0 0.0
          %1104 = vmatprep.mubr.f32.mxu0 0.0
          %1105 = vmatmul.mubr.f32.gmra.mrb[0].mxu0 %v1035
          %v1106 = vpop.f32.mrb[0].mxu0
          %v1107 = vadd.f32 0.0, %v1106
          %v1108 = vpop.f32.mrb[0].mxu0
          %1109 = vmatprep.mubr.f32.mxu0 0.0
          %1110 = vmatmul.mubr.f32.gmra.mrb[0].mxu0 %v1038
          %v1111 = vpop.f32.mrb[0].mxu0
          %v1112 = vadd.f32 0.0, %v1111
          %v1113 = vpop.f32.mrb[0].mxu0
          %1114 = vdwg.mxu0
          %v1116 = vsel %vm928, %v1026, 0
          %v1119 = vsel %vm928, %v1027, 0
          %1121 = vmatprep.subr.mxu0 0.0
          %1122 = vmatpush1.msra.mxu0 %v1028
          %1123 = vmatprep.subr.mxu0 0.0
          %1124 = vmatpush1.msra.mxu0 %v1029
          %1125 = vmatprep.subr.mxu0 0.0
          %1126 = vmatpush1.msra.mxu0 %v1030
          %1127 = vmatprep.subr.mxu0 0.0
          %1128 = vmatpush1.msra.mxu0 0.0
          %1129 = vmatprep.subr.mxu0 0.0
          %1130 = vmatpush1.msra.mxu0 0.0
          %1131 = vmatprep.subr.mxu0 0.0
          %1132 = vmatpush1.msra.mxu0 0.0
          %1133 = vmatprep.subr.mxu0 0.0
          %1134 = vmatpush1.msra.mxu0 0.0
          %1135 = vmatprep.subr.mxu0 0.0
          %1136 = vmatpush1.msra.mxu0 0.0
          %1137 = vmatprep.subr.mxu0 0.0
          %1138 = vmatpush1.msra.mxu0 0.0
          %1139 = vmatprep.subr.mxu0 0.0
          %1140 = vmatpush1.msra.mxu0 0.0
          %1141 = vmatprep.subr.mxu0 0.0
          %1142 = vmatpush1.msra.mxu0 0.0
          %1143 = vmatprep.subr.mxu0 0.0
          %1144 = vmatpush1.msra.mxu0 0.0
          %1145 = vmatprep.subr.mxu0 0.0
          %1146 = vmatpush1.msra.mxu0 0.0
          %1147 = vmatprep.subr.mxu0 0.0
          %1148 = vmatpush1.msra.mxu0 0.0
          %1149 = vmatprep.subr.mxu0 0.0
          %1150 = vmatpush1.msra.mxu0 0.0
          %1151 = vmatprep.subr.mxu0 0.0
          %1152 = vmatpush1.msra.mxu0 0.0
          %1153 = vmatprep.subr.mxu0 0.0
          %1154 = vmatpush1.msra.mxu0 0.0
          %1155 = vmatprep.subr.mxu0 0.0
          %1156 = vmatpush1.msra.mxu0 0.0
          %1157 = vmatprep.subr.mxu0 0.0
          %1158 = vmatpush1.msra.mxu0 0.0
          %1159 = vmatprep.subr.mxu0 0.0
          %1160 = vmatpush1.msra.mxu0 0.0
          %1161 = vmatprep.subr.mxu0 0.0
          %1162 = vmatpush1.msra.mxu0 0.0
          %1163 = vmatprep.subr.mxu0 0.0
          %1164 = vmatpush1.msra.mxu0 0.0
          %1165 = vmatprep.subr.mxu0 0.0
          %1166 = vmatpush1.msra.mxu0 0.0
          %1167 = vmatprep.subr.mxu0 0.0
          %1168 = vmatpush1.msra.mxu0 0.0
          %1169 = vmatprep.subr.mxu0 0.0
          %1170 = vmatpush1.msra.mxu0 0.0
          %1171 = vmatprep.subr.mxu0 0.0
          %1172 = vmatpush1.msra.mxu0 0.0
          %1173 = vmatprep.subr.mxu0 0.0
          %1174 = vmatpush1.msra.mxu0 0.0
          %1175 = vmatprep.subr.mxu0 0.0
          %1176 = vmatpush1.msra.mxu0 0.0
          %1177 = vmatprep.subr.mxu0 0.0
          %1178 = vmatpush1.msra.mxu0 0.0
          %1179 = vmatprep.subr.mxu0 0.0
          %1180 = vmatpush1.msra.mxu0 0.0
          %1181 = vmatprep.subr.mxu0 0.0
          %1182 = vmatpush1.msra.mxu0 0.0
          %1183 = vmatprep.subr.mxu0 0.0
          %1184 = vmatpush1.msra.mxu0 0.0
          %1185 = vmatprep.mubr.f32.mxu0 0.0
          %1186 = vmatmul.mubr.f32.gmra.mrb[0].mxu0 %v1116
          %v1187 = vpop.f32.mrb[0].mxu0
          %v1188 = vadd.f32 %v1107, %v1187
          %v1189 = vpop.f32.mrb[0].mxu0
          %1190 = vmatprep.mubr.f32.mxu0 0.0
          %1191 = vmatmul.mubr.f32.gmra.mrb[0].mxu0 %v1119
          %v1192 = vpop.f32.mrb[0].mxu0
          %v1193 = vadd.f32 %v1112, %v1192
          %v1194 = vpop.f32.mrb[0].mxu0
          %1195 = vdwg.mxu0
          %v1196 = vsel %vm846, %v1031, 0.0
          %1197 = vadd.xlane.f32.xlu0 %v1196
          %v1198 = vpop.xlane.xlu0 %1197
          %v1199 = vsel %vm846, %v1032, 0.0
          %1200 = vadd.xlane.f32.xlu0 %v1199
          %v1201 = vpop.xlane.xlu0 %1200
          %v1202 = vadd.f32 %v1198, 1.0
          %v1203 = vadd.f32 %v1201, 1.0
          %v1204 = vrcp.pop %v1202
          %v1205 = vmul.f32 17.0, %v1204
          %v1206 = vrcp.pop %v1203
          %v1207 = vmul.f32 17.0, %v1206
          %v1208 = vmul.f32 %v1188, %v1205
          %v1209 = vmul.f32 %v1193, %v1207
          %v1210 = vmax.f32 %v1208, 0.0
          %v1211 = vmax.f32 %v1209, 0.0
          %v1212 = vld [vmem:[%s8] sm:$0xff]
          %v1213 = vld [vmem:[%s8 + $0x8] sm:$0xff]
          %v1214 = vld [vmem:[%s8 + $0x10] sm:$0x1]
          %1215 = vst [vmem:[#allocation2] sm:$0x1] %v1212
          %vm1218 = vcmask 1046528
          %v1219 = vrot.slane %v1212, 1
          %v1220 = vrot.slane %v1213, 1
          %v1221 = vsel %vm1218, %v1219, %v1220
          %v1223 = vadd.f32 %v1024, %v1221
          %1224 = vst [vmem:[#allocation2 + $0x1] sm:$0xff] %v1223
          %v1226 = vrot.slane %v1214, 1
          %v1227 = vsel %vm1218, %v1220, %v1226
          %v1229 = vadd.f32 %v1210, %v1227
          %1230 = vst [vmem:[#allocation2 + $0x9] sm:$0xff] %v1229
          %1231 = vst [vmem:[#allocation2 + $0x11] sm:$0x1] %v1212
          %v1232 = vadd.f32 %v1025, %v1221
          %1233 = vst [vmem:[#allocation2 + $0x12] sm:$0xff] %v1232
          %v1234 = vadd.f32 %v1211, %v1227
          %1235 = vst [vmem:[#allocation2 + $0x1a] sm:$0xff] %v1234
        $region100: #{slr_forward.1} parent=95 // pred_fallthru
          _
        %v1236 = vld [vmem:[#allocation2] sm:$0xff]
        %v1237 = vld [vmem:[#allocation2 + $0x8] sm:$0xff]
        %v1238 = vld [vmem:[#allocation2 + $0x10] sm:$0xff]
        %v1239 = vld [vmem:[#allocation2 + $0x18] sm:$0xff]
        %v1240 = vld [vmem:[#allocation2 + $0x20] sm:$0x3]
        %v1241 = vld [vmem:[%s798] sm:$0xf]
        %1242 = vadd.xlane.f32.xlu0 %v1236
        %v1243 = vpop.xlane.xlu0 %1242
        %1244 = vadd.xlane.f32.xlu0 %v1237
        %v1245 = vpop.xlane.xlu0 %1244
        %1246 = vadd.xlane.f32.xlu0 %v1238
        %v1247 = vpop.xlane.xlu0 %1246
        %1248 = vadd.xlane.f32.xlu0 %v1239
        %v1249 = vpop.xlane.xlu0 %1248
        %vm1250 = vcmask 1041408
        %v1251 = vsel %vm1250, %v1240, 0.0
        %1252 = vadd.xlane.f32.xlu0 %v1251
        %v1253 = vpop.xlane.xlu0 %1252
        %v1254 = vrcp.pop 128.0
        %v1255 = vmul.f32 %v1243, %v1254
        %v1256 = vmul.f32 %v1245, %v1254
        %v1257 = vmul.f32 %v1247, %v1254
        %v1258 = vmul.f32 %v1249, %v1254
        %v1259 = vmul.f32 %v1253, %v1254
        %v1260 = vsub.f32 %v1236, %v1255
        %v1261 = vsub.f32 %v1237, %v1256
        %v1262 = vsub.f32 %v1238, %v1257
        %v1263 = vsub.f32 %v1239, %v1258
        %v1264 = vsub.f32 %v1240, %v1259
        %v1265 = vmul.f32 %v1260, %v1260
        %v1266 = vmul.f32 %v1261, %v1261
        %v1267 = vmul.f32 %v1262, %v1262
        %v1268 = vmul.f32 %v1263, %v1263
        %v1269 = vmul.f32 %v1264, %v1264
        %1270 = vadd.xlane.f32.xlu0 %v1265
        %v1271 = vpop.xlane.xlu0 %1270
        %1272 = vadd.xlane.f32.xlu0 %v1266
        %v1273 = vpop.xlane.xlu0 %1272
        %1274 = vadd.xlane.f32.xlu0 %v1267
        %v1275 = vpop.xlane.xlu0 %1274
        %1276 = vadd.xlane.f32.xlu0 %v1268
        %v1277 = vpop.xlane.xlu0 %1276
        %v1278 = vsel %vm1250, %v1269, 0.0
        %1279 = vadd.xlane.f32.xlu0 %v1278
        %v1280 = vpop.xlane.xlu0 %1279
        %v1281 = vmul.f32 %v1271, %v1254
        %v1282 = vmul.f32 %v1273, %v1254
        %v1283 = vmul.f32 %v1275, %v1254
        %v1284 = vmul.f32 %v1277, %v1254
        %v1285 = vmul.f32 %v1280, %v1254
        %v1286 = vadd.f32 %v1281, 1e-05
        %v1287 = vadd.f32 %v1282, 1e-05
        %v1288 = vadd.f32 %v1283, 1e-05
        %v1289 = vadd.f32 %v1284, 1e-05
        %v1290 = vadd.f32 %v1285, 1e-05
        %v1291 = vrsqrt.pop %v1286
        %v1292 = vrsqrt.pop %v1287
        %v1293 = vrsqrt.pop %v1288
        %v1294 = vrsqrt.pop %v1289
        %v1295 = vrsqrt.pop %v1290
        %v1296 = vmul.f32 %v1260, %v1291
        %v1297 = vmul.f32 %v1261, %v1292
        %v1298 = vmul.f32 %v1262, %v1293
        %v1299 = vmul.f32 %v1263, %v1294
        %v1300 = vmul.f32 %v1264, %v1295
        %v1301 = vlaneseq
        %v1302 = vshrl.u32 %v1301, 7
        %v1303 = vsub.s32 0, %v1302
        %v1304 = vrot.slane %v1241, %v1303
        %v1305 = vmul.f32 %v1296, %v1304
        %v1306 = vmul.f32 %v1297, %v1304
        %v1307 = vmul.f32 %v1298, %v1304
        %v1308 = vmul.f32 %v1299, %v1304
        %v1309 = vmul.f32 %v1300, %v1304
        %v1310 = vlaneseq
        %v1311 = vshrl.u32 %v1310, 7
        %v1312 = vsub.s32 1, %v1311
        %v1313 = vrot.slane %v1241, %v1312
        %v1314 = vadd.f32 %v1305, %v1313
        %v1315 = vadd.f32 %v1306, %v1313
        %v1316 = vadd.f32 %v1307, %v1313
        %v1317 = vadd.f32 %v1308, %v1313
        %v1318 = vadd.f32 %v1309, %v1313
        %v1319 = vpack.c.bf16 %v1315, %v1314
        %v1320 = vpack.c.bf16 %v1317, %v1316
        %v1321 = vpack.c.bf16 %v1318, %v1318
        %v1322 = vld [vmem:[%s803] sm:$0xff]
        %v1323 = vld [vmem:[%s803 + $0x8] sm:$0xf]
        %v1324 = vld [vmem:[%s803 + $0xc] sm:$0xff]
        %v1325 = vld [vmem:[%s803 + $0x14] sm:$0xf]
        %v1326 = vld [vmem:[%s803 + $0x18] sm:$0xff]
        %v1327 = vld [vmem:[%s803 + $0x20] sm:$0xf]
        %v1328 = vld [vmem:[%s803 + $0x24] sm:$0xff]
        %v1329 = vld [vmem:[%s803 + $0x2c] sm:$0xf]
        %v1330 = vld [vmem:[%s803 + $0x30] sm:$0xff]
        %v1331 = vld [vmem:[%s803 + $0x38] sm:$0xf]
        %v1332 = vld [vmem:[%s803 + $0x3c] sm:$0xff]
        %v1333 = vld [vmem:[%s803 + $0x44] sm:$0xf]
        %v1334 = vld [vmem:[%s803 + $0x48] sm:$0xff]
        %v1335 = vld [vmem:[%s803 + $0x50] sm:$0xf]
        %v1336 = vld [vmem:[%s803 + $0x54] sm:$0xff]
        %v1337 = vld [vmem:[%s803 + $0x5c] sm:$0xf]
        %v1338 = vld [vmem:[%s803 + $0x60] sm:$0xff]
        %v1339 = vld [vmem:[%s803 + $0x68] sm:$0xf]
        %v1340 = vld [vmem:[%s803 + $0x6c] sm:$0xff]
        %v1341 = vld [vmem:[%s803 + $0x74] sm:$0xf]
        %v1342 = vld [vmem:[%s803 + $0x78] sm:$0xff]
        %v1343 = vld [vmem:[%s803 + $0x80] sm:$0xf]
        %v1344 = vld [vmem:[%s803 + $0x84] sm:$0xff]
        %v1345 = vld [vmem:[%s803 + $0x8c] sm:$0xf]
        %v1346 = vld [vmem:[%s803 + $0x90] sm:$0xff]
        %v1347 = vld [vmem:[%s803 + $0x98] sm:$0xf]
        %v1348 = vld [vmem:[%s803 + $0x9c] sm:$0xff]
        %v1349 = vld [vmem:[%s803 + $0xa4] sm:$0xf]
        %v1350 = vld [vmem:[%s803 + $0xa8] sm:$0xff]
        %v1351 = vld [vmem:[%s803 + $0xb0] sm:$0xf]
        %v1352 = vld [vmem:[%s803 + $0xb4] sm:$0xff]
        %v1353 = vld [vmem:[%s803 + $0xbc] sm:$0xf]
        %v1354 = vld [vmem:[%s807] sm:$0x7]
        %v1356 = vlaneseq
        %v1357 = vshrl.u32 %v1356, 7
        %v1358 = vsub.s32 0, %v1357
        %v1359 = vrot.slane %v1354, %v1358
        %v1360 = vlaneseq
        %v1361 = vshrl.u32 %v1360, 7
        %v1362 = vsub.s32 1, %v1361
        %v1363 = vrot.slane %v1354, %v1362
        %v1364 = vlaneseq
        %v1365 = vshrl.u32 %v1364, 7
        %v1366 = vsub.s32 2, %v1365
        %v1367 = vrot.slane %v1354, %v1366
        %v1403 = vunpack.c.l.b16 %v1322
        %v1404 = vunpack.c.h.b16 %v1322
        %v1405 = vunpack.c.l.b16 %v1323
        %v1406 = vunpack.c.l.b16 %v1324
        %v1407 = vunpack.c.h.b16 %v1324
        %v1408 = vunpack.c.l.b16 %v1325
        %v1409 = vunpack.c.l.b16 %v1326
        %v1410 = vunpack.c.h.b16 %v1326
        %v1411 = vunpack.c.l.b16 %v1327
        %v1412 = vunpack.c.l.b16 %v1328
        %v1413 = vunpack.c.h.b16 %v1328
        %v1414 = vunpack.c.l.b16 %v1329
        %v1415 = vunpack.c.l.b16 %v1330
        %v1416 = vunpack.c.h.b16 %v1330
        %v1417 = vunpack.c.l.b16 %v1331
        %v1418 = vunpack.c.l.b16 %v1332
        %v1419 = vunpack.c.h.b16 %v1332
        %v1420 = vunpack.c.l.b16 %v1333
        %v1421 = vunpack.c.l.b16 %v1334
        %v1422 = vunpack.c.h.b16 %v1334
        %v1423 = vunpack.c.l.b16 %v1335
        %v1424 = vunpack.c.l.b16 %v1336
        %v1425 = vunpack.c.h.b16 %v1336
        %v1426 = vunpack.c.l.b16 %v1337
        %v1427 = vunpack.c.l.b16 %v1338
        %v1428 = vunpack.c.h.b16 %v1338
        %v1429 = vunpack.c.l.b16 %v1339
        %v1430 = vunpack.c.l.b16 %v1340
        %v1431 = vunpack.c.h.b16 %v1340
        %v1432 = vunpack.c.l.b16 %v1341
        %v1433 = vunpack.c.l.b16 %v1342
        %v1434 = vunpack.c.h.b16 %v1342
        %v1435 = vunpack.c.l.b16 %v1343
        %v1436 = vunpack.c.l.b16 %v1344
        %v1437 = vunpack.c.h.b16 %v1344
        %v1438 = vunpack.c.l.b16 %v1345
        %v1439 = vunpack.c.l.b16 %v1346
        %v1440 = vunpack.c.h.b16 %v1346
        %v1441 = vunpack.c.l.b16 %v1347
        %v1442 = vunpack.c.l.b16 %v1348
        %v1443 = vunpack.c.h.b16 %v1348
        %v1444 = vunpack.c.l.b16 %v1349
        %v1445 = vunpack.c.l.b16 %v1350
        %v1446 = vunpack.c.h.b16 %v1350
        %v1447 = vunpack.c.l.b16 %v1351
        %v1448 = vunpack.c.l.b16 %v1352
        %v1449 = vunpack.c.h.b16 %v1352
        %v1450 = vunpack.c.l.b16 %v1353
        %v1451 = vpack.c.b16 %v1406, %v1403
        %v1452 = vpack.c.b16 %v1407, %v1404
        %v1453 = vpack.c.b16 %v1408, %v1405
        %v1454 = vpack.c.b16 %v1412, %v1409
        %v1455 = vpack.c.b16 %v1413, %v1410
        %v1456 = vpack.c.b16 %v1414, %v1411
        %v1457 = vpack.c.b16 %v1418, %v1415
        %v1458 = vpack.c.b16 %v1419, %v1416
        %v1459 = vpack.c.b16 %v1420, %v1417
        %v1460 = vpack.c.b16 %v1424, %v1421
        %v1461 = vpack.c.b16 %v1425, %v1422
        %v1462 = vpack.c.b16 %v1426, %v1423
        %v1463 = vpack.c.b16 %v1430, %v1427
        %v1464 = vpack.c.b16 %v1431, %v1428
        %v1465 = vpack.c.b16 %v1432, %v1429
        %v1466 = vpack.c.b16 %v1436, %v1433
        %v1467 = vpack.c.b16 %v1437, %v1434
        %v1468 = vpack.c.b16 %v1438, %v1435
        %v1469 = vpack.c.b16 %v1442, %v1439
        %v1470 = vpack.c.b16 %v1443, %v1440
        %v1471 = vpack.c.b16 %v1444, %v1441
        %v1472 = vpack.c.b16 %v1448, %v1445
        %v1473 = vpack.c.b16 %v1449, %v1446
        %v1474 = vpack.c.b16 %v1450, %v1447
        %1499 = vmatprep.subr.bf16.mxu0 %v1452
        %1500 = vmatpush1.bf16.msra.mxu0 %v1451
        %1501 = vmatprep.subr.bf16.mxu0 %v1455
        %1502 = vmatpush1.bf16.msra.mxu0 %v1454
        %1503 = vmatprep.subr.bf16.mxu0 %v1458
        %1504 = vmatpush1.bf16.msra.mxu0 %v1457
        %1505 = vmatprep.subr.bf16.mxu0 %v1461
        %1506 = vmatpush1.bf16.msra.mxu0 %v1460
        %1507 = vmatprep.subr.bf16.mxu0 %v1464
        %1508 = vmatpush1.bf16.msra.mxu0 %v1463
        %1509 = vmatprep.subr.bf16.mxu0 %v1467
        %1510 = vmatpush1.bf16.msra.mxu0 %v1466
        %1511 = vmatprep.subr.bf16.mxu0 %v1470
        %1512 = vmatpush1.bf16.msra.mxu0 %v1469
        %1513 = vmatprep.subr.bf16.mxu0 %v1473
        %1514 = vmatpush1.bf16.msra.mxu0 %v1472
        %1515 = vmatprep.subr.bf16.mxu0 0
        %1516 = vmatpush1.bf16.msra.mxu0 0
        %1517 = vmatprep.subr.bf16.mxu0 0
        %1518 = vmatpush1.bf16.msra.mxu0 0
        %1519 = vmatprep.subr.bf16.mxu0 0
        %1520 = vmatpush1.bf16.msra.mxu0 0
        %1521 = vmatprep.subr.bf16.mxu0 0
        %1522 = vmatpush1.bf16.msra.mxu0 0
        %1523 = vmatprep.subr.bf16.mxu0 0
        %1524 = vmatpush1.bf16.msra.mxu0 0
        %1525 = vmatprep.subr.bf16.mxu0 0
        %1526 = vmatpush1.bf16.msra.mxu0 0
        %1527 = vmatprep.subr.bf16.mxu0 0
        %1528 = vmatpush1.bf16.msra.mxu0 0
        %1529 = vmatprep.subr.bf16.mxu0 0
        %1530 = vmatpush1.bf16.msra.mxu0 0
        %1531 = vmatprep.mubr.bf16.mxu0 0
        %1532 = vmatmul.mubr.bf16.gmra.mrb[0].mxu0 %v1319
        %v1533 = vpop.f32.mrb[0].mxu0
        %v1534 = vadd.f32 %v1359, %v1533
        %v1535 = vpop.f32.mrb[0].mxu0
        %v1536 = vadd.f32 %v1363, %v1535
        %v1537 = vpop.f32.mrb[0].mxu0
        %v1538 = vadd.f32 %v1359, %v1537
        %v1539 = vpop.f32.mrb[0].mxu0
        %v1540 = vadd.f32 %v1363, %v1539
        %1541 = vmatprep.mubr.bf16.mxu0 0
        %1542 = vmatmul.mubr.bf16.gmra.mrb[0].mxu0 %v1320
        %v1543 = vpop.f32.mrb[0].mxu0
        %v1544 = vadd.f32 %v1359, %v1543
        %v1545 = vpop.f32.mrb[0].mxu0
        %v1546 = vadd.f32 %v1363, %v1545
        %v1547 = vpop.f32.mrb[0].mxu0
        %v1548 = vadd.f32 %v1359, %v1547
        %v1549 = vpop.f32.mrb[0].mxu0
        %v1550 = vadd.f32 %v1363, %v1549
        %1551 = vmatprep.mubr.bf16.mxu0 0
        %1552 = vmatmul.mubr.bf16.gmra.mrb[0].mxu0 %v1321
        %v1553 = vpop.f32.mrb[0].mxu0
        %v1554 = vadd.f32 %v1359, %v1553
        %v1555 = vpop.f32.mrb[0].mxu0
        %v1556 = vadd.f32 %v1363, %v1555
        %v1557 = vpop.f32.mrb[0].mxu0
        %v1558 = vpop.f32.mrb[0].mxu0
        %1559 = vdwg.mxu0
        %1560 = vmatprep.subr.bf16.mxu0 0
        %1561 = vmatpush1.bf16.msra.mxu0 %v1453
        %1562 = vmatprep.subr.bf16.mxu0 0
        %1563 = vmatpush1.bf16.msra.mxu0 %v1456
        %1564 = vmatprep.subr.bf16.mxu0 0
        %1565 = vmatpush1.bf16.msra.mxu0 %v1459
        %1566 = vmatprep.subr.bf16.mxu0 0
        %1567 = vmatpush1.bf16.msra.mxu0 %v1462
        %1568 = vmatprep.subr.bf16.mxu0 0
        %1569 = vmatpush1.bf16.msra.mxu0 %v1465
        %1570 = vmatprep.subr.bf16.mxu0 0
        %1571 = vmatpush1.bf16.msra.mxu0 %v1468
        %1572 = vmatprep.subr.bf16.mxu0 0
        %1573 = vmatpush1.bf16.msra.mxu0 %v1471
        %1574 = vmatprep.subr.bf16.mxu0 0
        %1575 = vmatpush1.bf16.msra.mxu0 %v1474
        %1576 = vmatprep.subr.bf16.mxu0 0
        %1577 = vmatpush1.bf16.msra.mxu0 0
        %1578 = vmatprep.subr.bf16.mxu0 0
        %1579 = vmatpush1.bf16.msra.mxu0 0
        %1580 = vmatprep.subr.bf16.mxu0 0
        %1581 = vmatpush1.bf16.msra.mxu0 0
        %1582 = vmatprep.subr.bf16.mxu0 0
        %1583 = vmatpush1.bf16.msra.mxu0 0
        %1584 = vmatprep.subr.bf16.mxu0 0
        %1585 = vmatpush1.bf16.msra.mxu0 0
        %1586 = vmatprep.subr.bf16.mxu0 0
        %1587 = vmatpush1.bf16.msra.mxu0 0
        %1588 = vmatprep.subr.bf16.mxu0 0
        %1589 = vmatpush1.bf16.msra.mxu0 0
        %1590 = vmatprep.subr.bf16.mxu0 0
        %1591 = vmatpush1.bf16.msra.mxu0 0
        %1592 = vmatprep.mubr.bf16.mxu0 0
        %1593 = vmatmul.mubr.bf16.gmra.mrb[0].mxu0 %v1319
        %v1594 = vpop.f32.mrb[0].mxu0
        %v1595 = vadd.f32 %v1367, %v1594
        %v1596 = vpop.f32.mrb[0].mxu0
        %v1597 = vpop.f32.mrb[0].mxu0
        %v1598 = vadd.f32 %v1367, %v1597
        %v1599 = vpop.f32.mrb[0].mxu0
        %1600 = vmatprep.mubr.bf16.mxu0 0
        %1601 = vmatmul.mubr.bf16.gmra.mrb[0].mxu0 %v1320
        %v1602 = vpop.f32.mrb[0].mxu0
        %v1603 = vadd.f32 %v1367, %v1602
        %v1604 = vpop.f32.mrb[0].mxu0
        %v1605 = vpop.f32.mrb[0].mxu0
        %v1606 = vadd.f32 %v1367, %v1605
        %v1607 = vpop.f32.mrb[0].mxu0
        %1608 = vmatprep.mubr.bf16.mxu0 0
        %1609 = vmatmul.mubr.bf16.gmra.mrb[0].mxu0 %v1321
        %v1610 = vpop.f32.mrb[0].mxu0
        %v1611 = vadd.f32 %v1367, %v1610
        %v1612 = vpop.f32.mrb[0].mxu0
        %v1613 = vpop.f32.mrb[0].mxu0
        %v1614 = vpop.f32.mrb[0].mxu0
        %1615 = vdwg.mxu0
        %vm1616 = vcmask 261120
        %v1618 = vsel %vm1616, %v1534, 0
        %v1621 = vsel %vm1616, %v1538, 0
        %v1624 = vsel %vm1616, %v1544, 0
        %v1627 = vsel %vm1616, %v1536, 0
        %v1630 = vsel %vm1616, %v1540, 0
        %v1633 = vsel %vm1616, %v1546, 0
        %1635 = vmatprep.subr.mxu0 0.0
        %1636 = vmatpush1.xpose.msra.mxu0 %v1627
        %1637 = vmatprep.subr.mxu0 0.0
        %1638 = vmatpush1.xpose.msra.mxu0 %v1630
        %1639 = vmatprep.subr.mxu0 0.0
        %1640 = vmatpush1.xpose.msra.mxu0 %v1633
        %1641 = vmatprep.subr.mxu0 0.0
        %1642 = vmatpush1.xpose.msra.mxu0 0.0
        %1643 = vmatprep.subr.mxu0 0.0
        %1644 = vmatpush1.xpose.msra.mxu0 0.0
        %1645 = vmatprep.subr.mxu0 0.0
        %1646 = vmatpush1.xpose.msra.mxu0 0.0
        %1647 = vmatprep.subr.mxu0 0.0
        %1648 = vmatpush1.xpose.msra.mxu0 0.0
        %1649 = vmatprep.subr.mxu0 0.0
        %1650 = vmatpush1.xpose.msra.mxu0 0.0
        %1651 = vmatprep.subr.mxu0 0.0
        %1652 = vmatpush1.xpose.msra.mxu0 0.0
        %1653 = vmatprep.subr.mxu0 0.0
        %1654 = vmatpush1.xpose.msra.mxu0 0.0
        %1655 = vmatprep.subr.mxu0 0.0
        %1656 = vmatpush1.xpose.msra.mxu0 0.0
        %1657 = vmatprep.subr.mxu0 0.0
        %1658 = vmatpush1.xpose.msra.mxu0 0.0
        %1659 = vmatprep.subr.mxu0 0.0
        %1660 = vmatpush1.xpose.msra.mxu0 0.0
        %1661 = vmatprep.subr.mxu0 0.0
        %1662 = vmatpush1.xpose.msra.mxu0 0.0
        %1663 = vmatprep.subr.mxu0 0.0
        %1664 = vmatpush1.xpose.msra.mxu0 0.0
        %1665 = vmatprep.subr.mxu0 0.0
        %1666 = vmatpush1.xpose.msra.mxu0 0.0
        %1667 = vmatprep.subr.mxu0 0.0
        %1668 = vmatpush1.xpose.msra.mxu0 0.0
        %1669 = vmatprep.subr.mxu0 0.0
        %1670 = vmatpush1.xpose.msra.mxu0 0.0
        %1671 = vmatprep.subr.mxu0 0.0
        %1672 = vmatpush1.xpose.msra.mxu0 0.0
        %1673 = vmatprep.subr.mxu0 0.0
        %1674 = vmatpush1.xpose.msra.mxu0 0.0
        %1675 = vmatprep.subr.mxu0 0.0
        %1676 = vmatpush1.xpose.msra.mxu0 0.0
        %1677 = vmatprep.subr.mxu0 0.0
        %1678 = vmatpush1.xpose.msra.mxu0 0.0
        %1679 = vmatprep.subr.mxu0 0.0
        %1680 = vmatpush1.xpose.msra.mxu0 0.0
        %1681 = vmatprep.subr.mxu0 0.0
        %1682 = vmatpush1.xpose.msra.mxu0 0.0
        %1683 = vmatprep.subr.mxu0 0.0
        %1684 = vmatpush1.xpose.msra.mxu0 0.0
        %1685 = vmatprep.subr.mxu0 0.0
        %1686 = vmatpush1.xpose.msra.mxu0 0.0
        %1687 = vmatprep.subr.mxu0 0.0
        %1688 = vmatpush1.xpose.msra.mxu0 0.0
        %1689 = vmatprep.subr.mxu0 0.0
        %1690 = vmatpush1.xpose.msra.mxu0 0.0
        %1691 = vmatprep.subr.mxu0 0.0
        %1692 = vmatpush1.xpose.msra.mxu0 0.0
        %1693 = vmatprep.subr.mxu0 0.0
        %1694 = vmatpush1.xpose.msra.mxu0 0.0
        %1695 = vmatprep.subr.mxu0 0.0
        %1696 = vmatpush1.xpose.msra.mxu0 0.0
        %1697 = vmatprep.subr.mxu0 0.0
        %1698 = vmatpush1.xpose.msra.mxu0 0.0
        %1699 = vmatprep.mubr.f32.mxu0 0.0
        %1700 = vmatmul.mubr.f32.gmra.mrb[0].mxu0 %v1618
        %v1701 = vpop.f32.mrb[0].mxu0
        %v1702 = vadd.f32 0.0, %v1701
        %v1703 = vpop.f32.mrb[0].mxu0
        %1704 = vmatprep.mubr.f32.mxu0 0.0
        %1705 = vmatmul.mubr.f32.gmra.mrb[0].mxu0 %v1621
        %v1706 = vpop.f32.mrb[0].mxu0
        %v1707 = vadd.f32 0.0, %v1706
        %v1708 = vpop.f32.mrb[0].mxu0
        %1709 = vmatprep.mubr.f32.mxu0 0.0
        %1710 = vmatmul.mubr.f32.gmra.mrb[0].mxu0 %v1624
        %v1711 = vpop.f32.mrb[0].mxu0
        %v1712 = vadd.f32 0.0, %v1711
        %v1713 = vpop.f32.mrb[0].mxu0
        %1714 = vdwg.mxu0
        %v1715 = vmul.f32 %v1702, 0.17677669
        %v1716 = vmul.f32 %v1707, 0.17677669
        %v1717 = vmul.f32 %v1712, 0.17677669
        %vm1718 = vcmask 138240
        %v1719 = vsel %vm1718, %v1715, -inf
        %1720 = vmax.xlane.f32.xlu0 %v1719
        %v1721 = vpop.xlane.xlu0 %1720
        %v1722 = vsel %vm1718, %v1716, -inf
        %1723 = vmax.xlane.f32.xlu0 %v1722
        %v1724 = vpop.xlane.xlu0 %1723
        %vm1725 = vcmask 131072
        %v1726 = vsel %vm1725, %v1717, -inf
        %1727 = vmax.xlane.f32.xlu0 %v1726
        %v1728 = vpop.xlane.xlu0 %1727
        %v1729 = vsub.f32 %v1715, %v1721
        %v1730 = vsub.f32 %v1716, %v1724
        %v1731 = vsub.f32 %v1717, %v1728
        %v1732 = vmul.f32 %v1729, 1.442695
        %v1733 = vpow.pop %v1732
        %v1734 = vmul.f32 %v1730, 1.442695
        %v1735 = vpow.pop %v1734
        %v1736 = vmul.f32 %v1731, 1.442695
        %v1737 = vpow.pop %v1736
        %v1738 = vsel %vm1718, %v1733, 0.0
        %1739 = vadd.xlane.f32.xlu0 %v1738
        %v1740 = vpop.xlane.xlu0 %1739
        %v1741 = vsel %vm1718, %v1735, 0.0
        %1742 = vadd.xlane.f32.xlu0 %v1741
        %v1743 = vpop.xlane.xlu0 %1742
        %v1744 = vsel %vm1725, %v1737, 0.0
        %1745 = vadd.xlane.f32.xlu0 %v1744
        %v1746 = vpop.xlane.xlu0 %1745
        %v1747 = vrcp.pop %v1740
        %v1748 = vrcp.pop %v1743
        %v1749 = vrcp.pop %v1746
        %v1750 = vmul.f32 %v1733, %v1747
        %v1751 = vmul.f32 %v1735, %v1748
        %v1752 = vmul.f32 %v1737, %v1749
        %v1754 = vsel %vm1718, %v1750, 0
        %v1757 = vsel %vm1718, %v1751, 0
        %v1760 = vsel %vm1718, %v1752, 0
        %vm1762 = vcmask 1040384
        %v1764 = vsel %vm1762, %v1603, 0
        %1766 = vmatprep.subr.mxu0 0.0
        %1767 = vmatpush1.msra.mxu0 %v1595
        %1768 = vmatprep.subr.mxu0 0.0
        %1769 = vmatpush1.msra.mxu0 %v1598
        %1770 = vmatprep.subr.mxu0 0.0
        %1771 = vmatpush1.msra.mxu0 %v1764
        %1772 = vmatprep.subr.mxu0 0.0
        %1773 = vmatpush1.msra.mxu0 0.0
        %1774 = vmatprep.subr.mxu0 0.0
        %1775 = vmatpush1.msra.mxu0 0.0
        %1776 = vmatprep.subr.mxu0 0.0
        %1777 = vmatpush1.msra.mxu0 0.0
        %1778 = vmatprep.subr.mxu0 0.0
        %1779 = vmatpush1.msra.mxu0 0.0
        %1780 = vmatprep.subr.mxu0 0.0
        %1781 = vmatpush1.msra.mxu0 0.0
        %1782 = vmatprep.subr.mxu0 0.0
        %1783 = vmatpush1.msra.mxu0 0.0
        %1784 = vmatprep.subr.mxu0 0.0
        %1785 = vmatpush1.msra.mxu0 0.0
        %1786 = vmatprep.subr.mxu0 0.0
        %1787 = vmatpush1.msra.mxu0 0.0
        %1788 = vmatprep.subr.mxu0 0.0
        %1789 = vmatpush1.msra.mxu0 0.0
        %1790 = vmatprep.subr.mxu0 0.0
        %1791 = vmatpush1.msra.mxu0 0.0
        %1792 = vmatprep.subr.mxu0 0.0
        %1793 = vmatpush1.msra.mxu0 0.0
        %1794 = vmatprep.subr.mxu0 0.0
        %1795 = vmatpush1.msra.mxu0 0.0
        %1796 = vmatprep.subr.mxu0 0.0
        %1797 = vmatpush1.msra.mxu0 0.0
        %1798 = vmatprep.subr.mxu0 0.0
        %1799 = vmatpush1.msra.mxu0 0.0
        %1800 = vmatprep.subr.mxu0 0.0
        %1801 = vmatpush1.msra.mxu0 0.0
        %1802 = vmatprep.subr.mxu0 0.0
        %1803 = vmatpush1.msra.mxu0 0.0
        %1804 = vmatprep.subr.mxu0 0.0
        %1805 = vmatpush1.msra.mxu0 0.0
        %1806 = vmatprep.subr.mxu0 0.0
        %1807 = vmatpush1.msra.mxu0 0.0
        %1808 = vmatprep.subr.mxu0 0.0
        %1809 = vmatpush1.msra.mxu0 0.0
        %1810 = vmatprep.subr.mxu0 0.0
        %1811 = vmatpush1.msra.mxu0 0.0
        %1812 = vmatprep.subr.mxu0 0.0
        %1813 = vmatpush1.msra.mxu0 0.0
        %1814 = vmatprep.subr.mxu0 0.0
        %1815 = vmatpush1.msra.mxu0 0.0
        %1816 = vmatprep.subr.mxu0 0.0
        %1817 = vmatpush1.msra.mxu0 0.0
        %1818 = vmatprep.subr.mxu0 0.0
        %1819 = vmatpush1.msra.mxu0 0.0
        %1820 = vmatprep.subr.mxu0 0.0
        %1821 = vmatpush1.msra.mxu0 0.0
        %1822 = vmatprep.subr.mxu0 0.0
        %1823 = vmatpush1.msra.mxu0 0.0
        %1824 = vmatprep.subr.mxu0 0.0
        %1825 = vmatpush1.msra.mxu0 0.0
        %1826 = vmatprep.subr.mxu0 0.0
        %1827 = vmatpush1.msra.mxu0 0.0
        %1828 = vmatprep.subr.mxu0 0.0
        %1829 = vmatpush1.msra.mxu0 0.0
        %1830 = vmatprep.mubr.f32.mxu0 0.0
        %1831 = vmatmul.mubr.f32.gmra.mrb[0].mxu0 %v1754
        %v1832 = vpop.f32.mrb[0].mxu0
        %v1833 = vadd.f32 0.0, %v1832
        %v1834 = vpop.f32.mrb[0].mxu0
        %1835 = vmatprep.mubr.f32.mxu0 0.0
        %1836 = vmatmul.mubr.f32.gmra.mrb[0].mxu0 %v1757
        %v1837 = vpop.f32.mrb[0].mxu0
        %v1838 = vadd.f32 0.0, %v1837
        %v1839 = vpop.f32.mrb[0].mxu0
        %1840 = vmatprep.mubr.f32.mxu0 0.0
        %1841 = vmatmul.mubr.f32.gmra.mrb[0].mxu0 %v1760
        %v1842 = vpop.f32.mrb[0].mxu0
        %v1843 = vadd.f32 0.0, %v1842
        %v1844 = vpop.f32.mrb[0].mxu0
        %1845 = vdwg.mxu0
        %1846 = vst.msk [vmem:[#allocation3] sm:$0xff] %vm1616, %v1833
        %1847 = vst.msk [vmem:[#allocation3 + $0x8] sm:$0xff] %vm1616, %v1838
        %vm1848 = vcmask 253952
        %1849 = vst.msk [vmem:[#allocation3 + $0x10] sm:$0x1] %vm1848, %v1843
        %1850 = vrot.lane.b32.xlu0 %v1534, 96
        %v1851 = vpop.permute.xlu0 %1850
        %1852 = vrot.lane.b32.xlu0 %v1538, 96
        %v1853 = vpop.permute.xlu0 %1852
        %1854 = vrot.lane.b32.xlu0 %v1544, 96
        %v1855 = vpop.permute.xlu0 %1854
        %1856 = vrot.lane.b32.xlu0 %v1536, 96
        %v1857 = vpop.permute.xlu0 %1856
        %1858 = vrot.lane.b32.xlu0 %v1540, 96
        %v1859 = vpop.permute.xlu0 %1858
        %1860 = vrot.lane.b32.xlu0 %v1546, 96
        %v1861 = vpop.permute.xlu0 %1860
        %v1862 = vsel %vm1616, %v1851, 0
        %v1864 = vsel %vm1616, %v1853, 0
        %v1866 = vsel %vm1616, %v1855, 0
        %v1868 = vsel %vm1616, %v1857, 0
        %v1870 = vsel %vm1616, %v1859, 0
        %v1872 = vsel %vm1616, %v1861, 0
        %1874 = vmatprep.subr.mxu0 0.0
        %1875 = vmatpush1.xpose.msra.mxu0 %v1868
        %1876 = vmatprep.subr.mxu0 0.0
        %1877 = vmatpush1.xpose.msra.mxu0 %v1870
        %1878 = vmatprep.subr.mxu0 0.0
        %1879 = vmatpush1.xpose.msra.mxu0 %v1872
        %1880 = vmatprep.subr.mxu0 0.0
        %1881 = vmatpush1.xpose.msra.mxu0 0.0
        %1882 = vmatprep.subr.mxu0 0.0
        %1883 = vmatpush1.xpose.msra.mxu0 0.0
        %1884 = vmatprep.subr.mxu0 0.0
        %1885 = vmatpush1.xpose.msra.mxu0 0.0
        %1886 = vmatprep.subr.mxu0 0.0
        %1887 = vmatpush1.xpose.msra.mxu0 0.0
        %1888 = vmatprep.subr.mxu0 0.0
        %1889 = vmatpush1.xpose.msra.mxu0 0.0
        %1890 = vmatprep.subr.mxu0 0.0
        %1891 = vmatpush1.xpose.msra.mxu0 0.0
        %1892 = vmatprep.subr.mxu0 0.0
        %1893 = vmatpush1.xpose.msra.mxu0 0.0
        %1894 = vmatprep.subr.mxu0 0.0
        %1895 = vmatpush1.xpose.msra.mxu0 0.0
        %1896 = vmatprep.subr.mxu0 0.0
        %1897 = vmatpush1.xpose.msra.mxu0 0.0
        %1898 = vmatprep.subr.mxu0 0.0
        %1899 = vmatpush1.xpose.msra.mxu0 0.0
        %1900 = vmatprep.subr.mxu0 0.0
        %1901 = vmatpush1.xpose.msra.mxu0 0.0
        %1902 = vmatprep.subr.mxu0 0.0
        %1903 = vmatpush1.xpose.msra.mxu0 0.0
        %1904 = vmatprep.subr.mxu0 0.0
        %1905 = vmatpush1.xpose.msra.mxu0 0.0
        %1906 = vmatprep.subr.mxu0 0.0
        %1907 = vmatpush1.xpose.msra.mxu0 0.0
        %1908 = vmatprep.subr.mxu0 0.0
        %1909 = vmatpush1.xpose.msra.mxu0 0.0
        %1910 = vmatprep.subr.mxu0 0.0
        %1911 = vmatpush1.xpose.msra.mxu0 0.0
        %1912 = vmatprep.subr.mxu0 0.0
        %1913 = vmatpush1.xpose.msra.mxu0 0.0
        %1914 = vmatprep.subr.mxu0 0.0
        %1915 = vmatpush1.xpose.msra.mxu0 0.0
        %1916 = vmatprep.subr.mxu0 0.0
        %1917 = vmatpush1.xpose.msra.mxu0 0.0
        %1918 = vmatprep.subr.mxu0 0.0
        %1919 = vmatpush1.xpose.msra.mxu0 0.0
        %1920 = vmatprep.subr.mxu0 0.0
        %1921 = vmatpush1.xpose.msra.mxu0 0.0
        %1922 = vmatprep.subr.mxu0 0.0
        %1923 = vmatpush1.xpose.msra.mxu0 0.0
        %1924 = vmatprep.subr.mxu0 0.0
        %1925 = vmatpush1.xpose.msra.mxu0 0.0
        %1926 = vmatprep.subr.mxu0 0.0
        %1927 = vmatpush1.xpose.msra.mxu0 0.0
        %1928 = vmatprep.subr.mxu0 0.0
        %1929 = vmatpush1.xpose.msra.mxu0 0.0
        %1930 = vmatprep.subr.mxu0 0.0
        %1931 = vmatpush1.xpose.msra.mxu0 0.0
        %1932 = vmatprep.subr.mxu0 0.0
        %1933 = vmatpush1.xpose.msra.mxu0 0.0
        %1934 = vmatprep.subr.mxu0 0.0
        %1935 = vmatpush1.xpose.msra.mxu0 0.0
        %1936 = vmatprep.subr.mxu0 0.0
        %1937 = vmatpush1.xpose.msra.mxu0 0.0
        %1938 = vmatprep.mubr.f32.mxu0 0.0
        %1939 = vmatmul.mubr.f32.gmra.mrb[0].mxu0 %v1862
        %v1940 = vpop.f32.mrb[0].mxu0
        %v1941 = vadd.f32 0.0, %v1940
        %v1942 = vpop.f32.mrb[0].mxu0
        %1943 = vmatprep.mubr.f32.mxu0 0.0
        %1944 = vmatmul.mubr.f32.gmra.mrb[0].mxu0 %v1864
        %v1945 = vpop.f32.mrb[0].mxu0
        %v1946 = vadd.f32 0.0, %v1945
        %v1947 = vpop.f32.mrb[0].mxu0
        %1948 = vmatprep.mubr.f32.mxu0 0.0
        %1949 = vmatmul.mubr.f32.gmra.mrb[0].mxu0 %v1866
        %v1950 = vpop.f32.mrb[0].mxu0
        %v1951 = vadd.f32 0.0, %v1950
        %v1952 = vpop.f32.mrb[0].mxu0
        %1953 = vdwg.mxu0
        %v1954 = vmul.f32 %v1941, 0.17677669
        %v1955 = vmul.f32 %v1946, 0.17677669
        %v1956 = vmul.f32 %v1951, 0.17677669
        %v1957 = vsel %vm1718, %v1954, -inf
        %1958 = vmax.xlane.f32.xlu0 %v1957
        %v1959 = vpop.xlane.xlu0 %1958
        %v1960 = vsel %vm1718, %v1955, -inf
        %1961 = vmax.xlane.f32.xlu0 %v1960
        %v1962 = vpop.xlane.xlu0 %1961
        %v1963 = vsel %vm1725, %v1956, -inf
        %1964 = vmax.xlane.f32.xlu0 %v1963
        %v1965 = vpop.xlane.xlu0 %1964
        %v1966 = vsub.f32 %v1954, %v1959
        %v1967 = vsub.f32 %v1955, %v1962
        %v1968 = vsub.f32 %v1956, %v1965
        %v1969 = vmul.f32 %v1966, 1.442695
        %v1970 = vpow.pop %v1969
        %v1971 = vmul.f32 %v1967, 1.442695
        %v1972 = vpow.pop %v1971
        %v1973 = vmul.f32 %v1968, 1.442695
        %v1974 = vpow.pop %v1973
        %v1975 = vsel %vm1718, %v1970, 0.0
        %1976 = vadd.xlane.f32.xlu0 %v1975
        %v1977 = vpop.xlane.xlu0 %1976
        %v1978 = vsel %vm1718, %v1972, 0.0
        %1979 = vadd.xlane.f32.xlu0 %v1978
        %v1980 = vpop.xlane.xlu0 %1979
        %v1981 = vsel %vm1725, %v1974, 0.0
        %1982 = vadd.xlane.f32.xlu0 %v1981
        %v1983 = vpop.xlane.xlu0 %1982
        %v1984 = vrcp.pop %v1977
        %v1985 = vrcp.pop %v1980
        %v1986 = vrcp.pop %v1983
        %v1987 = vmul.f32 %v1970, %v1984
        %v1988 = vmul.f32 %v1972, %v1985
        %v1989 = vmul.f32 %v1974, %v1986
        %1992 = vrot.lane.b32.xlu0 %v1595, 96
        %v1993 = vpop.permute.xlu0 %1992
        %1994 = vrot.lane.b32.xlu0 %v1598, 96
        %v1995 = vpop.permute.xlu0 %1994
        %1996 = vrot.lane.b32.xlu0 %v1603, 96
        %v1997 = vpop.permute.xlu0 %1996
        %v2001 = vsel %vm1718, %v1987, 0
        %v2004 = vsel %vm1718, %v1988, 0
        %v2007 = vsel %vm1718, %v1989, 0
        %v2009 = vsel %vm1762, %v1997, 0
        %2011 = vmatprep.subr.mxu0 0.0
        %2012 = vmatpush1.msra.mxu0 %v1993
        %2013 = vmatprep.subr.mxu0 0.0
        %2014 = vmatpush1.msra.mxu0 %v1995
        %2015 = vmatprep.subr.mxu0 0.0
        %2016 = vmatpush1.msra.mxu0 %v2009
        %2017 = vmatprep.subr.mxu0 0.0
        %2018 = vmatpush1.msra.mxu0 0.0
        %2019 = vmatprep.subr.mxu0 0.0
        %2020 = vmatpush1.msra.mxu0 0.0
        %2021 = vmatprep.subr.mxu0 0.0
        %2022 = vmatpush1.msra.mxu0 0.0
        %2023 = vmatprep.subr.mxu0 0.0
        %2024 = vmatpush1.msra.mxu0 0.0
        %2025 = vmatprep.subr.mxu0 0.0
        %2026 = vmatpush1.msra.mxu0 0.0
        %2027 = vmatprep.subr.mxu0 0.0
        %2028 = vmatpush1.msra.mxu0 0.0
        %2029 = vmatprep.subr.mxu0 0.0
        %2030 = vmatpush1.msra.mxu0 0.0
        %2031 = vmatprep.subr.mxu0 0.0
        %2032 = vmatpush1.msra.mxu0 0.0
        %2033 = vmatprep.subr.mxu0 0.0
        %2034 = vmatpush1.msra.mxu0 0.0
        %2035 = vmatprep.subr.mxu0 0.0
        %2036 = vmatpush1.msra.mxu0 0.0
        %2037 = vmatprep.subr.mxu0 0.0
        %2038 = vmatpush1.msra.mxu0 0.0
        %2039 = vmatprep.subr.mxu0 0.0
        %2040 = vmatpush1.msra.mxu0 0.0
        %2041 = vmatprep.subr.mxu0 0.0
        %2042 = vmatpush1.msra.mxu0 0.0
        %2043 = vmatprep.subr.mxu0 0.0
        %2044 = vmatpush1.msra.mxu0 0.0
        %2045 = vmatprep.subr.mxu0 0.0
        %2046 = vmatpush1.msra.mxu0 0.0
        %2047 = vmatprep.subr.mxu0 0.0
        %2048 = vmatpush1.msra.mxu0 0.0
        %2049 = vmatprep.subr.mxu0 0.0
        %2050 = vmatpush1.msra.mxu0 0.0
        %2051 = vmatprep.subr.mxu0 0.0
        %2052 = vmatpush1.msra.mxu0 0.0
        %2053 = vmatprep.subr.mxu0 0.0
        %2054 = vmatpush1.msra.mxu0 0.0
        %2055 = vmatprep.subr.mxu0 0.0
        %2056 = vmatpush1.msra.mxu0 0.0
        %2057 = vmatprep.subr.mxu0 0.0
        %2058 = vmatpush1.msra.mxu0 0.0
        %2059 = vmatprep.subr.mxu0 0.0
        %2060 = vmatpush1.msra.mxu0 0.0
        %2061 = vmatprep.subr.mxu0 0.0
        %2062 = vmatpush1.msra.mxu0 0.0
        %2063 = vmatprep.subr.mxu0 0.0
        %2064 = vmatpush1.msra.mxu0 0.0
        %2065 = vmatprep.subr.mxu0 0.0
        %2066 = vmatpush1.msra.mxu0 0.0
        %2067 = vmatprep.subr.mxu0 0.0
        %2068 = vmatpush1.msra.mxu0 0.0
        %2069 = vmatprep.subr.mxu0 0.0
        %2070 = vmatpush1.msra.mxu0 0.0
        %2071 = vmatprep.subr.mxu0 0.0
        %2072 = vmatpush1.msra.mxu0 0.0
        %2073 = vmatprep.subr.mxu0 0.0
        %2074 = vmatpush1.msra.mxu0 0.0
        %2075 = vmatprep.mubr.f32.mxu0 0.0
        %2076 = vmatmul.mubr.f32.gmra.mrb[0].mxu0 %v2001
        %v2077 = vpop.f32.mrb[0].mxu0
        %v2078 = vadd.f32 0.0, %v2077
        %v2079 = vpop.f32.mrb[0].mxu0
        %2080 = vmatprep.mubr.f32.mxu0 0.0
        %2081 = vmatmul.mubr.f32.gmra.mrb[0].mxu0 %v2004
        %v2082 = vpop.f32.mrb[0].mxu0
        %v2083 = vadd.f32 0.0, %v2082
        %v2084 = vpop.f32.mrb[0].mxu0
        %2085 = vmatprep.mubr.f32.mxu0 0.0
        %2086 = vmatmul.mubr.f32.gmra.mrb[0].mxu0 %v2007
        %v2087 = vpop.f32.mrb[0].mxu0
        %v2088 = vadd.f32 0.0, %v2087
        %v2089 = vpop.f32.mrb[0].mxu0
        %2090 = vdwg.mxu0
        %2094 = vrot.lane.b32.xlu0 %v2078, 32
        %v2095 = vpop.permute.xlu0 %2094
        %2096 = vrot.lane.b32.xlu0 %v2083, 32
        %v2097 = vpop.permute.xlu0 %2096
        %2098 = vrot.lane.b32.xlu0 %v2088, 32
        %v2099 = vpop.permute.xlu0 %2098
        %vm2103 = vcmask 523520
        %2104 = vst.msk [vmem:[#allocation3] sm:$0xff] %vm2103, %v2095
        %2105 = vst.msk [vmem:[#allocation3 + $0x8] sm:$0xff] %vm2103, %v2097
        %vm2106 = vcmask 516352
        %2107 = vst.msk [vmem:[#allocation3 + $0x10] sm:$0x1] %vm2106, %v2099
        %2108 = vrot.lane.b32.xlu0 %v1534, 64
        %v2109 = vpop.permute.xlu0 %2108
        %2110 = vrot.lane.b32.xlu0 %v1538, 64
        %v2111 = vpop.permute.xlu0 %2110
        %2112 = vrot.lane.b32.xlu0 %v1544, 64
        %v2113 = vpop.permute.xlu0 %2112
        %2114 = vrot.lane.b32.xlu0 %v1536, 64
        %v2115 = vpop.permute.xlu0 %2114
        %2116 = vrot.lane.b32.xlu0 %v1540, 64
        %v2117 = vpop.permute.xlu0 %2116
        %2118 = vrot.lane.b32.xlu0 %v1546, 64
        %v2119 = vpop.permute.xlu0 %2118
        %v2120 = vsel %vm1616, %v2109, 0
        %v2122 = vsel %vm1616, %v2111, 0
        %v2124 = vsel %vm1616, %v2113, 0
        %v2126 = vsel %vm1616, %v2115, 0
        %v2128 = vsel %vm1616, %v2117, 0
        %v2130 = vsel %vm1616, %v2119, 0
        %2132 = vmatprep.subr.mxu0 0.0
        %2133 = vmatpush1.xpose.msra.mxu0 %v2126
        %2134 = vmatprep.subr.mxu0 0.0
        %2135 = vmatpush1.xpose.msra.mxu0 %v2128
        %2136 = vmatprep.subr.mxu0 0.0
        %2137 = vmatpush1.xpose.msra.mxu0 %v2130
        %2138 = vmatprep.subr.mxu0 0.0
        %2139 = vmatpush1.xpose.msra.mxu0 0.0
        %2140 = vmatprep.subr.mxu0 0.0
        %2141 = vmatpush1.xpose.msra.mxu0 0.0
        %2142 = vmatprep.subr.mxu0 0.0
        %2143 = vmatpush1.xpose.msra.mxu0 0.0
        %2144 = vmatprep.subr.mxu0 0.0
        %2145 = vmatpush1.xpose.msra.mxu0 0.0
        %2146 = vmatprep.subr.mxu0 0.0
        %2147 = vmatpush1.xpose.msra.mxu0 0.0
        %2148 = vmatprep.subr.mxu0 0.0
        %2149 = vmatpush1.xpose.msra.mxu0 0.0
        %2150 = vmatprep.subr.mxu0 0.0
        %2151 = vmatpush1.xpose.msra.mxu0 0.0
        %2152 = vmatprep.subr.mxu0 0.0
        %2153 = vmatpush1.xpose.msra.mxu0 0.0
        %2154 = vmatprep.subr.mxu0 0.0
        %2155 = vmatpush1.xpose.msra.mxu0 0.0
        %2156 = vmatprep.subr.mxu0 0.0
        %2157 = vmatpush1.xpose.msra.mxu0 0.0
        %2158 = vmatprep.subr.mxu0 0.0
        %2159 = vmatpush1.xpose.msra.mxu0 0.0
        %2160 = vmatprep.subr.mxu0 0.0
        %2161 = vmatpush1.xpose.msra.mxu0 0.0
        %2162 = vmatprep.subr.mxu0 0.0
        %2163 = vmatpush1.xpose.msra.mxu0 0.0
        %2164 = vmatprep.subr.mxu0 0.0
        %2165 = vmatpush1.xpose.msra.mxu0 0.0
        %2166 = vmatprep.subr.mxu0 0.0
        %2167 = vmatpush1.xpose.msra.mxu0 0.0
        %2168 = vmatprep.subr.mxu0 0.0
        %2169 = vmatpush1.xpose.msra.mxu0 0.0
        %2170 = vmatprep.subr.mxu0 0.0
        %2171 = vmatpush1.xpose.msra.mxu0 0.0
        %2172 = vmatprep.subr.mxu0 0.0
        %2173 = vmatpush1.xpose.msra.mxu0 0.0
        %2174 = vmatprep.subr.mxu0 0.0
        %2175 = vmatpush1.xpose.msra.mxu0 0.0
        %2176 = vmatprep.subr.mxu0 0.0
        %2177 = vmatpush1.xpose.msra.mxu0 0.0
        %2178 = vmatprep.subr.mxu0 0.0
        %2179 = vmatpush1.xpose.msra.mxu0 0.0
        %2180 = vmatprep.subr.mxu0 0.0
        %2181 = vmatpush1.xpose.msra.mxu0 0.0
        %2182 = vmatprep.subr.mxu0 0.0
        %2183 = vmatpush1.xpose.msra.mxu0 0.0
        %2184 = vmatprep.subr.mxu0 0.0
        %2185 = vmatpush1.xpose.msra.mxu0 0.0
        %2186 = vmatprep.subr.mxu0 0.0
        %2187 = vmatpush1.xpose.msra.mxu0 0.0
        %2188 = vmatprep.subr.mxu0 0.0
        %2189 = vmatpush1.xpose.msra.mxu0 0.0
        %2190 = vmatprep.subr.mxu0 0.0
        %2191 = vmatpush1.xpose.msra.mxu0 0.0
        %2192 = vmatprep.subr.mxu0 0.0
        %2193 = vmatpush1.xpose.msra.mxu0 0.0
        %2194 = vmatprep.subr.mxu0 0.0
        %2195 = vmatpush1.xpose.msra.mxu0 0.0
        %2196 = vmatprep.mubr.f32.mxu0 0.0
        %2197 = vmatmul.mubr.f32.gmra.mrb[0].mxu0 %v2120
        %v2198 = vpop.f32.mrb[0].mxu0
        %v2199 = vadd.f32 0.0, %v2198
        %v2200 = vpop.f32.mrb[0].mxu0
        %2201 = vmatprep.mubr.f32.mxu0 0.0
        %2202 = vmatmul.mubr.f32.gmra.mrb[0].mxu0 %v2122
        %v2203 = vpop.f32.mrb[0].mxu0
        %v2204 = vadd.f32 0.0, %v2203
        %v2205 = vpop.f32.mrb[0].mxu0
        %2206 = vmatprep.mubr.f32.mxu0 0.0
        %2207 = vmatmul.mubr.f32.gmra.mrb[0].mxu0 %v2124
        %v2208 = vpop.f32.mrb[0].mxu0
        %v2209 = vadd.f32 0.0, %v2208
        %v2210 = vpop.f32.mrb[0].mxu0
        %2211 = vdwg.mxu0
        %v2212 = vmul.f32 %v2199, 0.17677669
        %v2213 = vmul.f32 %v2204, 0.17677669
        %v2214 = vmul.f32 %v2209, 0.17677669
        %v2215 = vsel %vm1718, %v2212, -inf
        %2216 = vmax.xlane.f32.xlu0 %v2215
        %v2217 = vpop.xlane.xlu0 %2216
        %v2218 = vsel %vm1718, %v2213, -inf
        %2219 = vmax.xlane.f32.xlu0 %v2218
        %v2220 = vpop.xlane.xlu0 %2219
        %v2221 = vsel %vm1725, %v2214, -inf
        %2222 = vmax.xlane.f32.xlu0 %v2221
        %v2223 = vpop.xlane.xlu0 %2222
        %v2224 = vsub.f32 %v2212, %v2217
        %v2225 = vsub.f32 %v2213, %v2220
        %v2226 = vsub.f32 %v2214, %v2223
        %v2227 = vmul.f32 %v2224, 1.442695
        %v2228 = vpow.pop %v2227
        %v2229 = vmul.f32 %v2225, 1.442695
        %v2230 = vpow.pop %v2229
        %v2231 = vmul.f32 %v2226, 1.442695
        %v2232 = vpow.pop %v2231
        %v2233 = vsel %vm1718, %v2228, 0.0
        %2234 = vadd.xlane.f32.xlu0 %v2233
        %v2235 = vpop.xlane.xlu0 %2234
        %v2236 = vsel %vm1718, %v2230, 0.0
        %2237 = vadd.xlane.f32.xlu0 %v2236
        %v2238 = vpop.xlane.xlu0 %2237
        %v2239 = vsel %vm1725, %v2232, 0.0
        %2240 = vadd.xlane.f32.xlu0 %v2239
        %v2241 = vpop.xlane.xlu0 %2240
        %v2242 = vrcp.pop %v2235
        %v2243 = vrcp.pop %v2238
        %v2244 = vrcp.pop %v2241
        %v2245 = vmul.f32 %v2228, %v2242
        %v2246 = vmul.f32 %v2230, %v2243
        %v2247 = vmul.f32 %v2232, %v2244
        %2248 = vrot.lane.b32.xlu0 %v1595, 64
        %v2249 = vpop.permute.xlu0 %2248
        %2250 = vrot.lane.b32.xlu0 %v1598, 64
        %v2251 = vpop.permute.xlu0 %2250
        %2252 = vrot.lane.b32.xlu0 %v1603, 64
        %v2253 = vpop.permute.xlu0 %2252
        %v2257 = vsel %vm1718, %v2245, 0
        %v2260 = vsel %vm1718, %v2246, 0
        %v2263 = vsel %vm1718, %v2247, 0
        %v2265 = vsel %vm1762, %v2253, 0
        %2267 = vmatprep.subr.mxu0 0.0
        %2268 = vmatpush1.msra.mxu0 %v2249
        %2269 = vmatprep.subr.mxu0 0.0
        %2270 = vmatpush1.msra.mxu0 %v2251
        %2271 = vmatprep.subr.mxu0 0.0
        %2272 = vmatpush1.msra.mxu0 %v2265
        %2273 = vmatprep.subr.mxu0 0.0
        %2274 = vmatpush1.msra.mxu0 0.0
        %2275 = vmatprep.subr.mxu0 0.0
        %2276 = vmatpush1.msra.mxu0 0.0
        %2277 = vmatprep.subr.mxu0 0.0
        %2278 = vmatpush1.msra.mxu0 0.0
        %2279 = vmatprep.subr.mxu0 0.0
        %2280 = vmatpush1.msra.mxu0 0.0
        %2281 = vmatprep.subr.mxu0 0.0
        %2282 = vmatpush1.msra.mxu0 0.0
        %2283 = vmatprep.subr.mxu0 0.0
        %2284 = vmatpush1.msra.mxu0 0.0
        %2285 = vmatprep.subr.mxu0 0.0
        %2286 = vmatpush1.msra.mxu0 0.0
        %2287 = vmatprep.subr.mxu0 0.0
        %2288 = vmatpush1.msra.mxu0 0.0
        %2289 = vmatprep.subr.mxu0 0.0
        %2290 = vmatpush1.msra.mxu0 0.0
        %2291 = vmatprep.subr.mxu0 0.0
        %2292 = vmatpush1.msra.mxu0 0.0
        %2293 = vmatprep.subr.mxu0 0.0
        %2294 = vmatpush1.msra.mxu0 0.0
        %2295 = vmatprep.subr.mxu0 0.0
        %2296 = vmatpush1.msra.mxu0 0.0
        %2297 = vmatprep.subr.mxu0 0.0
        %2298 = vmatpush1.msra.mxu0 0.0
        %2299 = vmatprep.subr.mxu0 0.0
        %2300 = vmatpush1.msra.mxu0 0.0
        %2301 = vmatprep.subr.mxu0 0.0
        %2302 = vmatpush1.msra.mxu0 0.0
        %2303 = vmatprep.subr.mxu0 0.0
        %2304 = vmatpush1.msra.mxu0 0.0
        %2305 = vmatprep.subr.mxu0 0.0
        %2306 = vmatpush1.msra.mxu0 0.0
        %2307 = vmatprep.subr.mxu0 0.0
        %2308 = vmatpush1.msra.mxu0 0.0
        %2309 = vmatprep.subr.mxu0 0.0
        %2310 = vmatpush1.msra.mxu0 0.0
        %2311 = vmatprep.subr.mxu0 0.0
        %2312 = vmatpush1.msra.mxu0 0.0
        %2313 = vmatprep.subr.mxu0 0.0
        %2314 = vmatpush1.msra.mxu0 0.0
        %2315 = vmatprep.subr.mxu0 0.0
        %2316 = vmatpush1.msra.mxu0 0.0
        %2317 = vmatprep.subr.mxu0 0.0
        %2318 = vmatpush1.msra.mxu0 0.0
        %2319 = vmatprep.subr.mxu0 0.0
        %2320 = vmatpush1.msra.mxu0 0.0
        %2321 = vmatprep.subr.mxu0 0.0
        %2322 = vmatpush1.msra.mxu0 0.0
        %2323 = vmatprep.subr.mxu0 0.0
        %2324 = vmatpush1.msra.mxu0 0.0
        %2325 = vmatprep.subr.mxu0 0.0
        %2326 = vmatpush1.msra.mxu0 0.0
        %2327 = vmatprep.subr.mxu0 0.0
        %2328 = vmatpush1.msra.mxu0 0.0
        %2329 = vmatprep.subr.mxu0 0.0
        %2330 = vmatpush1.msra.mxu0 0.0
        %2331 = vmatprep.mubr.f32.mxu0 0.0
        %2332 = vmatmul.mubr.f32.gmra.mrb[0].mxu0 %v2257
        %v2333 = vpop.f32.mrb[0].mxu0
        %v2334 = vadd.f32 0.0, %v2333
        %v2335 = vpop.f32.mrb[0].mxu0
        %2336 = vmatprep.mubr.f32.mxu0 0.0
        %2337 = vmatmul.mubr.f32.gmra.mrb[0].mxu0 %v2260
        %v2338 = vpop.f32.mrb[0].mxu0
        %v2339 = vadd.f32 0.0, %v2338
        %v2340 = vpop.f32.mrb[0].mxu0
        %2341 = vmatprep.mubr.f32.mxu0 0.0
        %2342 = vmatmul.mubr.f32.gmra.mrb[0].mxu0 %v2263
        %v2343 = vpop.f32.mrb[0].mxu0
        %v2344 = vadd.f32 0.0, %v2343
        %v2345 = vpop.f32.mrb[0].mxu0
        %2346 = vdwg.mxu0
        %2350 = vrot.lane.b32.xlu0 %v2334, 64
        %v2351 = vpop.permute.xlu0 %2350
        %2352 = vrot.lane.b32.xlu0 %v2339, 64
        %v2353 = vpop.permute.xlu0 %2352
        %2354 = vrot.lane.b32.xlu0 %v2344, 64
        %v2355 = vpop.permute.xlu0 %2354
        %vm2359 = vcmask 785920
        %2360 = vst.msk [vmem:[#allocation3] sm:$0xff] %vm2359, %v2351
        %2361 = vst.msk [vmem:[#allocation3 + $0x8] sm:$0xff] %vm2359, %v2353
        %vm2362 = vcmask 778752
        %2363 = vst.msk [vmem:[#allocation3 + $0x10] sm:$0x1] %vm2362, %v2355
        %2364 = vrot.lane.b32.xlu0 %v1534, 32
        %v2365 = vpop.permute.xlu0 %2364
        %2366 = vrot.lane.b32.xlu0 %v1538, 32
        %v2367 = vpop.permute.xlu0 %2366
        %2368 = vrot.lane.b32.xlu0 %v1544, 32
        %v2369 = vpop.permute.xlu0 %2368
        %2370 = vrot.lane.b32.xlu0 %v1536, 32
        %v2371 = vpop.permute.xlu0 %2370
        %2372 = vrot.lane.b32.xlu0 %v1540, 32
        %v2373 = vpop.permute.xlu0 %2372
        %2374 = vrot.lane.b32.xlu0 %v1546, 32
        %v2375 = vpop.permute.xlu0 %2374
        %v2376 = vsel %vm1616, %v2365, 0
        %v2378 = vsel %vm1616, %v2367, 0
        %v2380 = vsel %vm1616, %v2369, 0
        %v2382 = vsel %vm1616, %v2371, 0
        %v2384 = vsel %vm1616, %v2373, 0
        %v2386 = vsel %vm1616, %v2375, 0
        %2388 = vmatprep.subr.mxu0 0.0
        %2389 = vmatpush1.xpose.msra.mxu0 %v2382
        %2390 = vmatprep.subr.mxu0 0.0
        %2391 = vmatpush1.xpose.msra.mxu0 %v2384
        %2392 = vmatprep.subr.mxu0 0.0
        %2393 = vmatpush1.xpose.msra.mxu0 %v2386
        %2394 = vmatprep.subr.mxu0 0.0
        %2395 = vmatpush1.xpose.msra.mxu0 0.0
        %2396 = vmatprep.subr.mxu0 0.0
        %2397 = vmatpush1.xpose.msra.mxu0 0.0
        %2398 = vmatprep.subr.mxu0 0.0
        %2399 = vmatpush1.xpose.msra.mxu0 0.0
        %2400 = vmatprep.subr.mxu0 0.0
        %2401 = vmatpush1.xpose.msra.mxu0 0.0
        %2402 = vmatprep.subr.mxu0 0.0
        %2403 = vmatpush1.xpose.msra.mxu0 0.0
        %2404 = vmatprep.subr.mxu0 0.0
        %2405 = vmatpush1.xpose.msra.mxu0 0.0
        %2406 = vmatprep.subr.mxu0 0.0
        %2407 = vmatpush1.xpose.msra.mxu0 0.0
        %2408 = vmatprep.subr.mxu0 0.0
        %2409 = vmatpush1.xpose.msra.mxu0 0.0
        %2410 = vmatprep.subr.mxu0 0.0
        %2411 = vmatpush1.xpose.msra.mxu0 0.0
        %2412 = vmatprep.subr.mxu0 0.0
        %2413 = vmatpush1.xpose.msra.mxu0 0.0
        %2414 = vmatprep.subr.mxu0 0.0
        %2415 = vmatpush1.xpose.msra.mxu0 0.0
        %2416 = vmatprep.subr.mxu0 0.0
        %2417 = vmatpush1.xpose.msra.mxu0 0.0
        %2418 = vmatprep.subr.mxu0 0.0
        %2419 = vmatpush1.xpose.msra.mxu0 0.0
        %2420 = vmatprep.subr.mxu0 0.0
        %2421 = vmatpush1.xpose.msra.mxu0 0.0
        %2422 = vmatprep.subr.mxu0 0.0
        %2423 = vmatpush1.xpose.msra.mxu0 0.0
        %2424 = vmatprep.subr.mxu0 0.0
        %2425 = vmatpush1.xpose.msra.mxu0 0.0
        %2426 = vmatprep.subr.mxu0 0.0
        %2427 = vmatpush1.xpose.msra.mxu0 0.0
        %2428 = vmatprep.subr.mxu0 0.0
        %2429 = vmatpush1.xpose.msra.mxu0 0.0
        %2430 = vmatprep.subr.mxu0 0.0
        %2431 = vmatpush1.xpose.msra.mxu0 0.0
        %2432 = vmatprep.subr.mxu0 0.0
        %2433 = vmatpush1.xpose.msra.mxu0 0.0
        %2434 = vmatprep.subr.mxu0 0.0
        %2435 = vmatpush1.xpose.msra.mxu0 0.0
        %2436 = vmatprep.subr.mxu0 0.0
        %2437 = vmatpush1.xpose.msra.mxu0 0.0
        %2438 = vmatprep.subr.mxu0 0.0
        %2439 = vmatpush1.xpose.msra.mxu0 0.0
        %2440 = vmatprep.subr.mxu0 0.0
        %2441 = vmatpush1.xpose.msra.mxu0 0.0
        %2442 = vmatprep.subr.mxu0 0.0
        %2443 = vmatpush1.xpose.msra.mxu0 0.0
        %2444 = vmatprep.subr.mxu0 0.0
        %2445 = vmatpush1.xpose.msra.mxu0 0.0
        %2446 = vmatprep.subr.mxu0 0.0
        %2447 = vmatpush1.xpose.msra.mxu0 0.0
        %2448 = vmatprep.subr.mxu0 0.0
        %2449 = vmatpush1.xpose.msra.mxu0 0.0
        %2450 = vmatprep.subr.mxu0 0.0
        %2451 = vmatpush1.xpose.msra.mxu0 0.0
        %2452 = vmatprep.mubr.f32.mxu0 0.0
        %2453 = vmatmul.mubr.f32.gmra.mrb[0].mxu0 %v2376
        %v2454 = vpop.f32.mrb[0].mxu0
        %v2455 = vadd.f32 0.0, %v2454
        %v2456 = vpop.f32.mrb[0].mxu0
        %2457 = vmatprep.mubr.f32.mxu0 0.0
        %2458 = vmatmul.mubr.f32.gmra.mrb[0].mxu0 %v2378
        %v2459 = vpop.f32.mrb[0].mxu0
        %v2460 = vadd.f32 0.0, %v2459
        %v2461 = vpop.f32.mrb[0].mxu0
        %2462 = vmatprep.mubr.f32.mxu0 0.0
        %2463 = vmatmul.mubr.f32.gmra.mrb[0].mxu0 %v2380
        %v2464 = vpop.f32.mrb[0].mxu0
        %v2465 = vadd.f32 0.0, %v2464
        %v2466 = vpop.f32.mrb[0].mxu0
        %2467 = vdwg.mxu0
        %v2468 = vmul.f32 %v2455, 0.17677669
        %v2469 = vmul.f32 %v2460, 0.17677669
        %v2470 = vmul.f32 %v2465, 0.17677669
        %v2471 = vsel %vm1718, %v2468, -inf
        %2472 = vmax.xlane.f32.xlu0 %v2471
        %v2473 = vpop.xlane.xlu0 %2472
        %v2474 = vsel %vm1718, %v2469, -inf
        %2475 = vmax.xlane.f32.xlu0 %v2474
        %v2476 = vpop.xlane.xlu0 %2475
        %v2477 = vsel %vm1725, %v2470, -inf
        %2478 = vmax.xlane.f32.xlu0 %v2477
        %v2479 = vpop.xlane.xlu0 %2478
        %v2480 = vsub.f32 %v2468, %v2473
        %v2481 = vsub.f32 %v2469, %v2476
        %v2482 = vsub.f32 %v2470, %v2479
        %v2483 = vmul.f32 %v2480, 1.442695
        %v2484 = vpow.pop %v2483
        %v2485 = vmul.f32 %v2481, 1.442695
        %v2486 = vpow.pop %v2485
        %v2487 = vmul.f32 %v2482, 1.442695
        %v2488 = vpow.pop %v2487
        %v2489 = vsel %vm1718, %v2484, 0.0
        %2490 = vadd.xlane.f32.xlu0 %v2489
        %v2491 = vpop.xlane.xlu0 %2490
        %v2492 = vsel %vm1718, %v2486, 0.0
        %2493 = vadd.xlane.f32.xlu0 %v2492
        %v2494 = vpop.xlane.xlu0 %2493
        %v2495 = vsel %vm1725, %v2488, 0.0
        %2496 = vadd.xlane.f32.xlu0 %v2495
        %v2497 = vpop.xlane.xlu0 %2496
        %v2498 = vrcp.pop %v2491
        %v2499 = vrcp.pop %v2494
        %v2500 = vrcp.pop %v2497
        %v2501 = vmul.f32 %v2484, %v2498
        %v2502 = vmul.f32 %v2486, %v2499
        %v2503 = vmul.f32 %v2488, %v2500
        %2504 = vrot.lane.b32.xlu0 %v1595, 32
        %v2505 = vpop.permute.xlu0 %2504
        %2506 = vrot.lane.b32.xlu0 %v1598, 32
        %v2507 = vpop.permute.xlu0 %2506
        %2508 = vrot.lane.b32.xlu0 %v1603, 32
        %v2509 = vpop.permute.xlu0 %2508
        %v2513 = vsel %vm1718, %v2501, 0
        %v2516 = vsel %vm1718, %v2502, 0
        %v2519 = vsel %vm1718, %v2503, 0
        %v2521 = vsel %vm1762, %v2509, 0
        %2523 = vmatprep.subr.mxu0 0.0
        %2524 = vmatpush1.msra.mxu0 %v2505
        %2525 = vmatprep.subr.mxu0 0.0
        %2526 = vmatpush1.msra.mxu0 %v2507
        %2527 = vmatprep.subr.mxu0 0.0
        %2528 = vmatpush1.msra.mxu0 %v2521
        %2529 = vmatprep.subr.mxu0 0.0
        %2530 = vmatpush1.msra.mxu0 0.0
        %2531 = vmatprep.subr.mxu0 0.0
        %2532 = vmatpush1.msra.mxu0 0.0
        %2533 = vmatprep.subr.mxu0 0.0
        %2534 = vmatpush1.msra.mxu0 0.0
        %2535 = vmatprep.subr.mxu0 0.0
        %2536 = vmatpush1.msra.mxu0 0.0
        %2537 = vmatprep.subr.mxu0 0.0
        %2538 = vmatpush1.msra.mxu0 0.0
        %2539 = vmatprep.subr.mxu0 0.0
        %2540 = vmatpush1.msra.mxu0 0.0
        %2541 = vmatprep.subr.mxu0 0.0
        %2542 = vmatpush1.msra.mxu0 0.0
        %2543 = vmatprep.subr.mxu0 0.0
        %2544 = vmatpush1.msra.mxu0 0.0
        %2545 = vmatprep.subr.mxu0 0.0
        %2546 = vmatpush1.msra.mxu0 0.0
        %2547 = vmatprep.subr.mxu0 0.0
        %2548 = vmatpush1.msra.mxu0 0.0
        %2549 = vmatprep.subr.mxu0 0.0
        %2550 = vmatpush1.msra.mxu0 0.0
        %2551 = vmatprep.subr.mxu0 0.0
        %2552 = vmatpush1.msra.mxu0 0.0
        %2553 = vmatprep.subr.mxu0 0.0
        %2554 = vmatpush1.msra.mxu0 0.0
        %2555 = vmatprep.subr.mxu0 0.0
        %2556 = vmatpush1.msra.mxu0 0.0
        %2557 = vmatprep.subr.mxu0 0.0
        %2558 = vmatpush1.msra.mxu0 0.0
        %2559 = vmatprep.subr.mxu0 0.0
        %2560 = vmatpush1.msra.mxu0 0.0
        %2561 = vmatprep.subr.mxu0 0.0
        %2562 = vmatpush1.msra.mxu0 0.0
        %2563 = vmatprep.subr.mxu0 0.0
        %2564 = vmatpush1.msra.mxu0 0.0
        %2565 = vmatprep.subr.mxu0 0.0
        %2566 = vmatpush1.msra.mxu0 0.0
        %2567 = vmatprep.subr.mxu0 0.0
        %2568 = vmatpush1.msra.mxu0 0.0
        %2569 = vmatprep.subr.mxu0 0.0
        %2570 = vmatpush1.msra.mxu0 0.0
        %2571 = vmatprep.subr.mxu0 0.0
        %2572 = vmatpush1.msra.mxu0 0.0
        %2573 = vmatprep.subr.mxu0 0.0
        %2574 = vmatpush1.msra.mxu0 0.0
        %2575 = vmatprep.subr.mxu0 0.0
        %2576 = vmatpush1.msra.mxu0 0.0
        %2577 = vmatprep.subr.mxu0 0.0
        %2578 = vmatpush1.msra.mxu0 0.0
        %2579 = vmatprep.subr.mxu0 0.0
        %2580 = vmatpush1.msra.mxu0 0.0
        %2581 = vmatprep.subr.mxu0 0.0
        %2582 = vmatpush1.msra.mxu0 0.0
        %2583 = vmatprep.subr.mxu0 0.0
        %2584 = vmatpush1.msra.mxu0 0.0
        %2585 = vmatprep.subr.mxu0 0.0
        %2586 = vmatpush1.msra.mxu0 0.0
        %2587 = vmatprep.mubr.f32.mxu0 0.0
        %2588 = vmatmul.mubr.f32.gmra.mrb[0].mxu0 %v2513
        %v2589 = vpop.f32.mrb[0].mxu0
        %v2590 = vadd.f32 0.0, %v2589
        %v2591 = vpop.f32.mrb[0].mxu0
        %2592 = vmatprep.mubr.f32.mxu0 0.0
        %2593 = vmatmul.mubr.f32.gmra.mrb[0].mxu0 %v2516
        %v2594 = vpop.f32.mrb[0].mxu0
        %v2595 = vadd.f32 0.0, %v2594
        %v2596 = vpop.f32.mrb[0].mxu0
        %2597 = vmatprep.mubr.f32.mxu0 0.0
        %2598 = vmatmul.mubr.f32.gmra.mrb[0].mxu0 %v2519
        %v2599 = vpop.f32.mrb[0].mxu0
        %v2600 = vadd.f32 0.0, %v2599
        %v2601 = vpop.f32.mrb[0].mxu0
        %2602 = vdwg.mxu0
        %2606 = vrot.lane.b32.xlu0 %v2590, 96
        %v2607 = vpop.permute.xlu0 %2606
        %2608 = vrot.lane.b32.xlu0 %v2595, 96
        %v2609 = vpop.permute.xlu0 %2608
        %2610 = vrot.lane.b32.xlu0 %v2600, 96
        %v2611 = vpop.permute.xlu0 %2610
        %vm2615 = vcmask 1048320
        %2616 = vst.msk [vmem:[#allocation3] sm:$0xff] %vm2615, %v2607
        %2617 = vst.msk [vmem:[#allocation3 + $0x8] sm:$0xff] %vm2615, %v2609
        %vm2618 = vcmask 1041152
        %2619 = vst.msk [vmem:[#allocation3 + $0x10] sm:$0x1] %vm2618, %v2611
        %vm2622 = vcmask 1046528
        %v2623 = vrot.slane %v1544, 1
        %v2624 = vrot.slane %v1548, 1
        %v2625 = vsel %vm2622, %v2623, %v2624
        %v2626 = vrot.slane %v1554, 1
        %v2627 = vsel %vm2622, %v2624, %v2626
        %v2630 = vrot.slane %v1546, 1
        %v2631 = vrot.slane %v1550, 1
        %v2632 = vsel %vm2622, %v2630, %v2631
        %v2633 = vrot.slane %v1556, 1
        %v2634 = vsel %vm2622, %v2631, %v2633
        %v2635 = vsel %vm1616, %v2625, 0
        %v2637 = vsel %vm1616, %v2627, 0
        %v2639 = vsel %vm1616, %v2626, 0
        %v2641 = vsel %vm1616, %v2632, 0
        %v2643 = vsel %vm1616, %v2634, 0
        %v2645 = vsel %vm1616, %v2633, 0
        %2647 = vmatprep.subr.mxu0 0.0
        %2648 = vmatpush1.xpose.msra.mxu0 %v2641
        %2649 = vmatprep.subr.mxu0 0.0
        %2650 = vmatpush1.xpose.msra.mxu0 %v2643
        %2651 = vmatprep.subr.mxu0 0.0
        %2652 = vmatpush1.xpose.msra.mxu0 %v2645
        %2653 = vmatprep.subr.mxu0 0.0
        %2654 = vmatpush1.xpose.msra.mxu0 0.0
        %2655 = vmatprep.subr.mxu0 0.0
        %2656 = vmatpush1.xpose.msra.mxu0 0.0
        %2657 = vmatprep.subr.mxu0 0.0
        %2658 = vmatpush1.xpose.msra.mxu0 0.0
        %2659 = vmatprep.subr.mxu0 0.0
        %2660 = vmatpush1.xpose.msra.mxu0 0.0
        %2661 = vmatprep.subr.mxu0 0.0
        %2662 = vmatpush1.xpose.msra.mxu0 0.0
        %2663 = vmatprep.subr.mxu0 0.0
        %2664 = vmatpush1.xpose.msra.mxu0 0.0
        %2665 = vmatprep.subr.mxu0 0.0
        %2666 = vmatpush1.xpose.msra.mxu0 0.0
        %2667 = vmatprep.subr.mxu0 0.0
        %2668 = vmatpush1.xpose.msra.mxu0 0.0
        %2669 = vmatprep.subr.mxu0 0.0
        %2670 = vmatpush1.xpose.msra.mxu0 0.0
        %2671 = vmatprep.subr.mxu0 0.0
        %2672 = vmatpush1.xpose.msra.mxu0 0.0
        %2673 = vmatprep.subr.mxu0 0.0
        %2674 = vmatpush1.xpose.msra.mxu0 0.0
        %2675 = vmatprep.subr.mxu0 0.0
        %2676 = vmatpush1.xpose.msra.mxu0 0.0
        %2677 = vmatprep.subr.mxu0 0.0
        %2678 = vmatpush1.xpose.msra.mxu0 0.0
        %2679 = vmatprep.subr.mxu0 0.0
        %2680 = vmatpush1.xpose.msra.mxu0 0.0
        %2681 = vmatprep.subr.mxu0 0.0
        %2682 = vmatpush1.xpose.msra.mxu0 0.0
        %2683 = vmatprep.subr.mxu0 0.0
        %2684 = vmatpush1.xpose.msra.mxu0 0.0
        %2685 = vmatprep.subr.mxu0 0.0
        %2686 = vmatpush1.xpose.msra.mxu0 0.0
        %2687 = vmatprep.subr.mxu0 0.0
        %2688 = vmatpush1.xpose.msra.mxu0 0.0
        %2689 = vmatprep.subr.mxu0 0.0
        %2690 = vmatpush1.xpose.msra.mxu0 0.0
        %2691 = vmatprep.subr.mxu0 0.0
        %2692 = vmatpush1.xpose.msra.mxu0 0.0
        %2693 = vmatprep.subr.mxu0 0.0
        %2694 = vmatpush1.xpose.msra.mxu0 0.0
        %2695 = vmatprep.subr.mxu0 0.0
        %2696 = vmatpush1.xpose.msra.mxu0 0.0
        %2697 = vmatprep.subr.mxu0 0.0
        %2698 = vmatpush1.xpose.msra.mxu0 0.0
        %2699 = vmatprep.subr.mxu0 0.0
        %2700 = vmatpush1.xpose.msra.mxu0 0.0
        %2701 = vmatprep.subr.mxu0 0.0
        %2702 = vmatpush1.xpose.msra.mxu0 0.0
        %2703 = vmatprep.subr.mxu0 0.0
        %2704 = vmatpush1.xpose.msra.mxu0 0.0
        %2705 = vmatprep.subr.mxu0 0.0
        %2706 = vmatpush1.xpose.msra.mxu0 0.0
        %2707 = vmatprep.subr.mxu0 0.0
        %2708 = vmatpush1.xpose.msra.mxu0 0.0
        %2709 = vmatprep.subr.mxu0 0.0
        %2710 = vmatpush1.xpose.msra.mxu0 0.0
        %2711 = vmatprep.mubr.f32.mxu0 0.0
        %2712 = vmatmul.mubr.f32.gmra.mrb[0].mxu0 %v2635
        %v2713 = vpop.f32.mrb[0].mxu0
        %v2714 = vadd.f32 0.0, %v2713
        %v2715 = vpop.f32.mrb[0].mxu0
        %2716 = vmatprep.mubr.f32.mxu0 0.0
        %2717 = vmatmul.mubr.f32.gmra.mrb[0].mxu0 %v2637
        %v2718 = vpop.f32.mrb[0].mxu0
        %v2719 = vadd.f32 0.0, %v2718
        %v2720 = vpop.f32.mrb[0].mxu0
        %2721 = vmatprep.mubr.f32.mxu0 0.0
        %2722 = vmatmul.mubr.f32.gmra.mrb[0].mxu0 %v2639
        %v2723 = vpop.f32.mrb[0].mxu0
        %v2724 = vadd.f32 0.0, %v2723
        %v2725 = vpop.f32.mrb[0].mxu0
        %2726 = vdwg.mxu0
        %v2727 = vmul.f32 %v2714, 0.17677669
        %v2728 = vmul.f32 %v2719, 0.17677669
        %v2729 = vmul.f32 %v2724, 0.17677669
        %v2730 = vsel %vm1718, %v2727, -inf
        %2731 = vmax.xlane.f32.xlu0 %v2730
        %v2732 = vpop.xlane.xlu0 %2731
        %v2733 = vsel %vm1718, %v2728, -inf
        %2734 = vmax.xlane.f32.xlu0 %v2733
        %v2735 = vpop.xlane.xlu0 %2734
        %v2736 = vsel %vm1725, %v2729, -inf
        %2737 = vmax.xlane.f32.xlu0 %v2736
        %v2738 = vpop.xlane.xlu0 %2737
        %v2739 = vsub.f32 %v2727, %v2732
        %v2740 = vsub.f32 %v2728, %v2735
        %v2741 = vsub.f32 %v2729, %v2738
        %v2742 = vmul.f32 %v2739, 1.442695
        %v2743 = vpow.pop %v2742
        %v2744 = vmul.f32 %v2740, 1.442695
        %v2745 = vpow.pop %v2744
        %v2746 = vmul.f32 %v2741, 1.442695
        %v2747 = vpow.pop %v2746
        %v2748 = vsel %vm1718, %v2743, 0.0
        %2749 = vadd.xlane.f32.xlu0 %v2748
        %v2750 = vpop.xlane.xlu0 %2749
        %v2751 = vsel %vm1718, %v2745, 0.0
        %2752 = vadd.xlane.f32.xlu0 %v2751
        %v2753 = vpop.xlane.xlu0 %2752
        %v2754 = vsel %vm1725, %v2747, 0.0
        %2755 = vadd.xlane.f32.xlu0 %v2754
        %v2756 = vpop.xlane.xlu0 %2755
        %v2757 = vrcp.pop %v2750
        %v2758 = vrcp.pop %v2753
        %v2759 = vrcp.pop %v2756
        %v2760 = vmul.f32 %v2743, %v2757
        %v2761 = vmul.f32 %v2745, %v2758
        %v2762 = vmul.f32 %v2747, %v2759
        %v2765 = vrot.slane %v1603, 1
        %v2766 = vrot.slane %v1606, 1
        %v2767 = vsel %vm2622, %v2765, %v2766
        %v2768 = vrot.slane %v1611, 1
        %v2769 = vsel %vm2622, %v2766, %v2768
        %v2773 = vsel %vm1718, %v2760, 0
        %v2776 = vsel %vm1718, %v2761, 0
        %v2779 = vsel %vm1718, %v2762, 0
        %v2781 = vsel %vm1762, %v2768, 0
        %2783 = vmatprep.subr.mxu0 0.0
        %2784 = vmatpush1.msra.mxu0 %v2767
        %2785 = vmatprep.subr.mxu0 0.0
        %2786 = vmatpush1.msra.mxu0 %v2769
        %2787 = vmatprep.subr.mxu0 0.0
        %2788 = vmatpush1.msra.mxu0 %v2781
        %2789 = vmatprep.subr.mxu0 0.0
        %2790 = vmatpush1.msra.mxu0 0.0
        %2791 = vmatprep.subr.mxu0 0.0
        %2792 = vmatpush1.msra.mxu0 0.0
        %2793 = vmatprep.subr.mxu0 0.0
        %2794 = vmatpush1.msra.mxu0 0.0
        %2795 = vmatprep.subr.mxu0 0.0
        %2796 = vmatpush1.msra.mxu0 0.0
        %2797 = vmatprep.subr.mxu0 0.0
        %2798 = vmatpush1.msra.mxu0 0.0
        %2799 = vmatprep.subr.mxu0 0.0
        %2800 = vmatpush1.msra.mxu0 0.0
        %2801 = vmatprep.subr.mxu0 0.0
        %2802 = vmatpush1.msra.mxu0 0.0
        %2803 = vmatprep.subr.mxu0 0.0
        %2804 = vmatpush1.msra.mxu0 0.0
        %2805 = vmatprep.subr.mxu0 0.0
        %2806 = vmatpush1.msra.mxu0 0.0
        %2807 = vmatprep.subr.mxu0 0.0
        %2808 = vmatpush1.msra.mxu0 0.0
        %2809 = vmatprep.subr.mxu0 0.0
        %2810 = vmatpush1.msra.mxu0 0.0
        %2811 = vmatprep.subr.mxu0 0.0
        %2812 = vmatpush1.msra.mxu0 0.0
        %2813 = vmatprep.subr.mxu0 0.0
        %2814 = vmatpush1.msra.mxu0 0.0
        %2815 = vmatprep.subr.mxu0 0.0
        %2816 = vmatpush1.msra.mxu0 0.0
        %2817 = vmatprep.subr.mxu0 0.0
        %2818 = vmatpush1.msra.mxu0 0.0
        %2819 = vmatprep.subr.mxu0 0.0
        %2820 = vmatpush1.msra.mxu0 0.0
        %2821 = vmatprep.subr.mxu0 0.0
        %2822 = vmatpush1.msra.mxu0 0.0
        %2823 = vmatprep.subr.mxu0 0.0
        %2824 = vmatpush1.msra.mxu0 0.0
        %2825 = vmatprep.subr.mxu0 0.0
        %2826 = vmatpush1.msra.mxu0 0.0
        %2827 = vmatprep.subr.mxu0 0.0
        %2828 = vmatpush1.msra.mxu0 0.0
        %2829 = vmatprep.subr.mxu0 0.0
        %2830 = vmatpush1.msra.mxu0 0.0
        %2831 = vmatprep.subr.mxu0 0.0
        %2832 = vmatpush1.msra.mxu0 0.0
        %2833 = vmatprep.subr.mxu0 0.0
        %2834 = vmatpush1.msra.mxu0 0.0
        %2835 = vmatprep.subr.mxu0 0.0
        %2836 = vmatpush1.msra.mxu0 0.0
        %2837 = vmatprep.subr.mxu0 0.0
        %2838 = vmatpush1.msra.mxu0 0.0
        %2839 = vmatprep.subr.mxu0 0.0
        %2840 = vmatpush1.msra.mxu0 0.0
        %2841 = vmatprep.subr.mxu0 0.0
        %2842 = vmatpush1.msra.mxu0 0.0
        %2843 = vmatprep.subr.mxu0 0.0
        %2844 = vmatpush1.msra.mxu0 0.0
        %2845 = vmatprep.subr.mxu0 0.0
        %2846 = vmatpush1.msra.mxu0 0.0
        %2847 = vmatprep.mubr.f32.mxu0 0.0
        %2848 = vmatmul.mubr.f32.gmra.mrb[0].mxu0 %v2773
        %v2849 = vpop.f32.mrb[0].mxu0
        %v2850 = vadd.f32 0.0, %v2849
        %v2851 = vpop.f32.mrb[0].mxu0
        %2852 = vmatprep.mubr.f32.mxu0 0.0
        %2853 = vmatmul.mubr.f32.gmra.mrb[0].mxu0 %v2776
        %v2854 = vpop.f32.mrb[0].mxu0
        %v2855 = vadd.f32 0.0, %v2854
        %v2856 = vpop.f32.mrb[0].mxu0
        %2857 = vmatprep.mubr.f32.mxu0 0.0
        %2858 = vmatmul.mubr.f32.gmra.mrb[0].mxu0 %v2779
        %v2859 = vpop.f32.mrb[0].mxu0
        %v2860 = vadd.f32 0.0, %v2859
        %v2861 = vpop.f32.mrb[0].mxu0
        %2862 = vdwg.mxu0
        %2863 = vst.msk [vmem:[#allocation3 + $0x11] sm:$0xff] %vm1616, %v2850
        %2864 = vst.msk [vmem:[#allocation3 + $0x19] sm:$0xff] %vm1616, %v2855
        %2865 = vst.msk [vmem:[#allocation3 + $0x21] sm:$0x1] %vm1848, %v2860
        %2866 = vrot.lane.b32.xlu0 %v2625, 96
        %v2867 = vpop.permute.xlu0 %2866
        %2868 = vrot.lane.b32.xlu0 %v2627, 96
        %v2869 = vpop.permute.xlu0 %2868
        %2870 = vrot.lane.b32.xlu0 %v2626, 96
        %v2871 = vpop.permute.xlu0 %2870
        %2872 = vrot.lane.b32.xlu0 %v2632, 96
        %v2873 = vpop.permute.xlu0 %2872
        %2874 = vrot.lane.b32.xlu0 %v2634, 96
        %v2875 = vpop.permute.xlu0 %2874
        %2876 = vrot.lane.b32.xlu0 %v2633, 96
        %v2877 = vpop.permute.xlu0 %2876
        %v2878 = vsel %vm1616, %v2867, 0
        %v2880 = vsel %vm1616, %v2869, 0
        %v2882 = vsel %vm1616, %v2871, 0
        %v2884 = vsel %vm1616, %v2873, 0
        %v2886 = vsel %vm1616, %v2875, 0
        %v2888 = vsel %vm1616, %v2877, 0
        %2890 = vmatprep.subr.mxu0 0.0
        %2891 = vmatpush1.xpose.msra.mxu0 %v2884
        %2892 = vmatprep.subr.mxu0 0.0
        %2893 = vmatpush1.xpose.msra.mxu0 %v2886
        %2894 = vmatprep.subr.mxu0 0.0
        %2895 = vmatpush1.xpose.msra.mxu0 %v2888
        %2896 = vmatprep.subr.mxu0 0.0
        %2897 = vmatpush1.xpose.msra.mxu0 0.0
        %2898 = vmatprep.subr.mxu0 0.0
        %2899 = vmatpush1.xpose.msra.mxu0 0.0
        %2900 = vmatprep.subr.mxu0 0.0
        %2901 = vmatpush1.xpose.msra.mxu0 0.0
        %2902 = vmatprep.subr.mxu0 0.0
        %2903 = vmatpush1.xpose.msra.mxu0 0.0
        %2904 = vmatprep.subr.mxu0 0.0
        %2905 = vmatpush1.xpose.msra.mxu0 0.0
        %2906 = vmatprep.subr.mxu0 0.0
        %2907 = vmatpush1.xpose.msra.mxu0 0.0
        %2908 = vmatprep.subr.mxu0 0.0
        %2909 = vmatpush1.xpose.msra.mxu0 0.0
        %2910 = vmatprep.subr.mxu0 0.0
        %2911 = vmatpush1.xpose.msra.mxu0 0.0
        %2912 = vmatprep.subr.mxu0 0.0
        %2913 = vmatpush1.xpose.msra.mxu0 0.0
        %2914 = vmatprep.subr.mxu0 0.0
        %2915 = vmatpush1.xpose.msra.mxu0 0.0
        %2916 = vmatprep.subr.mxu0 0.0
        %2917 = vmatpush1.xpose.msra.mxu0 0.0
        %2918 = vmatprep.subr.mxu0 0.0
        %2919 = vmatpush1.xpose.msra.mxu0 0.0
        %2920 = vmatprep.subr.mxu0 0.0
        %2921 = vmatpush1.xpose.msra.mxu0 0.0
        %2922 = vmatprep.subr.mxu0 0.0
        %2923 = vmatpush1.xpose.msra.mxu0 0.0
        %2924 = vmatprep.subr.mxu0 0.0
        %2925 = vmatpush1.xpose.msra.mxu0 0.0
        %2926 = vmatprep.subr.mxu0 0.0
        %2927 = vmatpush1.xpose.msra.mxu0 0.0
        %2928 = vmatprep.subr.mxu0 0.0
        %2929 = vmatpush1.xpose.msra.mxu0 0.0
        %2930 = vmatprep.subr.mxu0 0.0
        %2931 = vmatpush1.xpose.msra.mxu0 0.0
        %2932 = vmatprep.subr.mxu0 0.0
        %2933 = vmatpush1.xpose.msra.mxu0 0.0
        %2934 = vmatprep.subr.mxu0 0.0
        %2935 = vmatpush1.xpose.msra.mxu0 0.0
        %2936 = vmatprep.subr.mxu0 0.0
        %2937 = vmatpush1.xpose.msra.mxu0 0.0
        %2938 = vmatprep.subr.mxu0 0.0
        %2939 = vmatpush1.xpose.msra.mxu0 0.0
        %2940 = vmatprep.subr.mxu0 0.0
        %2941 = vmatpush1.xpose.msra.mxu0 0.0
        %2942 = vmatprep.subr.mxu0 0.0
        %2943 = vmatpush1.xpose.msra.mxu0 0.0
        %2944 = vmatprep.subr.mxu0 0.0
        %2945 = vmatpush1.xpose.msra.mxu0 0.0
        %2946 = vmatprep.subr.mxu0 0.0
        %2947 = vmatpush1.xpose.msra.mxu0 0.0
        %2948 = vmatprep.subr.mxu0 0.0
        %2949 = vmatpush1.xpose.msra.mxu0 0.0
        %2950 = vmatprep.subr.mxu0 0.0
        %2951 = vmatpush1.xpose.msra.mxu0 0.0
        %2952 = vmatprep.subr.mxu0 0.0
        %2953 = vmatpush1.xpose.msra.mxu0 0.0
        %2954 = vmatprep.mubr.f32.mxu0 0.0
        %2955 = vmatmul.mubr.f32.gmra.mrb[0].mxu0 %v2878
        %v2956 = vpop.f32.mrb[0].mxu0
        %v2957 = vadd.f32 0.0, %v2956
        %v2958 = vpop.f32.mrb[0].mxu0
        %2959 = vmatprep.mubr.f32.mxu0 0.0
        %2960 = vmatmul.mubr.f32.gmra.mrb[0].mxu0 %v2880
        %v2961 = vpop.f32.mrb[0].mxu0
        %v2962 = vadd.f32 0.0, %v2961
        %v2963 = vpop.f32.mrb[0].mxu0
        %2964 = vmatprep.mubr.f32.mxu0 0.0
        %2965 = vmatmul.mubr.f32.gmra.mrb[0].mxu0 %v2882
        %v2966 = vpop.f32.mrb[0].mxu0
        %v2967 = vadd.f32 0.0, %v2966
        %v2968 = vpop.f32.mrb[0].mxu0
        %2969 = vdwg.mxu0
        %v2970 = vmul.f32 %v2957, 0.17677669
        %v2971 = vmul.f32 %v2962, 0.17677669
        %v2972 = vmul.f32 %v2967, 0.17677669
        %v2973 = vsel %vm1718, %v2970, -inf
        %2974 = vmax.xlane.f32.xlu0 %v2973
        %v2975 = vpop.xlane.xlu0 %2974
        %v2976 = vsel %vm1718, %v2971, -inf
        %2977 = vmax.xlane.f32.xlu0 %v2976
        %v2978 = vpop.xlane.xlu0 %2977
        %v2979 = vsel %vm1725, %v2972, -inf
        %2980 = vmax.xlane.f32.xlu0 %v2979
        %v2981 = vpop.xlane.xlu0 %2980
        %v2982 = vsub.f32 %v2970, %v2975
        %v2983 = vsub.f32 %v2971, %v2978
        %v2984 = vsub.f32 %v2972, %v2981
        %v2985 = vmul.f32 %v2982, 1.442695
        %v2986 = vpow.pop %v2985
        %v2987 = vmul.f32 %v2983, 1.442695
        %v2988 = vpow.pop %v2987
        %v2989 = vmul.f32 %v2984, 1.442695
        %v2990 = vpow.pop %v2989
        %v2991 = vsel %vm1718, %v2986, 0.0
        %2992 = vadd.xlane.f32.xlu0 %v2991
        %v2993 = vpop.xlane.xlu0 %2992
        %v2994 = vsel %vm1718, %v2988, 0.0
        %2995 = vadd.xlane.f32.xlu0 %v2994
        %v2996 = vpop.xlane.xlu0 %2995
        %v2997 = vsel %vm1725, %v2990, 0.0
        %2998 = vadd.xlane.f32.xlu0 %v2997
        %v2999 = vpop.xlane.xlu0 %2998
        %v3000 = vrcp.pop %v2993
        %v3001 = vrcp.pop %v2996
        %v3002 = vrcp.pop %v2999
        %v3003 = vmul.f32 %v2986, %v3000
        %v3004 = vmul.f32 %v2988, %v3001
        %v3005 = vmul.f32 %v2990, %v3002
        %3006 = vrot.lane.b32.xlu0 %v2767, 96
        %v3007 = vpop.permute.xlu0 %3006
        %3008 = vrot.lane.b32.xlu0 %v2769, 96
        %v3009 = vpop.permute.xlu0 %3008
        %3010 = vrot.lane.b32.xlu0 %v2768, 96
        %v3011 = vpop.permute.xlu0 %3010
        %v3015 = vsel %vm1718, %v3003, 0
        %v3018 = vsel %vm1718, %v3004, 0
        %v3021 = vsel %vm1718, %v3005, 0
        %v3023 = vsel %vm1762, %v3011, 0
        %3025 = vmatprep.subr.mxu0 0.0
        %3026 = vmatpush1.msra.mxu0 %v3007
        %3027 = vmatprep.subr.mxu0 0.0
        %3028 = vmatpush1.msra.mxu0 %v3009
        %3029 = vmatprep.subr.mxu0 0.0
        %3030 = vmatpush1.msra.mxu0 %v3023
        %3031 = vmatprep.subr.mxu0 0.0
        %3032 = vmatpush1.msra.mxu0 0.0
        %3033 = vmatprep.subr.mxu0 0.0
        %3034 = vmatpush1.msra.mxu0 0.0
        %3035 = vmatprep.subr.mxu0 0.0
        %3036 = vmatpush1.msra.mxu0 0.0
        %3037 = vmatprep.subr.mxu0 0.0
        %3038 = vmatpush1.msra.mxu0 0.0
        %3039 = vmatprep.subr.mxu0 0.0
        %3040 = vmatpush1.msra.mxu0 0.0
        %3041 = vmatprep.subr.mxu0 0.0
        %3042 = vmatpush1.msra.mxu0 0.0
        %3043 = vmatprep.subr.mxu0 0.0
        %3044 = vmatpush1.msra.mxu0 0.0
        %3045 = vmatprep.subr.mxu0 0.0
        %3046 = vmatpush1.msra.mxu0 0.0
        %3047 = vmatprep.subr.mxu0 0.0
        %3048 = vmatpush1.msra.mxu0 0.0
        %3049 = vmatprep.subr.mxu0 0.0
        %3050 = vmatpush1.msra.mxu0 0.0
        %3051 = vmatprep.subr.mxu0 0.0
        %3052 = vmatpush1.msra.mxu0 0.0
        %3053 = vmatprep.subr.mxu0 0.0
        %3054 = vmatpush1.msra.mxu0 0.0
        %3055 = vmatprep.subr.mxu0 0.0
        %3056 = vmatpush1.msra.mxu0 0.0
        %3057 = vmatprep.subr.mxu0 0.0
        %3058 = vmatpush1.msra.mxu0 0.0
        %3059 = vmatprep.subr.mxu0 0.0
        %3060 = vmatpush1.msra.mxu0 0.0
        %3061 = vmatprep.subr.mxu0 0.0
        %3062 = vmatpush1.msra.mxu0 0.0
        %3063 = vmatprep.subr.mxu0 0.0
        %3064 = vmatpush1.msra.mxu0 0.0
        %3065 = vmatprep.subr.mxu0 0.0
        %3066 = vmatpush1.msra.mxu0 0.0
        %3067 = vmatprep.subr.mxu0 0.0
        %3068 = vmatpush1.msra.mxu0 0.0
        %3069 = vmatprep.subr.mxu0 0.0
        %3070 = vmatpush1.msra.mxu0 0.0
        %3071 = vmatprep.subr.mxu0 0.0
        %3072 = vmatpush1.msra.mxu0 0.0
        %3073 = vmatprep.subr.mxu0 0.0
        %3074 = vmatpush1.msra.mxu0 0.0
        %3075 = vmatprep.subr.mxu0 0.0
        %3076 = vmatpush1.msra.mxu0 0.0
        %3077 = vmatprep.subr.mxu0 0.0
        %3078 = vmatpush1.msra.mxu0 0.0
        %3079 = vmatprep.subr.mxu0 0.0
        %3080 = vmatpush1.msra.mxu0 0.0
        %3081 = vmatprep.subr.mxu0 0.0
        %3082 = vmatpush1.msra.mxu0 0.0
        %3083 = vmatprep.subr.mxu0 0.0
        %3084 = vmatpush1.msra.mxu0 0.0
        %3085 = vmatprep.subr.mxu0 0.0
        %3086 = vmatpush1.msra.mxu0 0.0
        %3087 = vmatprep.subr.mxu0 0.0
        %3088 = vmatpush1.msra.mxu0 0.0
        %3089 = vmatprep.mubr.f32.mxu0 0.0
        %3090 = vmatmul.mubr.f32.gmra.mrb[0].mxu0 %v3015
        %v3091 = vpop.f32.mrb[0].mxu0
        %v3092 = vadd.f32 0.0, %v3091
        %v3093 = vpop.f32.mrb[0].mxu0
        %3094 = vmatprep.mubr.f32.mxu0 0.0
        %3095 = vmatmul.mubr.f32.gmra.mrb[0].mxu0 %v3018
        %v3096 = vpop.f32.mrb[0].mxu0
        %v3097 = vadd.f32 0.0, %v3096
        %v3098 = vpop.f32.mrb[0].mxu0
        %3099 = vmatprep.mubr.f32.mxu0 0.0
        %3100 = vmatmul.mubr.f32.gmra.mrb[0].mxu0 %v3021
        %v3101 = vpop.f32.mrb[0].mxu0
        %v3102 = vadd.f32 0.0, %v3101
        %v3103 = vpop.f32.mrb[0].mxu0
        %3104 = vdwg.mxu0
        %3108 = vrot.lane.b32.xlu0 %v3092, 32
        %v3109 = vpop.permute.xlu0 %3108
        %3110 = vrot.lane.b32.xlu0 %v3097, 32
        %v3111 = vpop.permute.xlu0 %3110
        %3112 = vrot.lane.b32.xlu0 %v3102, 32
        %v3113 = vpop.permute.xlu0 %3112
        %3117 = vst.msk [vmem:[#allocation3 + $0x11] sm:$0xff] %vm2103, %v3109
        %3118 = vst.msk [vmem:[#allocation3 + $0x19] sm:$0xff] %vm2103, %v3111
        %3119 = vst.msk [vmem:[#allocation3 + $0x21] sm:$0x1] %vm2106, %v3113
        %3120 = vrot.lane.b32.xlu0 %v2625, 64
        %v3121 = vpop.permute.xlu0 %3120
        %3122 = vrot.lane.b32.xlu0 %v2627, 64
        %v3123 = vpop.permute.xlu0 %3122
        %3124 = vrot.lane.b32.xlu0 %v2626, 64
        %v3125 = vpop.permute.xlu0 %3124
        %3126 = vrot.lane.b32.xlu0 %v2632, 64
        %v3127 = vpop.permute.xlu0 %3126
        %3128 = vrot.lane.b32.xlu0 %v2634, 64
        %v3129 = vpop.permute.xlu0 %3128
        %3130 = vrot.lane.b32.xlu0 %v2633, 64
        %v3131 = vpop.permute.xlu0 %3130
        %v3132 = vsel %vm1616, %v3121, 0
        %v3134 = vsel %vm1616, %v3123, 0
        %v3136 = vsel %vm1616, %v3125, 0
        %v3138 = vsel %vm1616, %v3127, 0
        %v3140 = vsel %vm1616, %v3129, 0
        %v3142 = vsel %vm1616, %v3131, 0
        %3144 = vmatprep.subr.mxu0 0.0
        %3145 = vmatpush1.xpose.msra.mxu0 %v3138
        %3146 = vmatprep.subr.mxu0 0.0
        %3147 = vmatpush1.xpose.msra.mxu0 %v3140
        %3148 = vmatprep.subr.mxu0 0.0
        %3149 = vmatpush1.xpose.msra.mxu0 %v3142
        %3150 = vmatprep.subr.mxu0 0.0
        %3151 = vmatpush1.xpose.msra.mxu0 0.0
        %3152 = vmatprep.subr.mxu0 0.0
        %3153 = vmatpush1.xpose.msra.mxu0 0.0
        %3154 = vmatprep.subr.mxu0 0.0
        %3155 = vmatpush1.xpose.msra.mxu0 0.0
        %3156 = vmatprep.subr.mxu0 0.0
        %3157 = vmatpush1.xpose.msra.mxu0 0.0
        %3158 = vmatprep.subr.mxu0 0.0
        %3159 = vmatpush1.xpose.msra.mxu0 0.0
        %3160 = vmatprep.subr.mxu0 0.0
        %3161 = vmatpush1.xpose.msra.mxu0 0.0
        %3162 = vmatprep.subr.mxu0 0.0
        %3163 = vmatpush1.xpose.msra.mxu0 0.0
        %3164 = vmatprep.subr.mxu0 0.0
        %3165 = vmatpush1.xpose.msra.mxu0 0.0
        %3166 = vmatprep.subr.mxu0 0.0
        %3167 = vmatpush1.xpose.msra.mxu0 0.0
        %3168 = vmatprep.subr.mxu0 0.0
        %3169 = vmatpush1.xpose.msra.mxu0 0.0
        %3170 = vmatprep.subr.mxu0 0.0
        %3171 = vmatpush1.xpose.msra.mxu0 0.0
        %3172 = vmatprep.subr.mxu0 0.0
        %3173 = vmatpush1.xpose.msra.mxu0 0.0
        %3174 = vmatprep.subr.mxu0 0.0
        %3175 = vmatpush1.xpose.msra.mxu0 0.0
        %3176 = vmatprep.subr.mxu0 0.0
        %3177 = vmatpush1.xpose.msra.mxu0 0.0
        %3178 = vmatprep.subr.mxu0 0.0
        %3179 = vmatpush1.xpose.msra.mxu0 0.0
        %3180 = vmatprep.subr.mxu0 0.0
        %3181 = vmatpush1.xpose.msra.mxu0 0.0
        %3182 = vmatprep.subr.mxu0 0.0
        %3183 = vmatpush1.xpose.msra.mxu0 0.0
        %3184 = vmatprep.subr.mxu0 0.0
        %3185 = vmatpush1.xpose.msra.mxu0 0.0
        %3186 = vmatprep.subr.mxu0 0.0
        %3187 = vmatpush1.xpose.msra.mxu0 0.0
        %3188 = vmatprep.subr.mxu0 0.0
        %3189 = vmatpush1.xpose.msra.mxu0 0.0
        %3190 = vmatprep.subr.mxu0 0.0
        %3191 = vmatpush1.xpose.msra.mxu0 0.0
        %3192 = vmatprep.subr.mxu0 0.0
        %3193 = vmatpush1.xpose.msra.mxu0 0.0
        %3194 = vmatprep.subr.mxu0 0.0
        %3195 = vmatpush1.xpose.msra.mxu0 0.0
        %3196 = vmatprep.subr.mxu0 0.0
        %3197 = vmatpush1.xpose.msra.mxu0 0.0
        %3198 = vmatprep.subr.mxu0 0.0
        %3199 = vmatpush1.xpose.msra.mxu0 0.0
        %3200 = vmatprep.subr.mxu0 0.0
        %3201 = vmatpush1.xpose.msra.mxu0 0.0
        %3202 = vmatprep.subr.mxu0 0.0
        %3203 = vmatpush1.xpose.msra.mxu0 0.0
        %3204 = vmatprep.subr.mxu0 0.0
        %3205 = vmatpush1.xpose.msra.mxu0 0.0
        %3206 = vmatprep.subr.mxu0 0.0
        %3207 = vmatpush1.xpose.msra.mxu0 0.0
        %3208 = vmatprep.mubr.f32.mxu0 0.0
        %3209 = vmatmul.mubr.f32.gmra.mrb[0].mxu0 %v3132
        %v3210 = vpop.f32.mrb[0].mxu0
        %v3211 = vadd.f32 0.0, %v3210
        %v3212 = vpop.f32.mrb[0].mxu0
        %3213 = vmatprep.mubr.f32.mxu0 0.0
        %3214 = vmatmul.mubr.f32.gmra.mrb[0].mxu0 %v3134
        %v3215 = vpop.f32.mrb[0].mxu0
        %v3216 = vadd.f32 0.0, %v3215
        %v3217 = vpop.f32.mrb[0].mxu0
        %3218 = vmatprep.mubr.f32.mxu0 0.0
        %3219 = vmatmul.mubr.f32.gmra.mrb[0].mxu0 %v3136
        %v3220 = vpop.f32.mrb[0].mxu0
        %v3221 = vadd.f32 0.0, %v3220
        %v3222 = vpop.f32.mrb[0].mxu0
        %3223 = vdwg.mxu0
        %v3224 = vmul.f32 %v3211, 0.17677669
        %v3225 = vmul.f32 %v3216, 0.17677669
        %v3226 = vmul.f32 %v3221, 0.17677669
        %v3227 = vsel %vm1718, %v3224, -inf
        %3228 = vmax.xlane.f32.xlu0 %v3227
        %v3229 = vpop.xlane.xlu0 %3228
        %v3230 = vsel %vm1718, %v3225, -inf
        %3231 = vmax.xlane.f32.xlu0 %v3230
        %v3232 = vpop.xlane.xlu0 %3231
        %v3233 = vsel %vm1725, %v3226, -inf
        %3234 = vmax.xlane.f32.xlu0 %v3233
        %v3235 = vpop.xlane.xlu0 %3234
        %v3236 = vsub.f32 %v3224, %v3229
        %v3237 = vsub.f32 %v3225, %v3232
        %v3238 = vsub.f32 %v3226, %v3235
        %v3239 = vmul.f32 %v3236, 1.442695
        %v3240 = vpow.pop %v3239
        %v3241 = vmul.f32 %v3237, 1.442695
        %v3242 = vpow.pop %v3241
        %v3243 = vmul.f32 %v3238, 1.442695
        %v3244 = vpow.pop %v3243
        %v3245 = vsel %vm1718, %v3240, 0.0
        %3246 = vadd.xlane.f32.xlu0 %v3245
        %v3247 = vpop.xlane.xlu0 %3246
        %v3248 = vsel %vm1718, %v3242, 0.0
        %3249 = vadd.xlane.f32.xlu0 %v3248
        %v3250 = vpop.xlane.xlu0 %3249
        %v3251 = vsel %vm1725, %v3244, 0.0
        %3252 = vadd.xlane.f32.xlu0 %v3251
        %v3253 = vpop.xlane.xlu0 %3252
        %v3254 = vrcp.pop %v3247
        %v3255 = vrcp.pop %v3250
        %v3256 = vrcp.pop %v3253
        %v3257 = vmul.f32 %v3240, %v3254
        %v3258 = vmul.f32 %v3242, %v3255
        %v3259 = vmul.f32 %v3244, %v3256
        %3260 = vrot.lane.b32.xlu0 %v2767, 64
        %v3261 = vpop.permute.xlu0 %3260
        %3262 = vrot.lane.b32.xlu0 %v2769, 64
        %v3263 = vpop.permute.xlu0 %3262
        %3264 = vrot.lane.b32.xlu0 %v2768, 64
        %v3265 = vpop.permute.xlu0 %3264
        %v3269 = vsel %vm1718, %v3257, 0
        %v3272 = vsel %vm1718, %v3258, 0
        %v3275 = vsel %vm1718, %v3259, 0
        %v3277 = vsel %vm1762, %v3265, 0
        %3279 = vmatprep.subr.mxu0 0.0
        %3280 = vmatpush1.msra.mxu0 %v3261
        %3281 = vmatprep.subr.mxu0 0.0
        %3282 = vmatpush1.msra.mxu0 %v3263
        %3283 = vmatprep.subr.mxu0 0.0
        %3284 = vmatpush1.msra.mxu0 %v3277
        %3285 = vmatprep.subr.mxu0 0.0
        %3286 = vmatpush1.msra.mxu0 0.0
        %3287 = vmatprep.subr.mxu0 0.0
        %3288 = vmatpush1.msra.mxu0 0.0
        %3289 = vmatprep.subr.mxu0 0.0
        %3290 = vmatpush1.msra.mxu0 0.0
        %3291 = vmatprep.subr.mxu0 0.0
        %3292 = vmatpush1.msra.mxu0 0.0
        %3293 = vmatprep.subr.mxu0 0.0
        %3294 = vmatpush1.msra.mxu0 0.0
        %3295 = vmatprep.subr.mxu0 0.0
        %3296 = vmatpush1.msra.mxu0 0.0
        %3297 = vmatprep.subr.mxu0 0.0
        %3298 = vmatpush1.msra.mxu0 0.0
        %3299 = vmatprep.subr.mxu0 0.0
        %3300 = vmatpush1.msra.mxu0 0.0
        %3301 = vmatprep.subr.mxu0 0.0
        %3302 = vmatpush1.msra.mxu0 0.0
        %3303 = vmatprep.subr.mxu0 0.0
        %3304 = vmatpush1.msra.mxu0 0.0
        %3305 = vmatprep.subr.mxu0 0.0
        %3306 = vmatpush1.msra.mxu0 0.0
        %3307 = vmatprep.subr.mxu0 0.0
        %3308 = vmatpush1.msra.mxu0 0.0
        %3309 = vmatprep.subr.mxu0 0.0
        %3310 = vmatpush1.msra.mxu0 0.0
        %3311 = vmatprep.subr.mxu0 0.0
        %3312 = vmatpush1.msra.mxu0 0.0
        %3313 = vmatprep.subr.mxu0 0.0
        %3314 = vmatpush1.msra.mxu0 0.0
        %3315 = vmatprep.subr.mxu0 0.0
        %3316 = vmatpush1.msra.mxu0 0.0
        %3317 = vmatprep.subr.mxu0 0.0
        %3318 = vmatpush1.msra.mxu0 0.0
        %3319 = vmatprep.subr.mxu0 0.0
        %3320 = vmatpush1.msra.mxu0 0.0
        %3321 = vmatprep.subr.mxu0 0.0
        %3322 = vmatpush1.msra.mxu0 0.0
        %3323 = vmatprep.subr.mxu0 0.0
        %3324 = vmatpush1.msra.mxu0 0.0
        %3325 = vmatprep.subr.mxu0 0.0
        %3326 = vmatpush1.msra.mxu0 0.0
        %3327 = vmatprep.subr.mxu0 0.0
        %3328 = vmatpush1.msra.mxu0 0.0
        %3329 = vmatprep.subr.mxu0 0.0
        %3330 = vmatpush1.msra.mxu0 0.0
        %3331 = vmatprep.subr.mxu0 0.0
        %3332 = vmatpush1.msra.mxu0 0.0
        %3333 = vmatprep.subr.mxu0 0.0
        %3334 = vmatpush1.msra.mxu0 0.0
        %3335 = vmatprep.subr.mxu0 0.0
        %3336 = vmatpush1.msra.mxu0 0.0
        %3337 = vmatprep.subr.mxu0 0.0
        %3338 = vmatpush1.msra.mxu0 0.0
        %3339 = vmatprep.subr.mxu0 0.0
        %3340 = vmatpush1.msra.mxu0 0.0
        %3341 = vmatprep.subr.mxu0 0.0
        %3342 = vmatpush1.msra.mxu0 0.0
        %3343 = vmatprep.mubr.f32.mxu0 0.0
        %3344 = vmatmul.mubr.f32.gmra.mrb[0].mxu0 %v3269
        %v3345 = vpop.f32.mrb[0].mxu0
        %v3346 = vadd.f32 0.0, %v3345
        %v3347 = vpop.f32.mrb[0].mxu0
        %3348 = vmatprep.mubr.f32.mxu0 0.0
        %3349 = vmatmul.mubr.f32.gmra.mrb[0].mxu0 %v3272
        %v3350 = vpop.f32.mrb[0].mxu0
        %v3351 = vadd.f32 0.0, %v3350
        %v3352 = vpop.f32.mrb[0].mxu0
        %3353 = vmatprep.mubr.f32.mxu0 0.0
        %3354 = vmatmul.mubr.f32.gmra.mrb[0].mxu0 %v3275
        %v3355 = vpop.f32.mrb[0].mxu0
        %v3356 = vadd.f32 0.0, %v3355
        %v3357 = vpop.f32.mrb[0].mxu0
        %3358 = vdwg.mxu0
        %3362 = vrot.lane.b32.xlu0 %v3346, 64
        %v3363 = vpop.permute.xlu0 %3362
        %3364 = vrot.lane.b32.xlu0 %v3351, 64
        %v3365 = vpop.permute.xlu0 %3364
        %3366 = vrot.lane.b32.xlu0 %v3356, 64
        %v3367 = vpop.permute.xlu0 %3366
        %3371 = vst.msk [vmem:[#allocation3 + $0x11] sm:$0xff] %vm2359, %v3363
        %3372 = vst.msk [vmem:[#allocation3 + $0x19] sm:$0xff] %vm2359, %v3365
        %3373 = vst.msk [vmem:[#allocation3 + $0x21] sm:$0x1] %vm2362, %v3367
        %3374 = vrot.lane.b32.xlu0 %v2625, 32
        %v3375 = vpop.permute.xlu0 %3374
        %3376 = vrot.lane.b32.xlu0 %v2627, 32
        %v3377 = vpop.permute.xlu0 %3376
        %3378 = vrot.lane.b32.xlu0 %v2626, 32
        %v3379 = vpop.permute.xlu0 %3378
        %3380 = vrot.lane.b32.xlu0 %v2632, 32
        %v3381 = vpop.permute.xlu0 %3380
        %3382 = vrot.lane.b32.xlu0 %v2634, 32
        %v3383 = vpop.permute.xlu0 %3382
        %3384 = vrot.lane.b32.xlu0 %v2633, 32
        %v3385 = vpop.permute.xlu0 %3384
        %v3386 = vsel %vm1616, %v3375, 0
        %v3388 = vsel %vm1616, %v3377, 0
        %v3390 = vsel %vm1616, %v3379, 0
        %v3392 = vsel %vm1616, %v3381, 0
        %v3394 = vsel %vm1616, %v3383, 0
        %v3396 = vsel %vm1616, %v3385, 0
        %3398 = vmatprep.subr.mxu0 0.0
        %3399 = vmatpush1.xpose.msra.mxu0 %v3392
        %3400 = vmatprep.subr.mxu0 0.0
        %3401 = vmatpush1.xpose.msra.mxu0 %v3394
        %3402 = vmatprep.subr.mxu0 0.0
        %3403 = vmatpush1.xpose.msra.mxu0 %v3396
        %3404 = vmatprep.subr.mxu0 0.0
        %3405 = vmatpush1.xpose.msra.mxu0 0.0
        %3406 = vmatprep.subr.mxu0 0.0
        %3407 = vmatpush1.xpose.msra.mxu0 0.0
        %3408 = vmatprep.subr.mxu0 0.0
        %3409 = vmatpush1.xpose.msra.mxu0 0.0
        %3410 = vmatprep.subr.mxu0 0.0
        %3411 = vmatpush1.xpose.msra.mxu0 0.0
        %3412 = vmatprep.subr.mxu0 0.0
        %3413 = vmatpush1.xpose.msra.mxu0 0.0
        %3414 = vmatprep.subr.mxu0 0.0
        %3415 = vmatpush1.xpose.msra.mxu0 0.0
        %3416 = vmatprep.subr.mxu0 0.0
        %3417 = vmatpush1.xpose.msra.mxu0 0.0
        %3418 = vmatprep.subr.mxu0 0.0
        %3419 = vmatpush1.xpose.msra.mxu0 0.0
        %3420 = vmatprep.subr.mxu0 0.0
        %3421 = vmatpush1.xpose.msra.mxu0 0.0
        %3422 = vmatprep.subr.mxu0 0.0
        %3423 = vmatpush1.xpose.msra.mxu0 0.0
        %3424 = vmatprep.subr.mxu0 0.0
        %3425 = vmatpush1.xpose.msra.mxu0 0.0
        %3426 = vmatprep.subr.mxu0 0.0
        %3427 = vmatpush1.xpose.msra.mxu0 0.0
        %3428 = vmatprep.subr.mxu0 0.0
        %3429 = vmatpush1.xpose.msra.mxu0 0.0
        %3430 = vmatprep.subr.mxu0 0.0
        %3431 = vmatpush1.xpose.msra.mxu0 0.0
        %3432 = vmatprep.subr.mxu0 0.0
        %3433 = vmatpush1.xpose.msra.mxu0 0.0
        %3434 = vmatprep.subr.mxu0 0.0
        %3435 = vmatpush1.xpose.msra.mxu0 0.0
        %3436 = vmatprep.subr.mxu0 0.0
        %3437 = vmatpush1.xpose.msra.mxu0 0.0
        %3438 = vmatprep.subr.mxu0 0.0
        %3439 = vmatpush1.xpose.msra.mxu0 0.0
        %3440 = vmatprep.subr.mxu0 0.0
        %3441 = vmatpush1.xpose.msra.mxu0 0.0
        %3442 = vmatprep.subr.mxu0 0.0
        %3443 = vmatpush1.xpose.msra.mxu0 0.0
        %3444 = vmatprep.subr.mxu0 0.0
        %3445 = vmatpush1.xpose.msra.mxu0 0.0
        %3446 = vmatprep.subr.mxu0 0.0
        %3447 = vmatpush1.xpose.msra.mxu0 0.0
        %3448 = vmatprep.subr.mxu0 0.0
        %3449 = vmatpush1.xpose.msra.mxu0 0.0
        %3450 = vmatprep.subr.mxu0 0.0
        %3451 = vmatpush1.xpose.msra.mxu0 0.0
        %3452 = vmatprep.subr.mxu0 0.0
        %3453 = vmatpush1.xpose.msra.mxu0 0.0
        %3454 = vmatprep.subr.mxu0 0.0
        %3455 = vmatpush1.xpose.msra.mxu0 0.0
        %3456 = vmatprep.subr.mxu0 0.0
        %3457 = vmatpush1.xpose.msra.mxu0 0.0
        %3458 = vmatprep.subr.mxu0 0.0
        %3459 = vmatpush1.xpose.msra.mxu0 0.0
        %3460 = vmatprep.subr.mxu0 0.0
        %3461 = vmatpush1.xpose.msra.mxu0 0.0
        %3462 = vmatprep.mubr.f32.mxu0 0.0
        %3463 = vmatmul.mubr.f32.gmra.mrb[0].mxu0 %v3386
        %v3464 = vpop.f32.mrb[0].mxu0
        %v3465 = vadd.f32 0.0, %v3464
        %v3466 = vpop.f32.mrb[0].mxu0
        %3467 = vmatprep.mubr.f32.mxu0 0.0
        %3468 = vmatmul.mubr.f32.gmra.mrb[0].mxu0 %v3388
        %v3469 = vpop.f32.mrb[0].mxu0
        %v3470 = vadd.f32 0.0, %v3469
        %v3471 = vpop.f32.mrb[0].mxu0
        %3472 = vmatprep.mubr.f32.mxu0 0.0
        %3473 = vmatmul.mubr.f32.gmra.mrb[0].mxu0 %v3390
        %v3474 = vpop.f32.mrb[0].mxu0
        %v3475 = vadd.f32 0.0, %v3474
        %v3476 = vpop.f32.mrb[0].mxu0
        %3477 = vdwg.mxu0
        %v3478 = vmul.f32 %v3465, 0.17677669
        %v3479 = vmul.f32 %v3470, 0.17677669
        %v3480 = vmul.f32 %v3475, 0.17677669
        %v3481 = vsel %vm1718, %v3478, -inf
        %3482 = vmax.xlane.f32.xlu0 %v3481
        %v3483 = vpop.xlane.xlu0 %3482
        %v3484 = vsel %vm1718, %v3479, -inf
        %3485 = vmax.xlane.f32.xlu0 %v3484
        %v3486 = vpop.xlane.xlu0 %3485
        %v3487 = vsel %vm1725, %v3480, -inf
        %3488 = vmax.xlane.f32.xlu0 %v3487
        %v3489 = vpop.xlane.xlu0 %3488
        %v3490 = vsub.f32 %v3478, %v3483
        %v3491 = vsub.f32 %v3479, %v3486
        %v3492 = vsub.f32 %v3480, %v3489
        %v3493 = vmul.f32 %v3490, 1.442695
        %v3494 = vpow.pop %v3493
        %v3495 = vmul.f32 %v3491, 1.442695
        %v3496 = vpow.pop %v3495
        %v3497 = vmul.f32 %v3492, 1.442695
        %v3498 = vpow.pop %v3497
        %v3499 = vsel %vm1718, %v3494, 0.0
        %3500 = vadd.xlane.f32.xlu0 %v3499
        %v3501 = vpop.xlane.xlu0 %3500
        %v3502 = vsel %vm1718, %v3496, 0.0
        %3503 = vadd.xlane.f32.xlu0 %v3502
        %v3504 = vpop.xlane.xlu0 %3503
        %v3505 = vsel %vm1725, %v3498, 0.0
        %3506 = vadd.xlane.f32.xlu0 %v3505
        %v3507 = vpop.xlane.xlu0 %3506
        %v3508 = vrcp.pop %v3501
        %v3509 = vrcp.pop %v3504
        %v3510 = vrcp.pop %v3507
        %v3511 = vmul.f32 %v3494, %v3508
        %v3512 = vmul.f32 %v3496, %v3509
        %v3513 = vmul.f32 %v3498, %v3510
        %3514 = vrot.lane.b32.xlu0 %v2767, 32
        %v3515 = vpop.permute.xlu0 %3514
        %3516 = vrot.lane.b32.xlu0 %v2769, 32
        %v3517 = vpop.permute.xlu0 %3516
        %3518 = vrot.lane.b32.xlu0 %v2768, 32
        %v3519 = vpop.permute.xlu0 %3518
        %v3523 = vsel %vm1718, %v3511, 0
        %v3526 = vsel %vm1718, %v3512, 0
        %v3529 = vsel %vm1718, %v3513, 0
        %v3531 = vsel %vm1762, %v3519, 0
        %3533 = vmatprep.subr.mxu0 0.0
        %3534 = vmatpush1.msra.mxu0 %v3515
        %3535 = vmatprep.subr.mxu0 0.0
        %3536 = vmatpush1.msra.mxu0 %v3517
        %3537 = vmatprep.subr.mxu0 0.0
        %3538 = vmatpush1.msra.mxu0 %v3531
        %3539 = vmatprep.subr.mxu0 0.0
        %3540 = vmatpush1.msra.mxu0 0.0
        %3541 = vmatprep.subr.mxu0 0.0
        %3542 = vmatpush1.msra.mxu0 0.0
        %3543 = vmatprep.subr.mxu0 0.0
        %3544 = vmatpush1.msra.mxu0 0.0
        %3545 = vmatprep.subr.mxu0 0.0
        %3546 = vmatpush1.msra.mxu0 0.0
        %3547 = vmatprep.subr.mxu0 0.0
        %3548 = vmatpush1.msra.mxu0 0.0
        %3549 = vmatprep.subr.mxu0 0.0
        %3550 = vmatpush1.msra.mxu0 0.0
        %3551 = vmatprep.subr.mxu0 0.0
        %3552 = vmatpush1.msra.mxu0 0.0
        %3553 = vmatprep.subr.mxu0 0.0
        %3554 = vmatpush1.msra.mxu0 0.0
        %3555 = vmatprep.subr.mxu0 0.0
        %3556 = vmatpush1.msra.mxu0 0.0
        %3557 = vmatprep.subr.mxu0 0.0
        %3558 = vmatpush1.msra.mxu0 0.0
        %3559 = vmatprep.subr.mxu0 0.0
        %3560 = vmatpush1.msra.mxu0 0.0
        %3561 = vmatprep.subr.mxu0 0.0
        %3562 = vmatpush1.msra.mxu0 0.0
        %3563 = vmatprep.subr.mxu0 0.0
        %3564 = vmatpush1.msra.mxu0 0.0
        %3565 = vmatprep.subr.mxu0 0.0
        %3566 = vmatpush1.msra.mxu0 0.0
        %3567 = vmatprep.subr.mxu0 0.0
        %3568 = vmatpush1.msra.mxu0 0.0
        %3569 = vmatprep.subr.mxu0 0.0
        %3570 = vmatpush1.msra.mxu0 0.0
        %3571 = vmatprep.subr.mxu0 0.0
        %3572 = vmatpush1.msra.mxu0 0.0
        %3573 = vmatprep.subr.mxu0 0.0
        %3574 = vmatpush1.msra.mxu0 0.0
        %3575 = vmatprep.subr.mxu0 0.0
        %3576 = vmatpush1.msra.mxu0 0.0
        %3577 = vmatprep.subr.mxu0 0.0
        %3578 = vmatpush1.msra.mxu0 0.0
        %3579 = vmatprep.subr.mxu0 0.0
        %3580 = vmatpush1.msra.mxu0 0.0
        %3581 = vmatprep.subr.mxu0 0.0
        %3582 = vmatpush1.msra.mxu0 0.0
        %3583 = vmatprep.subr.mxu0 0.0
        %3584 = vmatpush1.msra.mxu0 0.0
        %3585 = vmatprep.subr.mxu0 0.0
        %3586 = vmatpush1.msra.mxu0 0.0
        %3587 = vmatprep.subr.mxu0 0.0
        %3588 = vmatpush1.msra.mxu0 0.0
        %3589 = vmatprep.subr.mxu0 0.0
        %3590 = vmatpush1.msra.mxu0 0.0
        %3591 = vmatprep.subr.mxu0 0.0
        %3592 = vmatpush1.msra.mxu0 0.0
        %3593 = vmatprep.subr.mxu0 0.0
        %3594 = vmatpush1.msra.mxu0 0.0
        %3595 = vmatprep.subr.mxu0 0.0
        %3596 = vmatpush1.msra.mxu0 0.0
        %3597 = vmatprep.mubr.f32.mxu0 0.0
        %3598 = vmatmul.mubr.f32.gmra.mrb[0].mxu0 %v3523
        %v3599 = vpop.f32.mrb[0].mxu0
        %v3600 = vadd.f32 0.0, %v3599
        %v3601 = vpop.f32.mrb[0].mxu0
        %3602 = vmatprep.mubr.f32.mxu0 0.0
        %3603 = vmatmul.mubr.f32.gmra.mrb[0].mxu0 %v3526
        %v3604 = vpop.f32.mrb[0].mxu0
        %v3605 = vadd.f32 0.0, %v3604
        %v3606 = vpop.f32.mrb[0].mxu0
        %3607 = vmatprep.mubr.f32.mxu0 0.0
        %3608 = vmatmul.mubr.f32.gmra.mrb[0].mxu0 %v3529
        %v3609 = vpop.f32.mrb[0].mxu0
        %v3610 = vadd.f32 0.0, %v3609
        %v3611 = vpop.f32.mrb[0].mxu0
        %3612 = vdwg.mxu0
        %3616 = vrot.lane.b32.xlu0 %v3600, 96
        %v3617 = vpop.permute.xlu0 %3616
        %3618 = vrot.lane.b32.xlu0 %v3605, 96
        %v3619 = vpop.permute.xlu0 %3618
        %3620 = vrot.lane.b32.xlu0 %v3610, 96
        %v3621 = vpop.permute.xlu0 %3620
        %3625 = vst.msk [vmem:[#allocation3 + $0x11] sm:$0xff] %vm2615, %v3617
        %3626 = vst.msk [vmem:[#allocation3 + $0x19] sm:$0xff] %vm2615, %v3619
        %3627 = vst.msk [vmem:[#allocation3 + $0x21] sm:$0x1] %vm2618, %v3621
        %v3628 = vld [vmem:[#allocation3] sm:$0xff]
        %v3629 = vld [vmem:[#allocation3 + $0x8] sm:$0xff]
        %v3630 = vld [vmem:[#allocation3 + $0x10] sm:$0xff]
        %v3631 = vld [vmem:[#allocation3 + $0x18] sm:$0xff]
        %v3632 = vld [vmem:[#allocation3 + $0x20] sm:$0x3]
        %v3633 = vpack.c.bf16 %v3629, %v3628
        %v3634 = vpack.c.bf16 %v3631, %v3630
        %v3635 = vpack.c.bf16 %v3632, %v3632
        %v3636 = vld [vmem:[%s812] sm:$0xf]
        %v3637 = vld [vmem:[%s812 + $0x4] sm:$0xf]
        %v3638 = vld [vmem:[%s812 + $0x8] sm:$0xf]
        %v3639 = vld [vmem:[%s812 + $0xc] sm:$0xf]
        %v3640 = vld [vmem:[%s812 + $0x10] sm:$0xf]
        %v3641 = vld [vmem:[%s812 + $0x14] sm:$0xf]
        %v3642 = vld [vmem:[%s812 + $0x18] sm:$0xf]
        %v3643 = vld [vmem:[%s812 + $0x1c] sm:$0xf]
        %v3644 = vld [vmem:[%s812 + $0x20] sm:$0xf]
        %v3645 = vld [vmem:[%s812 + $0x24] sm:$0xf]
        %v3646 = vld [vmem:[%s812 + $0x28] sm:$0xf]
        %v3647 = vld [vmem:[%s812 + $0x2c] sm:$0xf]
        %v3648 = vld [vmem:[%s812 + $0x30] sm:$0xf]
        %v3649 = vld [vmem:[%s812 + $0x34] sm:$0xf]
        %v3650 = vld [vmem:[%s812 + $0x38] sm:$0xf]
        %v3651 = vld [vmem:[%s812 + $0x3c] sm:$0xf]
        %v3652 = vld [vmem:[%s815] sm:$0x1]
        %v3654 = vlaneseq
        %v3655 = vshrl.u32 %v3654, 7
        %v3656 = vsub.s32 0, %v3655
        %v3657 = vrot.slane %v3652, %v3656
        %v3675 = vunpack.c.l.b16 %v3636
        %v3676 = vunpack.c.l.b16 %v3637
        %v3677 = vunpack.c.l.b16 %v3638
        %v3678 = vunpack.c.l.b16 %v3639
        %v3679 = vunpack.c.l.b16 %v3640
        %v3680 = vunpack.c.l.b16 %v3641
        %v3681 = vunpack.c.l.b16 %v3642
        %v3682 = vunpack.c.l.b16 %v3643
        %v3683 = vunpack.c.l.b16 %v3644
        %v3684 = vunpack.c.l.b16 %v3645
        %v3685 = vunpack.c.l.b16 %v3646
        %v3686 = vunpack.c.l.b16 %v3647
        %v3687 = vunpack.c.l.b16 %v3648
        %v3688 = vunpack.c.l.b16 %v3649
        %v3689 = vunpack.c.l.b16 %v3650
        %v3690 = vunpack.c.l.b16 %v3651
        %v3691 = vpack.c.b16 %v3676, %v3675
        %v3692 = vpack.c.b16 %v3678, %v3677
        %v3693 = vpack.c.b16 %v3680, %v3679
        %v3694 = vpack.c.b16 %v3682, %v3681
        %v3695 = vpack.c.b16 %v3684, %v3683
        %v3696 = vpack.c.b16 %v3686, %v3685
        %v3697 = vpack.c.b16 %v3688, %v3687
        %v3698 = vpack.c.b16 %v3690, %v3689
        %3707 = vmatprep.subr.bf16.mxu0 0
        %3708 = vmatpush1.bf16.msra.mxu0 %v3691
        %3709 = vmatprep.subr.bf16.mxu0 0
        %3710 = vmatpush1.bf16.msra.mxu0 %v3692
        %3711 = vmatprep.subr.bf16.mxu0 0
        %3712 = vmatpush1.bf16.msra.mxu0 %v3693
        %3713 = vmatprep.subr.bf16.mxu0 0
        %3714 = vmatpush1.bf16.msra.mxu0 %v3694
        %3715 = vmatprep.subr.bf16.mxu0 0
        %3716 = vmatpush1.bf16.msra.mxu0 %v3695
        %3717 = vmatprep.subr.bf16.mxu0 0
        %3718 = vmatpush1.bf16.msra.mxu0 %v3696
        %3719 = vmatprep.subr.bf16.mxu0 0
        %3720 = vmatpush1.bf16.msra.mxu0 %v3697
        %3721 = vmatprep.subr.bf16.mxu0 0
        %3722 = vmatpush1.bf16.msra.mxu0 %v3698
        %3723 = vmatprep.subr.bf16.mxu0 0
        %3724 = vmatpush1.bf16.msra.mxu0 0
        %3725 = vmatprep.subr.bf16.mxu0 0
        %3726 = vmatpush1.bf16.msra.mxu0 0
        %3727 = vmatprep.subr.bf16.mxu0 0
        %3728 = vmatpush1.bf16.msra.mxu0 0
        %3729 = vmatprep.subr.bf16.mxu0 0
        %3730 = vmatpush1.bf16.msra.mxu0 0
        %3731 = vmatprep.subr.bf16.mxu0 0
        %3732 = vmatpush1.bf16.msra.mxu0 0
        %3733 = vmatprep.subr.bf16.mxu0 0
        %3734 = vmatpush1.bf16.msra.mxu0 0
        %3735 = vmatprep.subr.bf16.mxu0 0
        %3736 = vmatpush1.bf16.msra.mxu0 0
        %3737 = vmatprep.subr.bf16.mxu0 0
        %3738 = vmatpush1.bf16.msra.mxu0 0
        %3739 = vmatprep.mubr.bf16.mxu0 0
        %3740 = vmatmul.mubr.bf16.gmra.mrb[0].mxu0 %v3633
        %v3741 = vpop.f32.mrb[0].mxu0
        %v3742 = vadd.f32 %v3657, %v3741
        %v3743 = vpop.f32.mrb[0].mxu0
        %v3744 = vpop.f32.mrb[0].mxu0
        %v3745 = vadd.f32 %v3657, %v3744
        %v3746 = vpop.f32.mrb[0].mxu0
        %3747 = vmatprep.mubr.bf16.mxu0 0
        %3748 = vmatmul.mubr.bf16.gmra.mrb[0].mxu0 %v3634
        %v3749 = vpop.f32.mrb[0].mxu0
        %v3750 = vadd.f32 %v3657, %v3749
        %v3751 = vpop.f32.mrb[0].mxu0
        %v3752 = vpop.f32.mrb[0].mxu0
        %v3753 = vadd.f32 %v3657, %v3752
        %v3754 = vpop.f32.mrb[0].mxu0
        %3755 = vmatprep.mubr.bf16.mxu0 0
        %3756 = vmatmul.mubr.bf16.gmra.mrb[0].mxu0 %v3635
        %v3757 = vpop.f32.mrb[0].mxu0
        %v3758 = vadd.f32 %v3657, %v3757
        %v3759 = vpop.f32.mrb[0].mxu0
        %v3760 = vpop.f32.mrb[0].mxu0
        %v3761 = vpop.f32.mrb[0].mxu0
        %3762 = vdwg.mxu0
        %v3763 = vadd.f32 %v1236, %v3742
        %v3764 = vadd.f32 %v1237, %v3745
        %v3765 = vadd.f32 %v1238, %v3750
        %v3766 = vadd.f32 %v1239, %v3753
        %v3767 = vadd.f32 %v1240, %v3758
        %3768 = vadd.xlane.f32.xlu0 %v3763
        %v3769 = vpop.xlane.xlu0 %3768
        %3770 = vadd.xlane.f32.xlu0 %v3764
        %v3771 = vpop.xlane.xlu0 %3770
        %3772 = vadd.xlane.f32.xlu0 %v3765
        %v3773 = vpop.xlane.xlu0 %3772
        %3774 = vadd.xlane.f32.xlu0 %v3766
        %v3775 = vpop.xlane.xlu0 %3774
        %v3776 = vsel %vm1250, %v3767, 0.0
        %3777 = vadd.xlane.f32.xlu0 %v3776
        %v3778 = vpop.xlane.xlu0 %3777
        %v3779 = vmul.f32 %v3769, %v1254
        %v3780 = vmul.f32 %v3771, %v1254
        %v3781 = vmul.f32 %v3773, %v1254
        %v3782 = vmul.f32 %v3775, %v1254
        %v3783 = vmul.f32 %v3778, %v1254
        %v3784 = vsub.f32 %v3763, %v3779
        %v3785 = vsub.f32 %v3764, %v3780
        %v3786 = vsub.f32 %v3765, %v3781
        %v3787 = vsub.f32 %v3766, %v3782
        %v3788 = vsub.f32 %v3767, %v3783
        %v3789 = vmul.f32 %v3784, %v3784
        %v3790 = vmul.f32 %v3785, %v3785
        %v3791 = vmul.f32 %v3786, %v3786
        %v3792 = vmul.f32 %v3787, %v3787
        %v3793 = vmul.f32 %v3788, %v3788
        %3794 = vadd.xlane.f32.xlu0 %v3789
        %v3795 = vpop.xlane.xlu0 %3794
        %3796 = vadd.xlane.f32.xlu0 %v3790
        %v3797 = vpop.xlane.xlu0 %3796
        %3798 = vadd.xlane.f32.xlu0 %v3791
        %v3799 = vpop.xlane.xlu0 %3798
        %3800 = vadd.xlane.f32.xlu0 %v3792
        %v3801 = vpop.xlane.xlu0 %3800
        %v3802 = vsel %vm1250, %v3793, 0.0
        %3803 = vadd.xlane.f32.xlu0 %v3802
        %v3804 = vpop.xlane.xlu0 %3803
        %v3805 = vmul.f32 %v3795, %v1254
        %v3806 = vmul.f32 %v3797, %v1254
        %v3807 = vmul.f32 %v3799, %v1254
        %v3808 = vmul.f32 %v3801, %v1254
        %v3809 = vmul.f32 %v3804, %v1254
        %v3810 = vadd.f32 %v3805, 1e-05
        %v3811 = vadd.f32 %v3806, 1e-05
        %v3812 = vadd.f32 %v3807, 1e-05
        %v3813 = vadd.f32 %v3808, 1e-05
        %v3814 = vadd.f32 %v3809, 1e-05
        %v3815 = vrsqrt.pop %v3810
        %v3816 = vrsqrt.pop %v3811
        %v3817 = vrsqrt.pop %v3812
        %v3818 = vrsqrt.pop %v3813
        %v3819 = vrsqrt.pop %v3814
        %v3820 = vmul.f32 %v3784, %v3815
        %v3821 = vmul.f32 %v3785, %v3816
        %v3822 = vmul.f32 %v3786, %v3817
        %v3823 = vmul.f32 %v3787, %v3818
        %v3824 = vmul.f32 %v3788, %v3819
        %v3825 = vlaneseq
        %v3826 = vshrl.u32 %v3825, 7
        %v3827 = vsub.s32 2, %v3826
        %v3828 = vrot.slane %v1241, %v3827
        %v3829 = vmul.f32 %v3820, %v3828
        %v3830 = vmul.f32 %v3821, %v3828
        %v3831 = vmul.f32 %v3822, %v3828
        %v3832 = vmul.f32 %v3823, %v3828
        %v3833 = vmul.f32 %v3824, %v3828
        %v3834 = vlaneseq
        %v3835 = vshrl.u32 %v3834, 7
        %v3836 = vsub.s32 3, %v3835
        %v3837 = vrot.slane %v1241, %v3836
        %v3838 = vadd.f32 %v3829, %v3837
        %v3839 = vadd.f32 %v3830, %v3837
        %v3840 = vadd.f32 %v3831, %v3837
        %v3841 = vadd.f32 %v3832, %v3837
        %v3842 = vadd.f32 %v3833, %v3837
        %v3843 = vpack.c.bf16 %v3839, %v3838
        %v3844 = vpack.c.bf16 %v3841, %v3840
        %v3845 = vpack.c.bf16 %v3842, %v3842
        %v3846 = vld [vmem:[%s820] sm:$0xff]
        %v3847 = vld [vmem:[%s820 + $0x8] sm:$0xff]
        %v3848 = vld [vmem:[%s820 + $0x10] sm:$0xff]
        %v3849 = vld [vmem:[%s820 + $0x18] sm:$0xff]
        %v3850 = vld [vmem:[%s820 + $0x20] sm:$0xff]
        %v3851 = vld [vmem:[%s820 + $0x28] sm:$0xff]
        %v3852 = vld [vmem:[%s820 + $0x30] sm:$0xff]
        %v3853 = vld [vmem:[%s820 + $0x38] sm:$0xff]
        %v3854 = vld [vmem:[%s820 + $0x40] sm:$0xff]
        %v3855 = vld [vmem:[%s820 + $0x48] sm:$0xff]
        %v3856 = vld [vmem:[%s820 + $0x50] sm:$0xff]
        %v3857 = vld [vmem:[%s820 + $0x58] sm:$0xff]
        %v3858 = vld [vmem:[%s820 + $0x60] sm:$0xff]
        %v3859 = vld [vmem:[%s820 + $0x68] sm:$0xff]
        %v3860 = vld [vmem:[%s820 + $0x70] sm:$0xff]
        %v3861 = vld [vmem:[%s820 + $0x78] sm:$0xff]
        %v3862 = vld [vmem:[%s820 + $0x80] sm:$0xff]
        %v3863 = vld [vmem:[%s820 + $0x88] sm:$0xff]
        %v3864 = vld [vmem:[%s820 + $0x90] sm:$0xff]
        %v3865 = vld [vmem:[%s820 + $0x98] sm:$0xff]
        %v3866 = vld [vmem:[%s820 + $0xa0] sm:$0xff]
        %v3867 = vld [vmem:[%s820 + $0xa8] sm:$0xff]
        %v3868 = vld [vmem:[%s820 + $0xb0] sm:$0xff]
        %v3869 = vld [vmem:[%s820 + $0xb8] sm:$0xff]
        %v3870 = vld [vmem:[%s820 + $0xc0] sm:$0xff]
        %v3871 = vld [vmem:[%s820 + $0xc8] sm:$0xff]
        %v3872 = vld [vmem:[%s820 + $0xd0] sm:$0xff]
        %v3873 = vld [vmem:[%s820 + $0xd8] sm:$0xff]
        %v3874 = vld [vmem:[%s820 + $0xe0] sm:$0xff]
        %v3875 = vld [vmem:[%s820 + $0xe8] sm:$0xff]
        %v3876 = vld [vmem:[%s820 + $0xf0] sm:$0xff]
        %v3877 = vld [vmem:[%s820 + $0xf8] sm:$0xff]
        %v3878 = vld [vmem:[%s824] sm:$0xf]
        %v3880 = vlaneseq
        %v3881 = vshrl.u32 %v3880, 7
        %v3882 = vsub.s32 0, %v3881
        %v3883 = vrot.slane %v3878, %v3882
        %v3884 = vlaneseq
        %v3885 = vshrl.u32 %v3884, 7
        %v3886 = vsub.s32 1, %v3885
        %v3887 = vrot.slane %v3878, %v3886
        %v3888 = vlaneseq
        %v3889 = vshrl.u32 %v3888, 7
        %v3890 = vsub.s32 2, %v3889
        %v3891 = vrot.slane %v3878, %v3890
        %v3892 = vlaneseq
        %v3893 = vshrl.u32 %v3892, 7
        %v3894 = vsub.s32 3, %v3893
        %v3895 = vrot.slane %v3878, %v3894
        %v3932 = vunpack.c.l.b16 %v3846
        %v3933 = vunpack.c.h.b16 %v3846
        %v3934 = vunpack.c.l.b16 %v3847
        %v3935 = vunpack.c.h.b16 %v3847
        %v3936 = vunpack.c.l.b16 %v3848
        %v3937 = vunpack.c.h.b16 %v3848
        %v3938 = vunpack.c.l.b16 %v3849
        %v3939 = vunpack.c.h.b16 %v3849
        %v3940 = vunpack.c.l.b16 %v3850
        %v3941 = vunpack.c.h.b16 %v3850
        %v3942 = vunpack.c.l.b16 %v3851
        %v3943 = vunpack.c.h.b16 %v3851
        %v3944 = vunpack.c.l.b16 %v3852
        %v3945 = vunpack.c.h.b16 %v3852
        %v3946 = vunpack.c.l.b16 %v3853
        %v3947 = vunpack.c.h.b16 %v3853
        %v3948 = vunpack.c.l.b16 %v3854
        %v3949 = vunpack.c.h.b16 %v3854
        %v3950 = vunpack.c.l.b16 %v3855
        %v3951 = vunpack.c.h.b16 %v3855
        %v3952 = vunpack.c.l.b16 %v3856
        %v3953 = vunpack.c.h.b16 %v3856
        %v3954 = vunpack.c.l.b16 %v3857
        %v3955 = vunpack.c.h.b16 %v3857
        %v3956 = vunpack.c.l.b16 %v3858
        %v3957 = vunpack.c.h.b16 %v3858
        %v3958 = vunpack.c.l.b16 %v3859
        %v3959 = vunpack.c.h.b16 %v3859
        %v3960 = vunpack.c.l.b16 %v3860
        %v3961 = vunpack.c.h.b16 %v3860
        %v3962 = vunpack.c.l.b16 %v3861
        %v3963 = vunpack.c.h.b16 %v3861
        %v3964 = vunpack.c.l.b16 %v3862
        %v3965 = vunpack.c.h.b16 %v3862
        %v3966 = vunpack.c.l.b16 %v3863
        %v3967 = vunpack.c.h.b16 %v3863
        %v3968 = vunpack.c.l.b16 %v3864
        %v3969 = vunpack.c.h.b16 %v3864
        %v3970 = vunpack.c.l.b16 %v3865
        %v3971 = vunpack.c.h.b16 %v3865
        %v3972 = vunpack.c.l.b16 %v3866
        %v3973 = vunpack.c.h.b16 %v3866
        %v3974 = vunpack.c.l.b16 %v3867
        %v3975 = vunpack.c.h.b16 %v3867
        %v3976 = vunpack.c.l.b16 %v3868
        %v3977 = vunpack.c.h.b16 %v3868
        %v3978 = vunpack.c.l.b16 %v3869
        %v3979 = vunpack.c.h.b16 %v3869
        %v3980 = vunpack.c.l.b16 %v3870
        %v3981 = vunpack.c.h.b16 %v3870
        %v3982 = vunpack.c.l.b16 %v3871
        %v3983 = vunpack.c.h.b16 %v3871
        %v3984 = vunpack.c.l.b16 %v3872
        %v3985 = vunpack.c.h.b16 %v3872
        %v3986 = vunpack.c.l.b16 %v3873
        %v3987 = vunpack.c.h.b16 %v3873
        %v3988 = vunpack.c.l.b16 %v3874
        %v3989 = vunpack.c.h.b16 %v3874
        %v3990 = vunpack.c.l.b16 %v3875
        %v3991 = vunpack.c.h.b16 %v3875
        %v3992 = vunpack.c.l.b16 %v3876
        %v3993 = vunpack.c.h.b16 %v3876
        %v3994 = vunpack.c.l.b16 %v3877
        %v3995 = vunpack.c.h.b16 %v3877
        %v3996 = vpack.c.b16 %v3936, %v3932
        %v3997 = vpack.c.b16 %v3937, %v3933
        %v3998 = vpack.c.b16 %v3938, %v3934
        %v3999 = vpack.c.b16 %v3939, %v3935
        %v4000 = vpack.c.b16 %v3944, %v3940
        %v4001 = vpack.c.b16 %v3945, %v3941
        %v4002 = vpack.c.b16 %v3946, %v3942
        %v4003 = vpack.c.b16 %v3947, %v3943
        %v4004 = vpack.c.b16 %v3952, %v3948
        %v4005 = vpack.c.b16 %v3953, %v3949
        %v4006 = vpack.c.b16 %v3954, %v3950
        %v4007 = vpack.c.b16 %v3955, %v3951
        %v4008 = vpack.c.b16 %v3960, %v3956
        %v4009 = vpack.c.b16 %v3961, %v3957
        %v4010 = vpack.c.b16 %v3962, %v3958
        %v4011 = vpack.c.b16 %v3963, %v3959
        %v4012 = vpack.c.b16 %v3968, %v3964
        %v4013 = vpack.c.b16 %v3969, %v3965
        %v4014 = vpack.c.b16 %v3970, %v3966
        %v4015 = vpack.c.b16 %v3971, %v3967
        %v4016 = vpack.c.b16 %v3976, %v3972
        %v4017 = vpack.c.b16 %v3977, %v3973
        %v4018 = vpack.c.b16 %v3978, %v3974
        %v4019 = vpack.c.b16 %v3979, %v3975
        %v4020 = vpack.c.b16 %v3984, %v3980
        %v4021 = vpack.c.b16 %v3985, %v3981
        %v4022 = vpack.c.b16 %v3986, %v3982
        %v4023 = vpack.c.b16 %v3987, %v3983
        %v4024 = vpack.c.b16 %v3992, %v3988
        %v4025 = vpack.c.b16 %v3993, %v3989
        %v4026 = vpack.c.b16 %v3994, %v3990
        %v4027 = vpack.c.b16 %v3995, %v3991
        %4060 = vmatprep.subr.bf16.mxu0 %v3997
        %4061 = vmatpush1.bf16.msra.mxu0 %v3996
        %4062 = vmatprep.subr.bf16.mxu0 %v4001
        %4063 = vmatpush1.bf16.msra.mxu0 %v4000
        %4064 = vmatprep.subr.bf16.mxu0 %v4005
        %4065 = vmatpush1.bf16.msra.mxu0 %v4004
        %4066 = vmatprep.subr.bf16.mxu0 %v4009
        %4067 = vmatpush1.bf16.msra.mxu0 %v4008
        %4068 = vmatprep.subr.bf16.mxu0 %v4013
        %4069 = vmatpush1.bf16.msra.mxu0 %v4012
        %4070 = vmatprep.subr.bf16.mxu0 %v4017
        %4071 = vmatpush1.bf16.msra.mxu0 %v4016
        %4072 = vmatprep.subr.bf16.mxu0 %v4021
        %4073 = vmatpush1.bf16.msra.mxu0 %v4020
        %4074 = vmatprep.subr.bf16.mxu0 %v4025
        %4075 = vmatpush1.bf16.msra.mxu0 %v4024
        %4076 = vmatprep.subr.bf16.mxu0 0
        %4077 = vmatpush1.bf16.msra.mxu0 0
        %4078 = vmatprep.subr.bf16.mxu0 0
        %4079 = vmatpush1.bf16.msra.mxu0 0
        %4080 = vmatprep.subr.bf16.mxu0 0
        %4081 = vmatpush1.bf16.msra.mxu0 0
        %4082 = vmatprep.subr.bf16.mxu0 0
        %4083 = vmatpush1.bf16.msra.mxu0 0
        %4084 = vmatprep.subr.bf16.mxu0 0
        %4085 = vmatpush1.bf16.msra.mxu0 0
        %4086 = vmatprep.subr.bf16.mxu0 0
        %4087 = vmatpush1.bf16.msra.mxu0 0
        %4088 = vmatprep.subr.bf16.mxu0 0
        %4089 = vmatpush1.bf16.msra.mxu0 0
        %4090 = vmatprep.subr.bf16.mxu0 0
        %4091 = vmatpush1.bf16.msra.mxu0 0
        %4092 = vmatprep.mubr.bf16.mxu0 0
        %4093 = vmatmul.mubr.bf16.gmra.mrb[0].mxu0 %v3843
        %v4094 = vpop.f32.mrb[0].mxu0
        %v4095 = vadd.f32 %v3883, %v4094
        %v4096 = vpop.f32.mrb[0].mxu0
        %v4097 = vadd.f32 %v3887, %v4096
        %v4098 = vpop.f32.mrb[0].mxu0
        %v4099 = vadd.f32 %v3883, %v4098
        %v4100 = vpop.f32.mrb[0].mxu0
        %v4101 = vadd.f32 %v3887, %v4100
        %4102 = vmatprep.mubr.bf16.mxu0 0
        %4103 = vmatmul.mubr.bf16.gmra.mrb[0].mxu0 %v3844
        %v4104 = vpop.f32.mrb[0].mxu0
        %v4105 = vadd.f32 %v3883, %v4104
        %v4106 = vpop.f32.mrb[0].mxu0
        %v4107 = vadd.f32 %v3887, %v4106
        %v4108 = vpop.f32.mrb[0].mxu0
        %v4109 = vadd.f32 %v3883, %v4108
        %v4110 = vpop.f32.mrb[0].mxu0
        %v4111 = vadd.f32 %v3887, %v4110
        %4112 = vmatprep.mubr.bf16.mxu0 0
        %4113 = vmatmul.mubr.bf16.gmra.mrb[0].mxu0 %v3845
        %v4114 = vpop.f32.mrb[0].mxu0
        %v4115 = vadd.f32 %v3883, %v4114
        %v4116 = vpop.f32.mrb[0].mxu0
        %v4117 = vadd.f32 %v3887, %v4116
        %v4118 = vpop.f32.mrb[0].mxu0
        %v4119 = vpop.f32.mrb[0].mxu0
        %4120 = vdwg.mxu0
        %4121 = vmatprep.subr.bf16.mxu0 %v3999
        %4122 = vmatpush1.bf16.msra.mxu0 %v3998
        %4123 = vmatprep.subr.bf16.mxu0 %v4003
        %4124 = vmatpush1.bf16.msra.mxu0 %v4002
        %4125 = vmatprep.subr.bf16.mxu0 %v4007
        %4126 = vmatpush1.bf16.msra.mxu0 %v4006
        %4127 = vmatprep.subr.bf16.mxu0 %v4011
        %4128 = vmatpush1.bf16.msra.mxu0 %v4010
        %4129 = vmatprep.subr.bf16.mxu0 %v4015
        %4130 = vmatpush1.bf16.msra.mxu0 %v4014
        %4131 = vmatprep.subr.bf16.mxu0 %v4019
        %4132 = vmatpush1.bf16.msra.mxu0 %v4018
        %4133 = vmatprep.subr.bf16.mxu0 %v4023
        %4134 = vmatpush1.bf16.msra.mxu0 %v4022
        %4135 = vmatprep.subr.bf16.mxu0 %v4027
        %4136 = vmatpush1.bf16.msra.mxu0 %v4026
        %4137 = vmatprep.subr.bf16.mxu0 0
        %4138 = vmatpush1.bf16.msra.mxu0 0
        %4139 = vmatprep.subr.bf16.mxu0 0
        %4140 = vmatpush1.bf16.msra.mxu0 0
        %4141 = vmatprep.subr.bf16.mxu0 0
        %4142 = vmatpush1.bf16.msra.mxu0 0
        %4143 = vmatprep.subr.bf16.mxu0 0
        %4144 = vmatpush1.bf16.msra.mxu0 0
        %4145 = vmatprep.subr.bf16.mxu0 0
        %4146 = vmatpush1.bf16.msra.mxu0 0
        %4147 = vmatprep.subr.bf16.mxu0 0
        %4148 = vmatpush1.bf16.msra.mxu0 0
        %4149 = vmatprep.subr.bf16.mxu0 0
        %4150 = vmatpush1.bf16.msra.mxu0 0
        %4151 = vmatprep.subr.bf16.mxu0 0
        %4152 = vmatpush1.bf16.msra.mxu0 0
        %4153 = vmatprep.mubr.bf16.mxu0 0
        %4154 = vmatmul.mubr.bf16.gmra.mrb[0].mxu0 %v3843
        %v4155 = vpop.f32.mrb[0].mxu0
        %v4156 = vadd.f32 %v3891, %v4155
        %v4157 = vpop.f32.mrb[0].mxu0
        %v4158 = vadd.f32 %v3895, %v4157
        %v4159 = vpop.f32.mrb[0].mxu0
        %v4160 = vadd.f32 %v3891, %v4159
        %v4161 = vpop.f32.mrb[0].mxu0
        %v4162 = vadd.f32 %v3895, %v4161
        %4163 = vmatprep.mubr.bf16.mxu0 0
        %4164 = vmatmul.mubr.bf16.gmra.mrb[0].mxu0 %v3844
        %v4165 = vpop.f32.mrb[0].mxu0
        %v4166 = vadd.f32 %v3891, %v4165
        %v4167 = vpop.f32.mrb[0].mxu0
        %v4168 = vadd.f32 %v3895, %v4167
        %v4169 = vpop.f32.mrb[0].mxu0
        %v4170 = vadd.f32 %v3891, %v4169
        %v4171 = vpop.f32.mrb[0].mxu0
        %v4172 = vadd.f32 %v3895, %v4171
        %4173 = vmatprep.mubr.bf16.mxu0 0
        %4174 = vmatmul.mubr.bf16.gmra.mrb[0].mxu0 %v3845
        %v4175 = vpop.f32.mrb[0].mxu0
        %v4176 = vadd.f32 %v3891, %v4175
        %v4177 = vpop.f32.mrb[0].mxu0
        %v4178 = vadd.f32 %v3895, %v4177
        %v4179 = vpop.f32.mrb[0].mxu0
        %v4180 = vpop.f32.mrb[0].mxu0
        %4181 = vdwg.mxu0
        %v4182 = vmul.f32 %v4095, %v4095
        %v4183 = vmul.f32 %v4097, %v4097
        %v4184 = vmul.f32 %v4156, %v4156
        %v4185 = vmul.f32 %v4158, %v4158
        %v4186 = vmul.f32 %v4099, %v4099
        %v4187 = vmul.f32 %v4101, %v4101
        %v4188 = vmul.f32 %v4160, %v4160
        %v4189 = vmul.f32 %v4162, %v4162
        %v4190 = vmul.f32 %v4105, %v4105
        %v4191 = vmul.f32 %v4107, %v4107
        %v4192 = vmul.f32 %v4166, %v4166
        %v4193 = vmul.f32 %v4168, %v4168
        %v4194 = vmul.f32 %v4109, %v4109
        %v4195 = vmul.f32 %v4111, %v4111
        %v4196 = vmul.f32 %v4170, %v4170
        %v4197 = vmul.f32 %v4172, %v4172
        %v4198 = vmul.f32 %v4115, %v4115
        %v4199 = vmul.f32 %v4117, %v4117
        %v4200 = vmul.f32 %v4176, %v4176
        %v4201 = vmul.f32 %v4178, %v4178
        %v4202 = vmul.f32 %v4095, %v4182
        %v4203 = vmul.f32 %v4097, %v4183
        %v4204 = vmul.f32 %v4156, %v4184
        %v4205 = vmul.f32 %v4158, %v4185
        %v4206 = vmul.f32 %v4099, %v4186
        %v4207 = vmul.f32 %v4101, %v4187
        %v4208 = vmul.f32 %v4160, %v4188
        %v4209 = vmul.f32 %v4162, %v4189
        %v4210 = vmul.f32 %v4105, %v4190
        %v4211 = vmul.f32 %v4107, %v4191
        %v4212 = vmul.f32 %v4166, %v4192
        %v4213 = vmul.f32 %v4168, %v4193
        %v4214 = vmul.f32 %v4109, %v4194
        %v4215 = vmul.f32 %v4111, %v4195
        %v4216 = vmul.f32 %v4170, %v4196
        %v4217 = vmul.f32 %v4172, %v4197
        %v4218 = vmul.f32 %v4115, %v4198
        %v4219 = vmul.f32 %v4117, %v4199
        %v4220 = vmul.f32 %v4176, %v4200
        %v4221 = vmul.f32 %v4178, %v4201
        %v4222 = vmul.f32 %v4202, 0.044715
        %v4223 = vmul.f32 %v4203, 0.044715
        %v4224 = vmul.f32 %v4204, 0.044715
        %v4225 = vmul.f32 %v4205, 0.044715
        %v4226 = vmul.f32 %v4206, 0.044715
        %v4227 = vmul.f32 %v4207, 0.044715
        %v4228 = vmul.f32 %v4208, 0.044715
        %v4229 = vmul.f32 %v4209, 0.044715
        %v4230 = vmul.f32 %v4210, 0.044715
        %v4231 = vmul.f32 %v4211, 0.044715
        %v4232 = vmul.f32 %v4212, 0.044715
        %v4233 = vmul.f32 %v4213, 0.044715
        %v4234 = vmul.f32 %v4214, 0.044715
        %v4235 = vmul.f32 %v4215, 0.044715
        %v4236 = vmul.f32 %v4216, 0.044715
        %v4237 = vmul.f32 %v4217, 0.044715
        %v4238 = vmul.f32 %v4218, 0.044715
        %v4239 = vmul.f32 %v4219, 0.044715
        %v4240 = vmul.f32 %v4220, 0.044715
        %v4241 = vmul.f32 %v4221, 0.044715
        %v4242 = vadd.f32 %v4095, %v4222
        %v4243 = vadd.f32 %v4097, %v4223
        %v4244 = vadd.f32 %v4156, %v4224
        %v4245 = vadd.f32 %v4158, %v4225
        %v4246 = vadd.f32 %v4099, %v4226
        %v4247 = vadd.f32 %v4101, %v4227
        %v4248 = vadd.f32 %v4160, %v4228
        %v4249 = vadd.f32 %v4162, %v4229
        %v4250 = vadd.f32 %v4105, %v4230
        %v4251 = vadd.f32 %v4107, %v4231
        %v4252 = vadd.f32 %v4166, %v4232
        %v4253 = vadd.f32 %v4168, %v4233
        %v4254 = vadd.f32 %v4109, %v4234
        %v4255 = vadd.f32 %v4111, %v4235
        %v4256 = vadd.f32 %v4170, %v4236
        %v4257 = vadd.f32 %v4172, %v4237
        %v4258 = vadd.f32 %v4115, %v4238
        %v4259 = vadd.f32 %v4117, %v4239
        %v4260 = vadd.f32 %v4176, %v4240
        %v4261 = vadd.f32 %v4178, %v4241
        %v4262 = vmul.f32 %v4242, 0.7978846
        %v4263 = vmul.f32 %v4243, 0.7978846
        %v4264 = vmul.f32 %v4244, 0.7978846
        %v4265 = vmul.f32 %v4245, 0.7978846
        %v4266 = vmul.f32 %v4246, 0.7978846
        %v4267 = vmul.f32 %v4247, 0.7978846
        %v4268 = vmul.f32 %v4248, 0.7978846
        %v4269 = vmul.f32 %v4249, 0.7978846
        %v4270 = vmul.f32 %v4250, 0.7978846
        %v4271 = vmul.f32 %v4251, 0.7978846
        %v4272 = vmul.f32 %v4252, 0.7978846
        %v4273 = vmul.f32 %v4253, 0.7978846
        %v4274 = vmul.f32 %v4254, 0.7978846
        %v4275 = vmul.f32 %v4255, 0.7978846
        %v4276 = vmul.f32 %v4256, 0.7978846
        %v4277 = vmul.f32 %v4257, 0.7978846
        %v4278 = vmul.f32 %v4258, 0.7978846
        %v4279 = vmul.f32 %v4259, 0.7978846
        %v4280 = vmul.f32 %v4260, 0.7978846
        %v4281 = vmul.f32 %v4261, 0.7978846
        %v4282 = vtanh.pop %v4262
        %v4283 = vtanh.pop %v4263
        %v4284 = vtanh.pop %v4264
        %v4285 = vtanh.pop %v4265
        %v4286 = vtanh.pop %v4266
        %v4287 = vtanh.pop %v4267
        %v4288 = vtanh.pop %v4268
        %v4289 = vtanh.pop %v4269
        %v4290 = vtanh.pop %v4270
        %v4291 = vtanh.pop %v4271
        %v4292 = vtanh.pop %v4272
        %v4293 = vtanh.pop %v4273
        %v4294 = vtanh.pop %v4274
        %v4295 = vtanh.pop %v4275
        %v4296 = vtanh.pop %v4276
        %v4297 = vtanh.pop %v4277
        %v4298 = vtanh.pop %v4278
        %v4299 = vtanh.pop %v4279
        %v4300 = vtanh.pop %v4280
        %v4301 = vtanh.pop %v4281
        %v4302 = vadd.f32 %v4282, 1.0
        %v4303 = vadd.f32 %v4283, 1.0
        %v4304 = vadd.f32 %v4284, 1.0
        %v4305 = vadd.f32 %v4285, 1.0
        %v4306 = vadd.f32 %v4286, 1.0
        %v4307 = vadd.f32 %v4287, 1.0
        %v4308 = vadd.f32 %v4288, 1.0
        %v4309 = vadd.f32 %v4289, 1.0
        %v4310 = vadd.f32 %v4290, 1.0
        %v4311 = vadd.f32 %v4291, 1.0
        %v4312 = vadd.f32 %v4292, 1.0
        %v4313 = vadd.f32 %v4293, 1.0
        %v4314 = vadd.f32 %v4294, 1.0
        %v4315 = vadd.f32 %v4295, 1.0
        %v4316 = vadd.f32 %v4296, 1.0
        %v4317 = vadd.f32 %v4297, 1.0
        %v4318 = vadd.f32 %v4298, 1.0
        %v4319 = vadd.f32 %v4299, 1.0
        %v4320 = vadd.f32 %v4300, 1.0
        %v4321 = vadd.f32 %v4301, 1.0
        %v4322 = vmul.f32 %v4302, 0.5
        %v4323 = vmul.f32 %v4303, 0.5
        %v4324 = vmul.f32 %v4304, 0.5
        %v4325 = vmul.f32 %v4305, 0.5
        %v4326 = vmul.f32 %v4306, 0.5
        %v4327 = vmul.f32 %v4307, 0.5
        %v4328 = vmul.f32 %v4308, 0.5
        %v4329 = vmul.f32 %v4309, 0.5
        %v4330 = vmul.f32 %v4310, 0.5
        %v4331 = vmul.f32 %v4311, 0.5
        %v4332 = vmul.f32 %v4312, 0.5
        %v4333 = vmul.f32 %v4313, 0.5
        %v4334 = vmul.f32 %v4314, 0.5
        %v4335 = vmul.f32 %v4315, 0.5
        %v4336 = vmul.f32 %v4316, 0.5
        %v4337 = vmul.f32 %v4317, 0.5
        %v4338 = vmul.f32 %v4318, 0.5
        %v4339 = vmul.f32 %v4319, 0.5
        %v4340 = vmul.f32 %v4320, 0.5
        %v4341 = vmul.f32 %v4321, 0.5
        %v4342 = vmul.f32 %v4095, %v4322
        %v4343 = vmul.f32 %v4097, %v4323
        %v4344 = vmul.f32 %v4156, %v4324
        %v4345 = vmul.f32 %v4158, %v4325
        %v4346 = vmul.f32 %v4099, %v4326
        %v4347 = vmul.f32 %v4101, %v4327
        %v4348 = vmul.f32 %v4160, %v4328
        %v4349 = vmul.f32 %v4162, %v4329
        %v4350 = vmul.f32 %v4105, %v4330
        %v4351 = vmul.f32 %v4107, %v4331
        %v4352 = vmul.f32 %v4166, %v4332
        %v4353 = vmul.f32 %v4168, %v4333
        %v4354 = vmul.f32 %v4109, %v4334
        %v4355 = vmul.f32 %v4111, %v4335
        %v4356 = vmul.f32 %v4170, %v4336
        %v4357 = vmul.f32 %v4172, %v4337
        %v4358 = vmul.f32 %v4115, %v4338
        %v4359 = vmul.f32 %v4117, %v4339
        %v4360 = vmul.f32 %v4176, %v4340
        %v4361 = vmul.f32 %v4178, %v4341
        %v4362 = vpack.c.bf16 %v4346, %v4342
        %v4363 = vpack.c.bf16 %v4347, %v4343
        %v4364 = vpack.c.bf16 %v4348, %v4344
        %v4365 = vpack.c.bf16 %v4349, %v4345
        %v4366 = vpack.c.bf16 %v4354, %v4350
        %v4367 = vpack.c.bf16 %v4355, %v4351
        %v4368 = vpack.c.bf16 %v4356, %v4352
        %v4369 = vpack.c.bf16 %v4357, %v4353
        %v4370 = vpack.c.bf16 %v4358, %v4358
        %v4371 = vpack.c.bf16 %v4359, %v4359
        %v4372 = vpack.c.bf16 %v4360, %v4360
        %v4373 = vpack.c.bf16 %v4361, %v4361
        %v4374 = vld [vmem:[%s829] sm:$0xf]
        %v4375 = vld [vmem:[%s829 + $0x4] sm:$0xf]
        %v4376 = vld [vmem:[%s829 + $0x8] sm:$0xf]
        %v4377 = vld [vmem:[%s829 + $0xc] sm:$0xf]
        %v4378 = vld [vmem:[%s829 + $0x10] sm:$0xf]
        %v4379 = vld [vmem:[%s829 + $0x14] sm:$0xf]
        %v4380 = vld [vmem:[%s829 + $0x18] sm:$0xf]
        %v4381 = vld [vmem:[%s829 + $0x1c] sm:$0xf]
        %v4382 = vld [vmem:[%s829 + $0x20] sm:$0xf]
        %v4383 = vld [vmem:[%s829 + $0x24] sm:$0xf]
        %v4384 = vld [vmem:[%s829 + $0x28] sm:$0xf]
        %v4385 = vld [vmem:[%s829 + $0x2c] sm:$0xf]
        %v4386 = vld [vmem:[%s829 + $0x30] sm:$0xf]
        %v4387 = vld [vmem:[%s829 + $0x34] sm:$0xf]
        %v4388 = vld [vmem:[%s829 + $0x38] sm:$0xf]
        %v4389 = vld [vmem:[%s829 + $0x3c] sm:$0xf]
        %v4390 = vld [vmem:[%s829 + $0x40] sm:$0xf]
        %v4391 = vld [vmem:[%s829 + $0x44] sm:$0xf]
        %v4392 = vld [vmem:[%s829 + $0x48] sm:$0xf]
        %v4393 = vld [vmem:[%s829 + $0x4c] sm:$0xf]
        %v4394 = vld [vmem:[%s829 + $0x50] sm:$0xf]
        %v4395 = vld [vmem:[%s829 + $0x54] sm:$0xf]
        %v4396 = vld [vmem:[%s829 + $0x58] sm:$0xf]
        %v4397 = vld [vmem:[%s829 + $0x5c] sm:$0xf]
        %v4398 = vld [vmem:[%s829 + $0x60] sm:$0xf]
        %v4399 = vld [vmem:[%s829 + $0x64] sm:$0xf]
        %v4400 = vld [vmem:[%s829 + $0x68] sm:$0xf]
        %v4401 = vld [vmem:[%s829 + $0x6c] sm:$0xf]
        %v4402 = vld [vmem:[%s829 + $0x70] sm:$0xf]
        %v4403 = vld [vmem:[%s829 + $0x74] sm:$0xf]
        %v4404 = vld [vmem:[%s829 + $0x78] sm:$0xf]
        %v4405 = vld [vmem:[%s829 + $0x7c] sm:$0xf]
        %v4406 = vld [vmem:[%s829 + $0x80] sm:$0xf]
        %v4407 = vld [vmem:[%s829 + $0x84] sm:$0xf]
        %v4408 = vld [vmem:[%s829 + $0x88] sm:$0xf]
        %v4409 = vld [vmem:[%s829 + $0x8c] sm:$0xf]
        %v4410 = vld [vmem:[%s829 + $0x90] sm:$0xf]
        %v4411 = vld [vmem:[%s829 + $0x94] sm:$0xf]
        %v4412 = vld [vmem:[%s829 + $0x98] sm:$0xf]
        %v4413 = vld [vmem:[%s829 + $0x9c] sm:$0xf]
        %v4414 = vld [vmem:[%s829 + $0xa0] sm:$0xf]
        %v4415 = vld [vmem:[%s829 + $0xa4] sm:$0xf]
        %v4416 = vld [vmem:[%s829 + $0xa8] sm:$0xf]
        %v4417 = vld [vmem:[%s829 + $0xac] sm:$0xf]
        %v4418 = vld [vmem:[%s829 + $0xb0] sm:$0xf]
        %v4419 = vld [vmem:[%s829 + $0xb4] sm:$0xf]
        %v4420 = vld [vmem:[%s829 + $0xb8] sm:$0xf]
        %v4421 = vld [vmem:[%s829 + $0xbc] sm:$0xf]
        %v4422 = vld [vmem:[%s829 + $0xc0] sm:$0xf]
        %v4423 = vld [vmem:[%s829 + $0xc4] sm:$0xf]
        %v4424 = vld [vmem:[%s829 + $0xc8] sm:$0xf]
        %v4425 = vld [vmem:[%s829 + $0xcc] sm:$0xf]
        %v4426 = vld [vmem:[%s829 + $0xd0] sm:$0xf]
        %v4427 = vld [vmem:[%s829 + $0xd4] sm:$0xf]
        %v4428 = vld [vmem:[%s829 + $0xd8] sm:$0xf]
        %v4429 = vld [vmem:[%s829 + $0xdc] sm:$0xf]
        %v4430 = vld [vmem:[%s829 + $0xe0] sm:$0xf]
        %v4431 = vld [vmem:[%s829 + $0xe4] sm:$0xf]
        %v4432 = vld [vmem:[%s829 + $0xe8] sm:$0xf]
        %v4433 = vld [vmem:[%s829 + $0xec] sm:$0xf]
        %v4434 = vld [vmem:[%s829 + $0xf0] sm:$0xf]
        %v4435 = vld [vmem:[%s829 + $0xf4] sm:$0xf]
        %v4436 = vld [vmem:[%s829 + $0xf8] sm:$0xf]
        %v4437 = vld [vmem:[%s829 + $0xfc] sm:$0xf]
        %v4438 = vld [vmem:[%s832] sm:$0x1]
        %v4440 = vlaneseq
        %v4441 = vshrl.u32 %v4440, 7
        %v4442 = vsub.s32 0, %v4441
        %v4443 = vrot.slane %v4438, %v4442
        %v4509 = vunpack.c.l.b16 %v4374
        %v4510 = vunpack.c.l.b16 %v4375
        %v4511 = vunpack.c.l.b16 %v4376
        %v4512 = vunpack.c.l.b16 %v4377
        %v4513 = vunpack.c.l.b16 %v4378
        %v4514 = vunpack.c.l.b16 %v4379
        %v4515 = vunpack.c.l.b16 %v4380
        %v4516 = vunpack.c.l.b16 %v4381
        %v4517 = vunpack.c.l.b16 %v4382
        %v4518 = vunpack.c.l.b16 %v4383
        %v4519 = vunpack.c.l.b16 %v4384
        %v4520 = vunpack.c.l.b16 %v4385
        %v4521 = vunpack.c.l.b16 %v4386
        %v4522 = vunpack.c.l.b16 %v4387
        %v4523 = vunpack.c.l.b16 %v4388
        %v4524 = vunpack.c.l.b16 %v4389
        %v4525 = vunpack.c.l.b16 %v4390
        %v4526 = vunpack.c.l.b16 %v4391
        %v4527 = vunpack.c.l.b16 %v4392
        %v4528 = vunpack.c.l.b16 %v4393
        %v4529 = vunpack.c.l.b16 %v4394
        %v4530 = vunpack.c.l.b16 %v4395
        %v4531 = vunpack.c.l.b16 %v4396
        %v4532 = vunpack.c.l.b16 %v4397
        %v4533 = vunpack.c.l.b16 %v4398
        %v4534 = vunpack.c.l.b16 %v4399
        %v4535 = vunpack.c.l.b16 %v4400
        %v4536 = vunpack.c.l.b16 %v4401
        %v4537 = vunpack.c.l.b16 %v4402
        %v4538 = vunpack.c.l.b16 %v4403
        %v4539 = vunpack.c.l.b16 %v4404
        %v4540 = vunpack.c.l.b16 %v4405
        %v4541 = vunpack.c.l.b16 %v4406
        %v4542 = vunpack.c.l.b16 %v4407
        %v4543 = vunpack.c.l.b16 %v4408
        %v4544 = vunpack.c.l.b16 %v4409
        %v4545 = vunpack.c.l.b16 %v4410
        %v4546 = vunpack.c.l.b16 %v4411
        %v4547 = vunpack.c.l.b16 %v4412
        %v4548 = vunpack.c.l.b16 %v4413
        %v4549 = vunpack.c.l.b16 %v4414
        %v4550 = vunpack.c.l.b16 %v4415
        %v4551 = vunpack.c.l.b16 %v4416
        %v4552 = vunpack.c.l.b16 %v4417
        %v4553 = vunpack.c.l.b16 %v4418
        %v4554 = vunpack.c.l.b16 %v4419
        %v4555 = vunpack.c.l.b16 %v4420
        %v4556 = vunpack.c.l.b16 %v4421
        %v4557 = vunpack.c.l.b16 %v4422
        %v4558 = vunpack.c.l.b16 %v4423
        %v4559 = vunpack.c.l.b16 %v4424
        %v4560 = vunpack.c.l.b16 %v4425
        %v4561 = vunpack.c.l.b16 %v4426
        %v4562 = vunpack.c.l.b16 %v4427
        %v4563 = vunpack.c.l.b16 %v4428
        %v4564 = vunpack.c.l.b16 %v4429
        %v4565 = vunpack.c.l.b16 %v4430
        %v4566 = vunpack.c.l.b16 %v4431
        %v4567 = vunpack.c.l.b16 %v4432
        %v4568 = vunpack.c.l.b16 %v4433
        %v4569 = vunpack.c.l.b16 %v4434
        %v4570 = vunpack.c.l.b16 %v4435
        %v4571 = vunpack.c.l.b16 %v4436
        %v4572 = vunpack.c.l.b16 %v4437
        %v4573 = vpack.c.b16 %v4510, %v4509
        %v4574 = vpack.c.b16 %v4512, %v4511
        %v4575 = vpack.c.b16 %v4514, %v4513
        %v4576 = vpack.c.b16 %v4516, %v4515
        %v4577 = vpack.c.b16 %v4518, %v4517
        %v4578 = vpack.c.b16 %v4520, %v4519
        %v4579 = vpack.c.b16 %v4522, %v4521
        %v4580 = vpack.c.b16 %v4524, %v4523
        %v4581 = vpack.c.b16 %v4526, %v4525
        %v4582 = vpack.c.b16 %v4528, %v4527
        %v4583 = vpack.c.b16 %v4530, %v4529
        %v4584 = vpack.c.b16 %v4532, %v4531
        %v4585 = vpack.c.b16 %v4534, %v4533
        %v4586 = vpack.c.b16 %v4536, %v4535
        %v4587 = vpack.c.b16 %v4538, %v4537
        %v4588 = vpack.c.b16 %v4540, %v4539
        %v4589 = vpack.c.b16 %v4542, %v4541
        %v4590 = vpack.c.b16 %v4544, %v4543
        %v4591 = vpack.c.b16 %v4546, %v4545
        %v4592 = vpack.c.b16 %v4548, %v4547
        %v4593 = vpack.c.b16 %v4550, %v4549
        %v4594 = vpack.c.b16 %v4552, %v4551
        %v4595 = vpack.c.b16 %v4554, %v4553
        %v4596 = vpack.c.b16 %v4556, %v4555
        %v4597 = vpack.c.b16 %v4558, %v4557
        %v4598 = vpack.c.b16 %v4560, %v4559
        %v4599 = vpack.c.b16 %v4562, %v4561
        %v4600 = vpack.c.b16 %v4564, %v4563
        %v4601 = vpack.c.b16 %v4566, %v4565
        %v4602 = vpack.c.b16 %v4568, %v4567
        %v4603 = vpack.c.b16 %v4570, %v4569
        %v4604 = vpack.c.b16 %v4572, %v4571
        %4637 = vmatprep.subr.bf16.mxu0 0
        %4638 = vmatpush1.bf16.msra.mxu0 %v4573
        %4639 = vmatprep.subr.bf16.mxu0 0
        %4640 = vmatpush1.bf16.msra.mxu0 %v4574
        %4641 = vmatprep.subr.bf16.mxu0 0
        %4642 = vmatpush1.bf16.msra.mxu0 %v4575
        %4643 = vmatprep.subr.bf16.mxu0 0
        %4644 = vmatpush1.bf16.msra.mxu0 %v4576
        %4645 = vmatprep.subr.bf16.mxu0 0
        %4646 = vmatpush1.bf16.msra.mxu0 %v4577
        %4647 = vmatprep.subr.bf16.mxu0 0
        %4648 = vmatpush1.bf16.msra.mxu0 %v4578
        %4649 = vmatprep.subr.bf16.mxu0 0
        %4650 = vmatpush1.bf16.msra.mxu0 %v4579
        %4651 = vmatprep.subr.bf16.mxu0 0
        %4652 = vmatpush1.bf16.msra.mxu0 %v4580
        %4653 = vmatprep.subr.bf16.mxu0 0
        %4654 = vmatpush1.bf16.msra.mxu0 %v4581
        %4655 = vmatprep.subr.bf16.mxu0 0
        %4656 = vmatpush1.bf16.msra.mxu0 %v4582
        %4657 = vmatprep.subr.bf16.mxu0 0
        %4658 = vmatpush1.bf16.msra.mxu0 %v4583
        %4659 = vmatprep.subr.bf16.mxu0 0
        %4660 = vmatpush1.bf16.msra.mxu0 %v4584
        %4661 = vmatprep.subr.bf16.mxu0 0
        %4662 = vmatpush1.bf16.msra.mxu0 %v4585
        %4663 = vmatprep.subr.bf16.mxu0 0
        %4664 = vmatpush1.bf16.msra.mxu0 %v4586
        %4665 = vmatprep.subr.bf16.mxu0 0
        %4666 = vmatpush1.bf16.msra.mxu0 %v4587
        %4667 = vmatprep.subr.bf16.mxu0 0
        %4668 = vmatpush1.bf16.msra.mxu0 %v4588
        %4669 = vmatprep.mubr.bf16.mxu0 %v4363
        %4670 = vmatmul.mubr.bf16.gmra.mrb[0].mxu0 %v4362
        %v4671 = vpop.f32.mrb[0].mxu0
        %v4672 = vadd.f32 %v4443, %v4671
        %v4673 = vpop.f32.mrb[0].mxu0
        %v4674 = vpop.f32.mrb[0].mxu0
        %v4675 = vadd.f32 %v4443, %v4674
        %v4676 = vpop.f32.mrb[0].mxu0
        %4677 = vmatprep.mubr.bf16.mxu0 %v4367
        %4678 = vmatmul.mubr.bf16.gmra.mrb[0].mxu0 %v4366
        %v4679 = vpop.f32.mrb[0].mxu0
        %v4680 = vadd.f32 %v4443, %v4679
        %v4681 = vpop.f32.mrb[0].mxu0
        %v4682 = vpop.f32.mrb[0].mxu0
        %v4683 = vadd.f32 %v4443, %v4682
        %v4684 = vpop.f32.mrb[0].mxu0
        %4685 = vmatprep.mubr.bf16.mxu0 %v4371
        %4686 = vmatmul.mubr.bf16.gmra.mrb[0].mxu0 %v4370
        %v4687 = vpop.f32.mrb[0].mxu0
        %v4688 = vadd.f32 %v4443, %v4687
        %v4689 = vpop.f32.mrb[0].mxu0
        %v4690 = vpop.f32.mrb[0].mxu0
        %v4691 = vpop.f32.mrb[0].mxu0
        %4692 = vdwg.mxu0
        %4693 = vmatprep.subr.bf16.mxu0 0
        %4694 = vmatpush1.bf16.msra.mxu0 %v4589
        %4695 = vmatprep.subr.bf16.mxu0 0
        %4696 = vmatpush1.bf16.msra.mxu0 %v4590
        %4697 = vmatprep.subr.bf16.mxu0 0
        %4698 = vmatpush1.bf16.msra.mxu0 %v4591
        %4699 = vmatprep.subr.bf16.mxu0 0
        %4700 = vmatpush1.bf16.msra.mxu0 %v4592
        %4701 = vmatprep.subr.bf16.mxu0 0
        %4702 = vmatpush1.bf16.msra.mxu0 %v4593
        %4703 = vmatprep.subr.bf16.mxu0 0
        %4704 = vmatpush1.bf16.msra.mxu0 %v4594
        %4705 = vmatprep.subr.bf16.mxu0 0
        %4706 = vmatpush1.bf16.msra.mxu0 %v4595
        %4707 = vmatprep.subr.bf16.mxu0 0
        %4708 = vmatpush1.bf16.msra.mxu0 %v4596
        %4709 = vmatprep.subr.bf16.mxu0 0
        %4710 = vmatpush1.bf16.msra.mxu0 %v4597
        %4711 = vmatprep.subr.bf16.mxu0 0
        %4712 = vmatpush1.bf16.msra.mxu0 %v4598
        %4713 = vmatprep.subr.bf16.mxu0 0
        %4714 = vmatpush1.bf16.msra.mxu0 %v4599
        %4715 = vmatprep.subr.bf16.mxu0 0
        %4716 = vmatpush1.bf16.msra.mxu0 %v4600
        %4717 = vmatprep.subr.bf16.mxu0 0
        %4718 = vmatpush1.bf16.msra.mxu0 %v4601
        %4719 = vmatprep.subr.bf16.mxu0 0
        %4720 = vmatpush1.bf16.msra.mxu0 %v4602
        %4721 = vmatprep.subr.bf16.mxu0 0
        %4722 = vmatpush1.bf16.msra.mxu0 %v4603
        %4723 = vmatprep.subr.bf16.mxu0 0
        %4724 = vmatpush1.bf16.msra.mxu0 %v4604
        %4725 = vmatprep.mubr.bf16.mxu0 %v4365
        %4726 = vmatmul.mubr.bf16.gmra.mrb[0].mxu0 %v4364
        %v4727 = vpop.f32.mrb[0].mxu0
        %v4728 = vadd.f32 %v4672, %v4727
        %v4729 = vpop.f32.mrb[0].mxu0
        %v4730 = vpop.f32.mrb[0].mxu0
        %v4731 = vadd.f32 %v4675, %v4730
        %v4732 = vpop.f32.mrb[0].mxu0
        %4733 = vmatprep.mubr.bf16.mxu0 %v4369
        %4734 = vmatmul.mubr.bf16.gmra.mrb[0].mxu0 %v4368
        %v4735 = vpop.f32.mrb[0].mxu0
        %v4736 = vadd.f32 %v4680, %v4735
        %v4737 = vpop.f32.mrb[0].mxu0
        %v4738 = vpop.f32.mrb[0].mxu0
        %v4739 = vadd.f32 %v4683, %v4738
        %v4740 = vpop.f32.mrb[0].mxu0
        %4741 = vmatprep.mubr.bf16.mxu0 %v4373
        %4742 = vmatmul.mubr.bf16.gmra.mrb[0].mxu0 %v4372
        %v4743 = vpop.f32.mrb[0].mxu0
        %v4744 = vadd.f32 %v4688, %v4743
        %v4745 = vpop.f32.mrb[0].mxu0
        %v4746 = vpop.f32.mrb[0].mxu0
        %v4747 = vpop.f32.mrb[0].mxu0
        %4748 = vdwg.mxu0
        %v4749 = vadd.f32 %v3763, %v4728
        %v4750 = vadd.f32 %v3764, %v4731
        %v4751 = vadd.f32 %v3765, %v4736
        %v4752 = vadd.f32 %v3766, %v4739
        %v4753 = vadd.f32 %v3767, %v4744
        %4754 = vst [vmem:[#allocation2] sm:$0xff] %v4749
        %4755 = vst [vmem:[#allocation2 + $0x8] sm:$0xff] %v4750
        %4756 = vst [vmem:[#allocation2 + $0x10] sm:$0xff] %v4751
        %4757 = vst [vmem:[#allocation2 + $0x18] sm:$0xff] %v4752
        %4758 = vst [vmem:[#allocation2 + $0x20] sm:$0x3] %v4753
        %p4759 = scmp.eq.s32.totalorder %s36, 1
        // Predicated region
        $region101: #{slr_forward.1} parent=95 // pred_check
          %p4760 = pneg %p4759
        $region102: #{slr_forward.1} parent=95 // pred_check_branch
          %4762 = sbr.rel (%p4760) target = $region104
        $region103: #{slr_forward.1} parent=95 // pred_region
          %v4763 = vld [vmem:[%s18] sm:$0x1]
          %v4764 = vsel %vm1762, %v4749, 0.0
          %4765 = vadd.xlane.f32.xlu0 %v4764
          %v4766 = vpop.xlane.xlu0 %4765
          %v4767 = vmul.f32 %v4766, %v1254
          %v4768 = vsub.f32 %v4749, %v4767
          %v4769 = vmul.f32 %v4768, %v4768
          %v4770 = vsel %vm1762, %v4769, 0.0
          %4771 = vadd.xlane.f32.xlu0 %v4770
          %v4772 = vpop.xlane.xlu0 %4771
          %v4773 = vmul.f32 %v4772, %v1254
          %v4774 = vadd.f32 %v4773, 1e-05
          %v4775 = vrsqrt.pop %v4774
          %v4776 = vmul.f32 %v4768, %v4775
          %v4777 = vmul.f32 %v4776, %v4763
          %v4778 = vadd.f32 %v4777, 0.0
          %4779 = vst [vmem:[#allocation4] sm:$0x1] %v4778
          %v4780 = vld [vmem:[%s18] sm:$0x1]
          %vm4781 = vcmask 1041409
          %v4782 = vsel %vm4781, %v4751, 0.0
          %4783 = vadd.xlane.f32.xlu0 %v4782
          %v4784 = vpop.xlane.xlu0 %4783
          %v4785 = vmul.f32 %v4784, %v1254
          %v4786 = vsub.f32 %v4751, %v4785
          %v4787 = vmul.f32 %v4786, %v4786
          %v4788 = vsel %vm4781, %v4787, 0.0
          %4789 = vadd.xlane.f32.xlu0 %v4788
          %v4790 = vpop.xlane.xlu0 %4789
          %v4791 = vmul.f32 %v4790, %v1254
          %v4792 = vadd.f32 %v4791, 1e-05
          %v4793 = vrsqrt.pop %v4792
          %v4794 = vmul.f32 %v4786, %v4793
          %v4796 = vlaneseq
          %v4797 = vshrl.u32 %v4796, 7
          %v4798 = vsub.s32 0, %v4797
          %v4799 = vrot.slane %v4780, %v4798
          %v4801 = vmul.f32 %v4794, %v4799
          %v4802 = vadd.f32 %v4801, 0.0
          %4803 = vst [vmem:[#allocation4] sm:$0x2] %v4802
        $region104: #{slr_forward.1} parent=95 // pred_fallthru
          _
        // Predicated region
        $region105: #{slr_forward.1} parent=95 // pred_check
          %p4804 = pneg %p525
        $region106: #{slr_forward.1} parent=95 // pred_check_branch
          %4806 = sbr.rel (%p4804) target = $region108
        $region107: #{slr_forward.1} parent=95 // pred_region
          %s4808 = ssub.s32 32, 32
          %4809 = vsyncadd [#allocation5], %s4808
          %s4810 = smul.addr %s35, 32
          %s4811 = scalar_lea.hbm %s19, %s4810
          %s4813 = sshll.u32 [#allocation4], 4
          %s4814 = int_to_ptr.vmem [resolvable:$true] %s4813
          %4816 = dma.vmem_to_hbm [thread:$0]  %s4814, 32, %s4811, [#allocation5]
        $region108: #{slr_forward.1} parent=95 // pred_fallthru
          _
        // Predicated region
        $region109: #{slr_forward.1} parent=95 // pred_check
          %p4817 = pneg %p525
        $region110: #{slr_forward.1} parent=95 // pred_check_branch
          %4819 = sbr.rel (%p4817) target = $region112
        $region111: #{slr_forward.1} parent=95 // pred_region
          %4820 = dma.done [#allocation5], 32
        $region112: #{slr_forward.1} parent=95 // pred_fallthru
          _
      $region96: #{slr_forward.1} parent=5 // pred_fallthru
        _
      %p4821 = scmp.le.s32.totalorder 2, %s26
      // Predicated region
      $region113: #{slr_forward.1} parent=5 // pred_check
        %p4822 = pneg %p4821
      $region114: #{slr_forward.1} parent=5 // pred_check_branch
        %4824 = sbr.rel (%p4822) target = $region116
      $region115: #{slr_forward.1} parent=5 // pred_region
        %s4825 = ssub.s32 %s26, 2
      $region116: #{slr_forward.1} parent=5 // pred_fallthru
        _
    $region6: #{slr_forward.1} parent=1 // loop_footer
      %s30 = sadd.s32 1, %s26
    $region7: #{slr_forward.1} parent=1 // loop_footer_branch
      %25 = sbr.rel target = $region3
    $region8: #{slr_forward.1} parent=1 // loop_exit
      _
    %4826 = vsyncpa [#allocation5], 1
    %s4827 = scalar_lea.sflag [#allocation5], 1
    %4828 = vsyncpa %s4827, 1

</llo_original>
